<compile_context>
chip_gen: v6e
topology: v6e:2x2x1
jax: 0.10.0
libtpu: 0.0.40
codegen_flags: <defaults>
</compile_context>

<pallas_src>
import functools

import jax
import jax.numpy as jnp
from jax import lax
from jax.experimental import pallas as pl
from jax.experimental.pallas import tpu as pltpu


def _round_up(x, m):
    return ((x + m - 1) // m) * m


def _embedding_byte_kernel(idx_ref, qw_hbm, sz_ref, out_ref, row_buf, dma_sem,
                           *, tile_n, n_inner):
    """Gather + dequantize tile_n embedding rows for one grid step.

    idx_ref : SMEM int32 (n_pad,)        -- scalar-prefetched, clamped indices
    qw_hbm  : HBM  int32 (E, Dq)         -- byte-packed table (4 uint8 / word)
    sz_ref  : VMEM f32   (tile_n, 2)     -- per-token [scale, zero_point]
    out_ref : VMEM       (tile_n, Dp)    -- output tile, Dp = 4 * Dq
    row_buf : VMEM int32 (2*tile_n, Dq)  -- double-buffered row landing buffer
    dma_sem : DMA semaphores (2,)        -- one per buffer slot
    """
    o = pl.program_id(0)
    i = pl.program_id(1)
    slot = lax.rem(i, 2)                 # double-buffer slot for this step
    tile = o * n_inner + i               # global token-tile index

    def issue(tile_idx, slot_):
        # Fully unrolled: one small DMA descriptor per gathered row.
        base = tile_idx * tile_n
        off = slot_ * tile_n
        for r in range(tile_n):
            row = idx_ref[base + r]
            pltpu.make_async_copy(qw_hbm.at[row], row_buf.at[off + r],
                                  dma_sem.at[slot_]).start()

    # Prime the first tile of this (per-core) chunk -- its gather is exposed.
    @pl.when(i == 0)
    def _():
        issue(tile, slot)

    # Prefetch the NEXT tile's rows into the other slot *before* waiting: the
    # HBM gather of tile t+1 overlaps this tile's unpack/dequant/store, and
    # all SMEM scalar reads happen before any .wait().
    @pl.when(i + 1 < pl.num_programs(1))
    def _():
        issue(tile + 1, 1 - slot)

    # Wait for this tile's rows.  Every descriptor copies exactly one packed
    # row (Dq * 4 bytes), so waiting with a stand-in src (row 0) balances the
    # per-slot semaphore byte accounting exactly.
    off = slot * tile_n
    for r in range(tile_n):              # fully unrolled
        pltpu.make_async_copy(qw_hbm.at[0], row_buf.at[off + r],
                              dma_sem.at[slot]).wait()

    # Unpack 4 uint8 per int32 word (quarter-column interleave -> lane-axis
    # concat restores original column order) and dequantize the whole tile in
    # one vectorized pass with a single lane-dense store.
    start = pl.multiple_of(slot * tile_n, 8)
    p = row_buf[pl.ds(start, tile_n), :]                 # (tile_n, Dq) int32
    b0 = p & 0xFF
    b1 = (p >> 8) & 0xFF
    b2 = (p >> 16) & 0xFF
    b3 = (p >> 24) & 0xFF
    w = jnp.concatenate([b0, b1, b2, b3], axis=-1).astype(jnp.float32)
    sz = sz_ref[...]                                     # (tile_n, 2)
    scale = sz[:, 0:1]
    zp = sz[:, 1:2]
    out_ref[...] = ((w - zp) * scale).astype(out_ref.dtype)


def _pack_qweight(qweight):
    """Pack (E, D) uint8 rows into (E, Dp/4) int32 words, Dp = round_up(D,128).

    Word j of row e holds bytes [qw[e, j], qw[e, Dq + j], qw[e, 2*Dq + j],
    qw[e, 3*Dq + j]] (Dq = Dp // 4): the in-kernel unpack only needs shifts,
    masks and a lane-dim concatenation to restore original column order, and
    Dp being a multiple of 128 keeps the output stores lane-dense.
    """
    E, D = qweight.shape
    Dp = _round_up(D, 128)
    qw = qweight if Dp == D else jnp.pad(qweight, ((0, 0), (0, Dp - D)))
    Dq = Dp // 4
    q4 = qw.reshape(E, 4, Dq).astype(jnp.uint32)
    packed = q4[:, 0] | (q4[:, 1] << 8) | (q4[:, 2] << 16) | (q4[:, 3] << 24)
    return jax.lax.bitcast_convert_type(packed, jnp.int32), Dp


def _pick_tile_n(n, Dp, requested):
    """Token-tile size from a per-generation VMEM budget."""
    try:
        info = pltpu.get_tpu_info()
        vmem_cap = int(getattr(info, "vmem_capacity_bytes", 64 << 20))
    except Exception:  # pragma: no cover - conservative fallback
        vmem_cap = 64 << 20
    # VMEM bytes per token row: double-buffered f32 output tile (Pallas
    # pipelining) + double-buffered int32 packed row buffer + qparam block.
    per_row = 2 * Dp * 4 + 2 * Dp + 16
    cap = max(8, (vmem_cap // 2) // per_row)         # leave half as headroom
    t = 512 if requested is None else int(requested)  # 512 caps unroll size
    t = min(t, cap, 512, _round_up(max(n, 1), 8))
    t = max(8, (t // 8) * 8)
    return t, per_row, vmem_cap


def quantized_embedding_byte(indices, qweight, scales, zero_points, *,
                             tile_n=None, out_dtype=jnp.float32):
    """JAX wrapper reproducing quantized::embedding_byte forward."""
    orig_shape = indices.shape
    E, D = qweight.shape

    # Clamp (PyTorch would raise on OOB; we clamp instead of reading OOB rows).
    idx_flat = jnp.clip(indices.reshape(-1).astype(jnp.int32), 0, E - 1)
    n = int(idx_flat.shape[0])
    if n == 0:
        return jnp.zeros((*orig_shape, D), dtype=out_dtype)

    # One-time table packing (would happen at prepack time in real use).
    qw_packed, Dp = _pack_qweight(qweight)            # (E, Dq) int32
    Dq = Dp // 4

    tile_n, per_row, vmem_cap = _pick_tile_n(n, Dp, tile_n)
    total = -(-n // tile_n)
    # Outer "parallel" axis so v7x megacore can shard token chunks across both
    # TensorCores; only split when there are enough tiles that the extra
    # per-chunk prime (one un-hidden gather per chunk) is negligible.
    n_outer = 2 if total >= 8 else 1
    n_inner = -(-total // n_outer)
    n_pad = tile_n * n_outer * n_inner
    idx_p = jnp.pad(idx_flat, (0, n_pad - n))         # padded rows sliced off

    # Per-token qparams (bytes ~ tokens, not vocab), one combined array so a
    # single tiny DMA per step carries both scale and zero point.
    sz = jnp.stack([scales.astype(jnp.float32)[idx_p],
                    zero_points.astype(jnp.float32)[idx_p]], axis=-1)

    need = tile_n * per_row + (4 << 20)
    vmem_limit = int(min(max(need, 32 << 20), max(vmem_cap - (8 << 20), need)))

    out = pl.pallas_call(
        functools.partial(_embedding_byte_kernel, tile_n=tile_n,
                          n_inner=n_inner),
        out_shape=jax.ShapeDtypeStruct((n_pad, Dp), out_dtype),
        grid_spec=pltpu.PrefetchScalarGridSpec(
            num_scalar_prefetch=1,                     # indices -> SMEM
            grid=(n_outer, n_inner),
            in_specs=[
                pl.BlockSpec(memory_space=pl.ANY),     # packed table in HBM
                pl.BlockSpec((tile_n, 2),
                             lambda o, i, idx: (o * n_inner + i, 0)),
            ],
            out_specs=pl.BlockSpec((tile_n, Dp),
                                   lambda o, i, idx: (o * n_inner + i, 0)),
            scratch_shapes=[
                pltpu.VMEM((2 * tile_n, Dq), jnp.int32),  # double-buffered rows
                pltpu.SemaphoreType.DMA((2,)),            # one sem per slot
            ],
        ),
        compiler_params=pltpu.CompilerParams(
            dimension_semantics=("parallel", "arbitrary"),
            vmem_limit_bytes=vmem_limit,
        ),
    )(idx_p, qw_packed, sz)

    return out[:n, :D].reshape(*orig_shape, D).astype(out_dtype)


if __name__ == "__main__":
    key = jax.random.PRNGKey(0)
    (k_w, k_s, k_z, k_i, k_i2,
     k_w3, k_s3, k_z3) = jax.random.split(key, 8)

    # Module-consistent shapes: weight (num_embeddings, embedding_dim),
    # per-row float scale / zero_point (per_channel_affine_float_qparams).
    num_embeddings, embedding_dim = 16, 128
    qweight = jax.random.randint(
        k_w, (num_embeddings, embedding_dim), 0, 256, dtype=jnp.int32
    ).astype(jnp.uint8)
    scales = jax.random.uniform(
        k_s, (num_embeddings,), dtype=jnp.float32, minval=0.01, maxval=0.1)
    zero_points = jax.random.randint(
        k_z, (num_embeddings,), 0, 256, dtype=jnp.int32).astype(jnp.float32)

    # Pure-JAX reference of embedding_byte semantics.
    dequant = (qweight.astype(jnp.float32)
               - zero_points[:, None]) * scales[:, None]

    # Case 1: 1-D indices (single grid step).
    idx1 = jax.random.randint(k_i, (9,), 0, num_embeddings, dtype=jnp.int32)
    out1 = jax.block_until_ready(
        quantized_embedding_byte(idx1, qweight, scales, zero_points))
    assert out1.shape == (9, embedding_dim)
    assert out1.dtype == jnp.float32
    assert jnp.allclose(out1, dequant[idx1], atol=1e-5, rtol=1e-5)

    # Case 2: 2-D indices with a small tile -> multi-step grid exercising the
    # (parallel, arbitrary) chunking, per-chunk priming and cross-step
    # prefetch (n=72, tile_n=8 -> 2 outer chunks x 5 inner steps).
    idx2 = jax.random.randint(k_i2, (2, 36), 0, num_embeddings, dtype=jnp.int32)
    out2 = jax.block_until_ready(
        quantized_embedding_byte(idx2, qweight, scales, zero_points, tile_n=8))
    assert out2.shape == (2, 36, embedding_dim)
    assert jnp.allclose(out2, dequant[idx2], atol=1e-5, rtol=1e-5)

    # Case 3: docstring-style shapes (10 x 12), embedding_dim not a multiple
    # of 128 -> exercises the pad-to-lane-dense + slice path.
    qweight3 = jax.random.randint(
        k_w3, (10, 12), 0, 256, dtype=jnp.int32).astype(jnp.uint8)
    scales3 = jax.random.uniform(
        k_s3, (10,), dtype=jnp.float32, minval=0.01, maxval=0.1)
    zero_points3 = jax.random.randint(
        k_z3, (10,), 0, 256, dtype=jnp.int32).astype(jnp.float32)
    dequant3 = (qweight3.astype(jnp.float32)
                - zero_points3[:, None]) * scales3[:, None]
    idx3 = jnp.array([9, 6, 5, 7, 8, 8, 9, 2, 8], dtype=jnp.int32)
    out3 = jax.block_until_ready(
        quantized_embedding_byte(idx3, qweight3, scales3, zero_points3))
    assert out3.shape == (9, 12)
    assert jnp.allclose(out3, dequant3[idx3], atol=1e-5, rtol=1e-5)

    print("KERNEL_OK")
</pallas_src>

<mosaic_0001>
module attributes {stable_mosaic.version = 11 : i64} {
  func.func @_embedding_byte_kernel(%arg0: i32, %arg1: i32, %arg2: memref<16xi32, #tpu.memory_space<smem>>, %arg3: memref<16x32xi32, #tpu.memory_space<any>>, %arg4: memref<16x2xf32, #tpu.memory_space<vmem>>, %arg5: memref<16x128xf32, #tpu.memory_space<vmem>>, %arg6: memref<32x32xi32, #tpu.memory_space<vmem>>, %arg7: memref<2x!tpu.dma_semaphore, #tpu.memory_space<semaphore_mem>>) attributes {dimension_semantics = [#tpu.dimension_semantics<parallel>, #tpu.dimension_semantics<arbitrary>], iteration_bounds = array<i64: 1, 1>, scalar_prefetch = 1 : i64, scratch_operands = 2 : i64, tpu.core_type = #tpu.core_type<tc>, window_params = [{}, {transform_indices = @transform_1, window_bounds = array<i64: 16, 2>}, {transform_indices = @transform_2, window_bounds = array<i64: 16, 128>}]} {
    %c2_i32 = arith.constant 2 : i32
    %0 = arith.remsi %arg1, %c2_i32 : i32
    %c1_i32 = arith.constant 1 : i32
    %1 = arith.muli %arg0, %c1_i32 : i32
    %2 = arith.addi %1, %arg1 : i32
    %c0_i32 = arith.constant 0 : i32
    %3 = arith.cmpi eq, %arg1, %c0_i32 : i32
    %4 = arith.extui %3 : i1 to i32
    %c0_i32_0 = arith.constant 0 : i32
    %5 = arith.cmpi ne, %4, %c0_i32_0 : i32
    scf.if %5 {
      %c16_i32_65 = arith.constant 16 : i32
      %151 = arith.muli %2, %c16_i32_65 : i32
      %c16_i32_66 = arith.constant 16 : i32
      %152 = arith.muli %0, %c16_i32_66 : i32
      %c0_i32_67 = arith.constant 0 : i32
      %153 = arith.addi %151, %c0_i32_67 : i32
      %154 = arith.index_cast %153 : i32 to index
      %155 = memref.load %arg2[%154] : memref<16xi32, #tpu.memory_space<smem>>
      %c0_i32_68 = arith.constant 0 : i32
      %156 = arith.addi %152, %c0_i32_68 : i32
      %c0_i32_69 = arith.constant 0 : i32
      %157 = tpu.memref_slice %arg3[%155, %c0_i32_69] : memref<16x32xi32, #tpu.memory_space<any>> -> memref<1x32xi32, #tpu.memory_space<any>>
      %158 = tpu.memref_squeeze %157 : memref<1x32xi32, #tpu.memory_space<any>> -> memref<32xi32, #tpu.memory_space<any>>
      %c0_i32_70 = arith.constant 0 : i32
      %159 = tpu.memref_slice %arg6[%156, %c0_i32_70] : memref<32x32xi32, #tpu.memory_space<vmem>> -> memref<1x32xi32, #tpu.memory_space<vmem>>
      %160 = tpu.memref_squeeze %159 : memref<1x32xi32, #tpu.memory_space<vmem>> -> memref<32xi32, #tpu.memory_space<vmem>>
      %161 = tpu.memref_slice %arg7[%0] : memref<2x!tpu.dma_semaphore, #tpu.memory_space<semaphore_mem>> -> memref<1x!tpu.dma_semaphore, #tpu.memory_space<semaphore_mem>>
      %162 = tpu.memref_squeeze %161 : memref<1x!tpu.dma_semaphore, #tpu.memory_space<semaphore_mem>> -> memref<!tpu.dma_semaphore, #tpu.memory_space<semaphore_mem>>
      tpu.enqueue_dma source(%158 : memref<32xi32, #tpu.memory_space<any>>) target(%160 : memref<32xi32, #tpu.memory_space<vmem>>) target_semaphore(%162 : memref<!tpu.dma_semaphore, #tpu.memory_space<semaphore_mem>>)
      %c1_i32_71 = arith.constant 1 : i32
      %163 = arith.addi %151, %c1_i32_71 : i32
      %164 = arith.index_cast %163 : i32 to index
      %165 = memref.load %arg2[%164] : memref<16xi32, #tpu.memory_space<smem>>
      %c1_i32_72 = arith.constant 1 : i32
      %166 = arith.addi %152, %c1_i32_72 : i32
      %c0_i32_73 = arith.constant 0 : i32
      %167 = tpu.memref_slice %arg3[%165, %c0_i32_73] : memref<16x32xi32, #tpu.memory_space<any>> -> memref<1x32xi32, #tpu.memory_space<any>>
      %168 = tpu.memref_squeeze %167 : memref<1x32xi32, #tpu.memory_space<any>> -> memref<32xi32, #tpu.memory_space<any>>
      %c0_i32_74 = arith.constant 0 : i32
      %169 = tpu.memref_slice %arg6[%166, %c0_i32_74] : memref<32x32xi32, #tpu.memory_space<vmem>> -> memref<1x32xi32, #tpu.memory_space<vmem>>
      %170 = tpu.memref_squeeze %169 : memref<1x32xi32, #tpu.memory_space<vmem>> -> memref<32xi32, #tpu.memory_space<vmem>>
      %171 = tpu.memref_slice %arg7[%0] : memref<2x!tpu.dma_semaphore, #tpu.memory_space<semaphore_mem>> -> memref<1x!tpu.dma_semaphore, #tpu.memory_space<semaphore_mem>>
      %172 = tpu.memref_squeeze %171 : memref<1x!tpu.dma_semaphore, #tpu.memory_space<semaphore_mem>> -> memref<!tpu.dma_semaphore, #tpu.memory_space<semaphore_mem>>
      tpu.enqueue_dma source(%168 : memref<32xi32, #tpu.memory_space<any>>) target(%170 : memref<32xi32, #tpu.memory_space<vmem>>) target_semaphore(%172 : memref<!tpu.dma_semaphore, #tpu.memory_space<semaphore_mem>>)
      %c2_i32_75 = arith.constant 2 : i32
      %173 = arith.addi %151, %c2_i32_75 : i32
      %174 = arith.index_cast %173 : i32 to index
      %175 = memref.load %arg2[%174] : memref<16xi32, #tpu.memory_space<smem>>
      %c2_i32_76 = arith.constant 2 : i32
      %176 = arith.addi %152, %c2_i32_76 : i32
      %c0_i32_77 = arith.constant 0 : i32
      %177 = tpu.memref_slice %arg3[%175, %c0_i32_77] : memref<16x32xi32, #tpu.memory_space<any>> -> memref<1x32xi32, #tpu.memory_space<any>>
      %178 = tpu.memref_squeeze %177 : memref<1x32xi32, #tpu.memory_space<any>> -> memref<32xi32, #tpu.memory_space<any>>
      %c0_i32_78 = arith.constant 0 : i32
      %179 = tpu.memref_slice %arg6[%176, %c0_i32_78] : memref<32x32xi32, #tpu.memory_space<vmem>> -> memref<1x32xi32, #tpu.memory_space<vmem>>
      %180 = tpu.memref_squeeze %179 : memref<1x32xi32, #tpu.memory_space<vmem>> -> memref<32xi32, #tpu.memory_space<vmem>>
      %181 = tpu.memref_slice %arg7[%0] : memref<2x!tpu.dma_semaphore, #tpu.memory_space<semaphore_mem>> -> memref<1x!tpu.dma_semaphore, #tpu.memory_space<semaphore_mem>>
      %182 = tpu.memref_squeeze %181 : memref<1x!tpu.dma_semaphore, #tpu.memory_space<semaphore_mem>> -> memref<!tpu.dma_semaphore, #tpu.memory_space<semaphore_mem>>
      tpu.enqueue_dma source(%178 : memref<32xi32, #tpu.memory_space<any>>) target(%180 : memref<32xi32, #tpu.memory_space<vmem>>) target_semaphore(%182 : memref<!tpu.dma_semaphore, #tpu.memory_space<semaphore_mem>>)
      %c3_i32_79 = arith.constant 3 : i32
      %183 = arith.addi %151, %c3_i32_79 : i32
      %184 = arith.index_cast %183 : i32 to index
      %185 = memref.load %arg2[%184] : memref<16xi32, #tpu.memory_space<smem>>
      %c3_i32_80 = arith.constant 3 : i32
      %186 = arith.addi %152, %c3_i32_80 : i32
      %c0_i32_81 = arith.constant 0 : i32
      %187 = tpu.memref_slice %arg3[%185, %c0_i32_81] : memref<16x32xi32, #tpu.memory_space<any>> -> memref<1x32xi32, #tpu.memory_space<any>>
      %188 = tpu.memref_squeeze %187 : memref<1x32xi32, #tpu.memory_space<any>> -> memref<32xi32, #tpu.memory_space<any>>
      %c0_i32_82 = arith.constant 0 : i32
      %189 = tpu.memref_slice %arg6[%186, %c0_i32_82] : memref<32x32xi32, #tpu.memory_space<vmem>> -> memref<1x32xi32, #tpu.memory_space<vmem>>
      %190 = tpu.memref_squeeze %189 : memref<1x32xi32, #tpu.memory_space<vmem>> -> memref<32xi32, #tpu.memory_space<vmem>>
      %191 = tpu.memref_slice %arg7[%0] : memref<2x!tpu.dma_semaphore, #tpu.memory_space<semaphore_mem>> -> memref<1x!tpu.dma_semaphore, #tpu.memory_space<semaphore_mem>>
      %192 = tpu.memref_squeeze %191 : memref<1x!tpu.dma_semaphore, #tpu.memory_space<semaphore_mem>> -> memref<!tpu.dma_semaphore, #tpu.memory_space<semaphore_mem>>
      tpu.enqueue_dma source(%188 : memref<32xi32, #tpu.memory_space<any>>) target(%190 : memref<32xi32, #tpu.memory_space<vmem>>) target_semaphore(%192 : memref<!tpu.dma_semaphore, #tpu.memory_space<semaphore_mem>>)
      %c4_i32_83 = arith.constant 4 : i32
      %193 = arith.addi %151, %c4_i32_83 : i32
      %194 = arith.index_cast %193 : i32 to index
      %195 = memref.load %arg2[%194] : memref<16xi32, #tpu.memory_space<smem>>
      %c4_i32_84 = arith.constant 4 : i32
      %196 = arith.addi %152, %c4_i32_84 : i32
      %c0_i32_85 = arith.constant 0 : i32
      %197 = tpu.memref_slice %arg3[%195, %c0_i32_85] : memref<16x32xi32, #tpu.memory_space<any>> -> memref<1x32xi32, #tpu.memory_space<any>>
      %198 = tpu.memref_squeeze %197 : memref<1x32xi32, #tpu.memory_space<any>> -> memref<32xi32, #tpu.memory_space<any>>
      %c0_i32_86 = arith.constant 0 : i32
      %199 = tpu.memref_slice %arg6[%196, %c0_i32_86] : memref<32x32xi32, #tpu.memory_space<vmem>> -> memref<1x32xi32, #tpu.memory_space<vmem>>
      %200 = tpu.memref_squeeze %199 : memref<1x32xi32, #tpu.memory_space<vmem>> -> memref<32xi32, #tpu.memory_space<vmem>>
      %201 = tpu.memref_slice %arg7[%0] : memref<2x!tpu.dma_semaphore, #tpu.memory_space<semaphore_mem>> -> memref<1x!tpu.dma_semaphore, #tpu.memory_space<semaphore_mem>>
      %202 = tpu.memref_squeeze %201 : memref<1x!tpu.dma_semaphore, #tpu.memory_space<semaphore_mem>> -> memref<!tpu.dma_semaphore, #tpu.memory_space<semaphore_mem>>
      tpu.enqueue_dma source(%198 : memref<32xi32, #tpu.memory_space<any>>) target(%200 : memref<32xi32, #tpu.memory_space<vmem>>) target_semaphore(%202 : memref<!tpu.dma_semaphore, #tpu.memory_space<semaphore_mem>>)
      %c5_i32_87 = arith.constant 5 : i32
      %203 = arith.addi %151, %c5_i32_87 : i32
      %204 = arith.index_cast %203 : i32 to index
      %205 = memref.load %arg2[%204] : memref<16xi32, #tpu.memory_space<smem>>
      %c5_i32_88 = arith.constant 5 : i32
      %206 = arith.addi %152, %c5_i32_88 : i32
      %c0_i32_89 = arith.constant 0 : i32
      %207 = tpu.memref_slice %arg3[%205, %c0_i32_89] : memref<16x32xi32, #tpu.memory_space<any>> -> memref<1x32xi32, #tpu.memory_space<any>>
      %208 = tpu.memref_squeeze %207 : memref<1x32xi32, #tpu.memory_space<any>> -> memref<32xi32, #tpu.memory_space<any>>
      %c0_i32_90 = arith.constant 0 : i32
      %209 = tpu.memref_slice %arg6[%206, %c0_i32_90] : memref<32x32xi32, #tpu.memory_space<vmem>> -> memref<1x32xi32, #tpu.memory_space<vmem>>
      %210 = tpu.memref_squeeze %209 : memref<1x32xi32, #tpu.memory_space<vmem>> -> memref<32xi32, #tpu.memory_space<vmem>>
      %211 = tpu.memref_slice %arg7[%0] : memref<2x!tpu.dma_semaphore, #tpu.memory_space<semaphore_mem>> -> memref<1x!tpu.dma_semaphore, #tpu.memory_space<semaphore_mem>>
      %212 = tpu.memref_squeeze %211 : memref<1x!tpu.dma_semaphore, #tpu.memory_space<semaphore_mem>> -> memref<!tpu.dma_semaphore, #tpu.memory_space<semaphore_mem>>
      tpu.enqueue_dma source(%208 : memref<32xi32, #tpu.memory_space<any>>) target(%210 : memref<32xi32, #tpu.memory_space<vmem>>) target_semaphore(%212 : memref<!tpu.dma_semaphore, #tpu.memory_space<semaphore_mem>>)
      %c6_i32_91 = arith.constant 6 : i32
      %213 = arith.addi %151, %c6_i32_91 : i32
      %214 = arith.index_cast %213 : i32 to index
      %215 = memref.load %arg2[%214] : memref<16xi32, #tpu.memory_space<smem>>
      %c6_i32_92 = arith.constant 6 : i32
      %216 = arith.addi %152, %c6_i32_92 : i32
      %c0_i32_93 = arith.constant 0 : i32
      %217 = tpu.memref_slice %arg3[%215, %c0_i32_93] : memref<16x32xi32, #tpu.memory_space<any>> -> memref<1x32xi32, #tpu.memory_space<any>>
      %218 = tpu.memref_squeeze %217 : memref<1x32xi32, #tpu.memory_space<any>> -> memref<32xi32, #tpu.memory_space<any>>
      %c0_i32_94 = arith.constant 0 : i32
      %219 = tpu.memref_slice %arg6[%216, %c0_i32_94] : memref<32x32xi32, #tpu.memory_space<vmem>> -> memref<1x32xi32, #tpu.memory_space<vmem>>
      %220 = tpu.memref_squeeze %219 : memref<1x32xi32, #tpu.memory_space<vmem>> -> memref<32xi32, #tpu.memory_space<vmem>>
      %221 = tpu.memref_slice %arg7[%0] : memref<2x!tpu.dma_semaphore, #tpu.memory_space<semaphore_mem>> -> memref<1x!tpu.dma_semaphore, #tpu.memory_space<semaphore_mem>>
      %222 = tpu.memref_squeeze %221 : memref<1x!tpu.dma_semaphore, #tpu.memory_space<semaphore_mem>> -> memref<!tpu.dma_semaphore, #tpu.memory_space<semaphore_mem>>
      tpu.enqueue_dma source(%218 : memref<32xi32, #tpu.memory_space<any>>) target(%220 : memref<32xi32, #tpu.memory_space<vmem>>) target_semaphore(%222 : memref<!tpu.dma_semaphore, #tpu.memory_space<semaphore_mem>>)
      %c7_i32_95 = arith.constant 7 : i32
      %223 = arith.addi %151, %c7_i32_95 : i32
      %224 = arith.index_cast %223 : i32 to index
      %225 = memref.load %arg2[%224] : memref<16xi32, #tpu.memory_space<smem>>
      %c7_i32_96 = arith.constant 7 : i32
      %226 = arith.addi %152, %c7_i32_96 : i32
      %c0_i32_97 = arith.constant 0 : i32
      %227 = tpu.memref_slice %arg3[%225, %c0_i32_97] : memref<16x32xi32, #tpu.memory_space<any>> -> memref<1x32xi32, #tpu.memory_space<any>>
      %228 = tpu.memref_squeeze %227 : memref<1x32xi32, #tpu.memory_space<any>> -> memref<32xi32, #tpu.memory_space<any>>
      %c0_i32_98 = arith.constant 0 : i32
      %229 = tpu.memref_slice %arg6[%226, %c0_i32_98] : memref<32x32xi32, #tpu.memory_space<vmem>> -> memref<1x32xi32, #tpu.memory_space<vmem>>
      %230 = tpu.memref_squeeze %229 : memref<1x32xi32, #tpu.memory_space<vmem>> -> memref<32xi32, #tpu.memory_space<vmem>>
      %231 = tpu.memref_slice %arg7[%0] : memref<2x!tpu.dma_semaphore, #tpu.memory_space<semaphore_mem>> -> memref<1x!tpu.dma_semaphore, #tpu.memory_space<semaphore_mem>>
      %232 = tpu.memref_squeeze %231 : memref<1x!tpu.dma_semaphore, #tpu.memory_space<semaphore_mem>> -> memref<!tpu.dma_semaphore, #tpu.memory_space<semaphore_mem>>
      tpu.enqueue_dma source(%228 : memref<32xi32, #tpu.memory_space<any>>) target(%230 : memref<32xi32, #tpu.memory_space<vmem>>) target_semaphore(%232 : memref<!tpu.dma_semaphore, #tpu.memory_space<semaphore_mem>>)
      %c8_i32_99 = arith.constant 8 : i32
      %233 = arith.addi %151, %c8_i32_99 : i32
      %234 = arith.index_cast %233 : i32 to index
      %235 = memref.load %arg2[%234] : memref<16xi32, #tpu.memory_space<smem>>
      %c8_i32_100 = arith.constant 8 : i32
      %236 = arith.addi %152, %c8_i32_100 : i32
      %c0_i32_101 = arith.constant 0 : i32
      %237 = tpu.memref_slice %arg3[%235, %c0_i32_101] : memref<16x32xi32, #tpu.memory_space<any>> -> memref<1x32xi32, #tpu.memory_space<any>>
      %238 = tpu.memref_squeeze %237 : memref<1x32xi32, #tpu.memory_space<any>> -> memref<32xi32, #tpu.memory_space<any>>
      %c0_i32_102 = arith.constant 0 : i32
      %239 = tpu.memref_slice %arg6[%236, %c0_i32_102] : memref<32x32xi32, #tpu.memory_space<vmem>> -> memref<1x32xi32, #tpu.memory_space<vmem>>
      %240 = tpu.memref_squeeze %239 : memref<1x32xi32, #tpu.memory_space<vmem>> -> memref<32xi32, #tpu.memory_space<vmem>>
      %241 = tpu.memref_slice %arg7[%0] : memref<2x!tpu.dma_semaphore, #tpu.memory_space<semaphore_mem>> -> memref<1x!tpu.dma_semaphore, #tpu.memory_space<semaphore_mem>>
      %242 = tpu.memref_squeeze %241 : memref<1x!tpu.dma_semaphore, #tpu.memory_space<semaphore_mem>> -> memref<!tpu.dma_semaphore, #tpu.memory_space<semaphore_mem>>
      tpu.enqueue_dma source(%238 : memref<32xi32, #tpu.memory_space<any>>) target(%240 : memref<32xi32, #tpu.memory_space<vmem>>) target_semaphore(%242 : memref<!tpu.dma_semaphore, #tpu.memory_space<semaphore_mem>>)
      %c9_i32_103 = arith.constant 9 : i32
      %243 = arith.addi %151, %c9_i32_103 : i32
      %244 = arith.index_cast %243 : i32 to index
      %245 = memref.load %arg2[%244] : memref<16xi32, #tpu.memory_space<smem>>
      %c9_i32_104 = arith.constant 9 : i32
      %246 = arith.addi %152, %c9_i32_104 : i32
      %c0_i32_105 = arith.constant 0 : i32
      %247 = tpu.memref_slice %arg3[%245, %c0_i32_105] : memref<16x32xi32, #tpu.memory_space<any>> -> memref<1x32xi32, #tpu.memory_space<any>>
      %248 = tpu.memref_squeeze %247 : memref<1x32xi32, #tpu.memory_space<any>> -> memref<32xi32, #tpu.memory_space<any>>
      %c0_i32_106 = arith.constant 0 : i32
      %249 = tpu.memref_slice %arg6[%246, %c0_i32_106] : memref<32x32xi32, #tpu.memory_space<vmem>> -> memref<1x32xi32, #tpu.memory_space<vmem>>
      %250 = tpu.memref_squeeze %249 : memref<1x32xi32, #tpu.memory_space<vmem>> -> memref<32xi32, #tpu.memory_space<vmem>>
      %251 = tpu.memref_slice %arg7[%0] : memref<2x!tpu.dma_semaphore, #tpu.memory_space<semaphore_mem>> -> memref<1x!tpu.dma_semaphore, #tpu.memory_space<semaphore_mem>>
      %252 = tpu.memref_squeeze %251 : memref<1x!tpu.dma_semaphore, #tpu.memory_space<semaphore_mem>> -> memref<!tpu.dma_semaphore, #tpu.memory_space<semaphore_mem>>
      tpu.enqueue_dma source(%248 : memref<32xi32, #tpu.memory_space<any>>) target(%250 : memref<32xi32, #tpu.memory_space<vmem>>) target_semaphore(%252 : memref<!tpu.dma_semaphore, #tpu.memory_space<semaphore_mem>>)
      %c10_i32_107 = arith.constant 10 : i32
      %253 = arith.addi %151, %c10_i32_107 : i32
      %254 = arith.index_cast %253 : i32 to index
      %255 = memref.load %arg2[%254] : memref<16xi32, #tpu.memory_space<smem>>
      %c10_i32_108 = arith.constant 10 : i32
      %256 = arith.addi %152, %c10_i32_108 : i32
      %c0_i32_109 = arith.constant 0 : i32
      %257 = tpu.memref_slice %arg3[%255, %c0_i32_109] : memref<16x32xi32, #tpu.memory_space<any>> -> memref<1x32xi32, #tpu.memory_space<any>>
      %258 = tpu.memref_squeeze %257 : memref<1x32xi32, #tpu.memory_space<any>> -> memref<32xi32, #tpu.memory_space<any>>
      %c0_i32_110 = arith.constant 0 : i32
      %259 = tpu.memref_slice %arg6[%256, %c0_i32_110] : memref<32x32xi32, #tpu.memory_space<vmem>> -> memref<1x32xi32, #tpu.memory_space<vmem>>
      %260 = tpu.memref_squeeze %259 : memref<1x32xi32, #tpu.memory_space<vmem>> -> memref<32xi32, #tpu.memory_space<vmem>>
      %261 = tpu.memref_slice %arg7[%0] : memref<2x!tpu.dma_semaphore, #tpu.memory_space<semaphore_mem>> -> memref<1x!tpu.dma_semaphore, #tpu.memory_space<semaphore_mem>>
      %262 = tpu.memref_squeeze %261 : memref<1x!tpu.dma_semaphore, #tpu.memory_space<semaphore_mem>> -> memref<!tpu.dma_semaphore, #tpu.memory_space<semaphore_mem>>
      tpu.enqueue_dma source(%258 : memref<32xi32, #tpu.memory_space<any>>) target(%260 : memref<32xi32, #tpu.memory_space<vmem>>) target_semaphore(%262 : memref<!tpu.dma_semaphore, #tpu.memory_space<semaphore_mem>>)
      %c11_i32_111 = arith.constant 11 : i32
      %263 = arith.addi %151, %c11_i32_111 : i32
      %264 = arith.index_cast %263 : i32 to index
      %265 = memref.load %arg2[%264] : memref<16xi32, #tpu.memory_space<smem>>
      %c11_i32_112 = arith.constant 11 : i32
      %266 = arith.addi %152, %c11_i32_112 : i32
      %c0_i32_113 = arith.constant 0 : i32
      %267 = tpu.memref_slice %arg3[%265, %c0_i32_113] : memref<16x32xi32, #tpu.memory_space<any>> -> memref<1x32xi32, #tpu.memory_space<any>>
      %268 = tpu.memref_squeeze %267 : memref<1x32xi32, #tpu.memory_space<any>> -> memref<32xi32, #tpu.memory_space<any>>
      %c0_i32_114 = arith.constant 0 : i32
      %269 = tpu.memref_slice %arg6[%266, %c0_i32_114] : memref<32x32xi32, #tpu.memory_space<vmem>> -> memref<1x32xi32, #tpu.memory_space<vmem>>
      %270 = tpu.memref_squeeze %269 : memref<1x32xi32, #tpu.memory_space<vmem>> -> memref<32xi32, #tpu.memory_space<vmem>>
      %271 = tpu.memref_slice %arg7[%0] : memref<2x!tpu.dma_semaphore, #tpu.memory_space<semaphore_mem>> -> memref<1x!tpu.dma_semaphore, #tpu.memory_space<semaphore_mem>>
      %272 = tpu.memref_squeeze %271 : memref<1x!tpu.dma_semaphore, #tpu.memory_space<semaphore_mem>> -> memref<!tpu.dma_semaphore, #tpu.memory_space<semaphore_mem>>
      tpu.enqueue_dma source(%268 : memref<32xi32, #tpu.memory_space<any>>) target(%270 : memref<32xi32, #tpu.memory_space<vmem>>) target_semaphore(%272 : memref<!tpu.dma_semaphore, #tpu.memory_space<semaphore_mem>>)
      %c12_i32_115 = arith.constant 12 : i32
      %273 = arith.addi %151, %c12_i32_115 : i32
      %274 = arith.index_cast %273 : i32 to index
      %275 = memref.load %arg2[%274] : memref<16xi32, #tpu.memory_space<smem>>
      %c12_i32_116 = arith.constant 12 : i32
      %276 = arith.addi %152, %c12_i32_116 : i32
      %c0_i32_117 = arith.constant 0 : i32
      %277 = tpu.memref_slice %arg3[%275, %c0_i32_117] : memref<16x32xi32, #tpu.memory_space<any>> -> memref<1x32xi32, #tpu.memory_space<any>>
      %278 = tpu.memref_squeeze %277 : memref<1x32xi32, #tpu.memory_space<any>> -> memref<32xi32, #tpu.memory_space<any>>
      %c0_i32_118 = arith.constant 0 : i32
      %279 = tpu.memref_slice %arg6[%276, %c0_i32_118] : memref<32x32xi32, #tpu.memory_space<vmem>> -> memref<1x32xi32, #tpu.memory_space<vmem>>
      %280 = tpu.memref_squeeze %279 : memref<1x32xi32, #tpu.memory_space<vmem>> -> memref<32xi32, #tpu.memory_space<vmem>>
      %281 = tpu.memref_slice %arg7[%0] : memref<2x!tpu.dma_semaphore, #tpu.memory_space<semaphore_mem>> -> memref<1x!tpu.dma_semaphore, #tpu.memory_space<semaphore_mem>>
      %282 = tpu.memref_squeeze %281 : memref<1x!tpu.dma_semaphore, #tpu.memory_space<semaphore_mem>> -> memref<!tpu.dma_semaphore, #tpu.memory_space<semaphore_mem>>
      tpu.enqueue_dma source(%278 : memref<32xi32, #tpu.memory_space<any>>) target(%280 : memref<32xi32, #tpu.memory_space<vmem>>) target_semaphore(%282 : memref<!tpu.dma_semaphore, #tpu.memory_space<semaphore_mem>>)
      %c13_i32_119 = arith.constant 13 : i32
      %283 = arith.addi %151, %c13_i32_119 : i32
      %284 = arith.index_cast %283 : i32 to index
      %285 = memref.load %arg2[%284] : memref<16xi32, #tpu.memory_space<smem>>
      %c13_i32_120 = arith.constant 13 : i32
      %286 = arith.addi %152, %c13_i32_120 : i32
      %c0_i32_121 = arith.constant 0 : i32
      %287 = tpu.memref_slice %arg3[%285, %c0_i32_121] : memref<16x32xi32, #tpu.memory_space<any>> -> memref<1x32xi32, #tpu.memory_space<any>>
      %288 = tpu.memref_squeeze %287 : memref<1x32xi32, #tpu.memory_space<any>> -> memref<32xi32, #tpu.memory_space<any>>
      %c0_i32_122 = arith.constant 0 : i32
      %289 = tpu.memref_slice %arg6[%286, %c0_i32_122] : memref<32x32xi32, #tpu.memory_space<vmem>> -> memref<1x32xi32, #tpu.memory_space<vmem>>
      %290 = tpu.memref_squeeze %289 : memref<1x32xi32, #tpu.memory_space<vmem>> -> memref<32xi32, #tpu.memory_space<vmem>>
      %291 = tpu.memref_slice %arg7[%0] : memref<2x!tpu.dma_semaphore, #tpu.memory_space<semaphore_mem>> -> memref<1x!tpu.dma_semaphore, #tpu.memory_space<semaphore_mem>>
      %292 = tpu.memref_squeeze %291 : memref<1x!tpu.dma_semaphore, #tpu.memory_space<semaphore_mem>> -> memref<!tpu.dma_semaphore, #tpu.memory_space<semaphore_mem>>
      tpu.enqueue_dma source(%288 : memref<32xi32, #tpu.memory_space<any>>) target(%290 : memref<32xi32, #tpu.memory_space<vmem>>) target_semaphore(%292 : memref<!tpu.dma_semaphore, #tpu.memory_space<semaphore_mem>>)
      %c14_i32_123 = arith.constant 14 : i32
      %293 = arith.addi %151, %c14_i32_123 : i32
      %294 = arith.index_cast %293 : i32 to index
      %295 = memref.load %arg2[%294] : memref<16xi32, #tpu.memory_space<smem>>
      %c14_i32_124 = arith.constant 14 : i32
      %296 = arith.addi %152, %c14_i32_124 : i32
      %c0_i32_125 = arith.constant 0 : i32
      %297 = tpu.memref_slice %arg3[%295, %c0_i32_125] : memref<16x32xi32, #tpu.memory_space<any>> -> memref<1x32xi32, #tpu.memory_space<any>>
      %298 = tpu.memref_squeeze %297 : memref<1x32xi32, #tpu.memory_space<any>> -> memref<32xi32, #tpu.memory_space<any>>
      %c0_i32_126 = arith.constant 0 : i32
      %299 = tpu.memref_slice %arg6[%296, %c0_i32_126] : memref<32x32xi32, #tpu.memory_space<vmem>> -> memref<1x32xi32, #tpu.memory_space<vmem>>
      %300 = tpu.memref_squeeze %299 : memref<1x32xi32, #tpu.memory_space<vmem>> -> memref<32xi32, #tpu.memory_space<vmem>>
      %301 = tpu.memref_slice %arg7[%0] : memref<2x!tpu.dma_semaphore, #tpu.memory_space<semaphore_mem>> -> memref<1x!tpu.dma_semaphore, #tpu.memory_space<semaphore_mem>>
      %302 = tpu.memref_squeeze %301 : memref<1x!tpu.dma_semaphore, #tpu.memory_space<semaphore_mem>> -> memref<!tpu.dma_semaphore, #tpu.memory_space<semaphore_mem>>
      tpu.enqueue_dma source(%298 : memref<32xi32, #tpu.memory_space<any>>) target(%300 : memref<32xi32, #tpu.memory_space<vmem>>) target_semaphore(%302 : memref<!tpu.dma_semaphore, #tpu.memory_space<semaphore_mem>>)
      %c15_i32_127 = arith.constant 15 : i32
      %303 = arith.addi %151, %c15_i32_127 : i32
      %304 = arith.index_cast %303 : i32 to index
      %305 = memref.load %arg2[%304] : memref<16xi32, #tpu.memory_space<smem>>
      %c15_i32_128 = arith.constant 15 : i32
      %306 = arith.addi %152, %c15_i32_128 : i32
      %c0_i32_129 = arith.constant 0 : i32
      %307 = tpu.memref_slice %arg3[%305, %c0_i32_129] : memref<16x32xi32, #tpu.memory_space<any>> -> memref<1x32xi32, #tpu.memory_space<any>>
      %308 = tpu.memref_squeeze %307 : memref<1x32xi32, #tpu.memory_space<any>> -> memref<32xi32, #tpu.memory_space<any>>
      %c0_i32_130 = arith.constant 0 : i32
      %309 = tpu.memref_slice %arg6[%306, %c0_i32_130] : memref<32x32xi32, #tpu.memory_space<vmem>> -> memref<1x32xi32, #tpu.memory_space<vmem>>
      %310 = tpu.memref_squeeze %309 : memref<1x32xi32, #tpu.memory_space<vmem>> -> memref<32xi32, #tpu.memory_space<vmem>>
      %311 = tpu.memref_slice %arg7[%0] : memref<2x!tpu.dma_semaphore, #tpu.memory_space<semaphore_mem>> -> memref<1x!tpu.dma_semaphore, #tpu.memory_space<semaphore_mem>>
      %312 = tpu.memref_squeeze %311 : memref<1x!tpu.dma_semaphore, #tpu.memory_space<semaphore_mem>> -> memref<!tpu.dma_semaphore, #tpu.memory_space<semaphore_mem>>
      tpu.enqueue_dma source(%308 : memref<32xi32, #tpu.memory_space<any>>) target(%310 : memref<32xi32, #tpu.memory_space<vmem>>) target_semaphore(%312 : memref<!tpu.dma_semaphore, #tpu.memory_space<semaphore_mem>>)
    } else {
    }
    %c1_i32_1 = arith.constant 1 : i32
    %6 = arith.addi %arg1, %c1_i32_1 : i32
    %c1_i32_2 = arith.constant 1 : i32
    %7 = arith.cmpi slt, %6, %c1_i32_2 : i32
    %8 = arith.extui %7 : i1 to i32
    %c0_i32_3 = arith.constant 0 : i32
    %9 = arith.cmpi ne, %8, %c0_i32_3 : i32
    scf.if %9 {
      %c1_i32_65 = arith.constant 1 : i32
      %151 = arith.addi %2, %c1_i32_65 : i32
      %c1_i32_66 = arith.constant 1 : i32
      %152 = arith.subi %c1_i32_66, %0 : i32
      %c16_i32_67 = arith.constant 16 : i32
      %153 = arith.muli %151, %c16_i32_67 : i32
      %c16_i32_68 = arith.constant 16 : i32
      %154 = arith.muli %152, %c16_i32_68 : i32
      %c0_i32_69 = arith.constant 0 : i32
      %155 = arith.addi %153, %c0_i32_69 : i32
      %156 = arith.index_cast %155 : i32 to index
      %157 = memref.load %arg2[%156] : memref<16xi32, #tpu.memory_space<smem>>
      %c0_i32_70 = arith.constant 0 : i32
      %158 = arith.addi %154, %c0_i32_70 : i32
      %c0_i32_71 = arith.constant 0 : i32
      %159 = tpu.memref_slice %arg3[%157, %c0_i32_71] : memref<16x32xi32, #tpu.memory_space<any>> -> memref<1x32xi32, #tpu.memory_space<any>>
      %160 = tpu.memref_squeeze %159 : memref<1x32xi32, #tpu.memory_space<any>> -> memref<32xi32, #tpu.memory_space<any>>
      %c0_i32_72 = arith.constant 0 : i32
      %161 = tpu.memref_slice %arg6[%158, %c0_i32_72] : memref<32x32xi32, #tpu.memory_space<vmem>> -> memref<1x32xi32, #tpu.memory_space<vmem>>
      %162 = tpu.memref_squeeze %161 : memref<1x32xi32, #tpu.memory_space<vmem>> -> memref<32xi32, #tpu.memory_space<vmem>>
      %163 = tpu.memref_slice %arg7[%152] : memref<2x!tpu.dma_semaphore, #tpu.memory_space<semaphore_mem>> -> memref<1x!tpu.dma_semaphore, #tpu.memory_space<semaphore_mem>>
      %164 = tpu.memref_squeeze %163 : memref<1x!tpu.dma_semaphore, #tpu.memory_space<semaphore_mem>> -> memref<!tpu.dma_semaphore, #tpu.memory_space<semaphore_mem>>
      tpu.enqueue_dma source(%160 : memref<32xi32, #tpu.memory_space<any>>) target(%162 : memref<32xi32, #tpu.memory_space<vmem>>) target_semaphore(%164 : memref<!tpu.dma_semaphore, #tpu.memory_space<semaphore_mem>>)
      %c1_i32_73 = arith.constant 1 : i32
      %165 = arith.addi %153, %c1_i32_73 : i32
      %166 = arith.index_cast %165 : i32 to index
      %167 = memref.load %arg2[%166] : memref<16xi32, #tpu.memory_space<smem>>
      %c1_i32_74 = arith.constant 1 : i32
      %168 = arith.addi %154, %c1_i32_74 : i32
      %c0_i32_75 = arith.constant 0 : i32
      %169 = tpu.memref_slice %arg3[%167, %c0_i32_75] : memref<16x32xi32, #tpu.memory_space<any>> -> memref<1x32xi32, #tpu.memory_space<any>>
      %170 = tpu.memref_squeeze %169 : memref<1x32xi32, #tpu.memory_space<any>> -> memref<32xi32, #tpu.memory_space<any>>
      %c0_i32_76 = arith.constant 0 : i32
      %171 = tpu.memref_slice %arg6[%168, %c0_i32_76] : memref<32x32xi32, #tpu.memory_space<vmem>> -> memref<1x32xi32, #tpu.memory_space<vmem>>
      %172 = tpu.memref_squeeze %171 : memref<1x32xi32, #tpu.memory_space<vmem>> -> memref<32xi32, #tpu.memory_space<vmem>>
      %173 = tpu.memref_slice %arg7[%152] : memref<2x!tpu.dma_semaphore, #tpu.memory_space<semaphore_mem>> -> memref<1x!tpu.dma_semaphore, #tpu.memory_space<semaphore_mem>>
      %174 = tpu.memref_squeeze %173 : memref<1x!tpu.dma_semaphore, #tpu.memory_space<semaphore_mem>> -> memref<!tpu.dma_semaphore, #tpu.memory_space<semaphore_mem>>
      tpu.enqueue_dma source(%170 : memref<32xi32, #tpu.memory_space<any>>) target(%172 : memref<32xi32, #tpu.memory_space<vmem>>) target_semaphore(%174 : memref<!tpu.dma_semaphore, #tpu.memory_space<semaphore_mem>>)
      %c2_i32_77 = arith.constant 2 : i32
      %175 = arith.addi %153, %c2_i32_77 : i32
      %176 = arith.index_cast %175 : i32 to index
      %177 = memref.load %arg2[%176] : memref<16xi32, #tpu.memory_space<smem>>
      %c2_i32_78 = arith.constant 2 : i32
      %178 = arith.addi %154, %c2_i32_78 : i32
      %c0_i32_79 = arith.constant 0 : i32
      %179 = tpu.memref_slice %arg3[%177, %c0_i32_79] : memref<16x32xi32, #tpu.memory_space<any>> -> memref<1x32xi32, #tpu.memory_space<any>>
      %180 = tpu.memref_squeeze %179 : memref<1x32xi32, #tpu.memory_space<any>> -> memref<32xi32, #tpu.memory_space<any>>
      %c0_i32_80 = arith.constant 0 : i32
      %181 = tpu.memref_slice %arg6[%178, %c0_i32_80] : memref<32x32xi32, #tpu.memory_space<vmem>> -> memref<1x32xi32, #tpu.memory_space<vmem>>
      %182 = tpu.memref_squeeze %181 : memref<1x32xi32, #tpu.memory_space<vmem>> -> memref<32xi32, #tpu.memory_space<vmem>>
      %183 = tpu.memref_slice %arg7[%152] : memref<2x!tpu.dma_semaphore, #tpu.memory_space<semaphore_mem>> -> memref<1x!tpu.dma_semaphore, #tpu.memory_space<semaphore_mem>>
      %184 = tpu.memref_squeeze %183 : memref<1x!tpu.dma_semaphore, #tpu.memory_space<semaphore_mem>> -> memref<!tpu.dma_semaphore, #tpu.memory_space<semaphore_mem>>
      tpu.enqueue_dma source(%180 : memref<32xi32, #tpu.memory_space<any>>) target(%182 : memref<32xi32, #tpu.memory_space<vmem>>) target_semaphore(%184 : memref<!tpu.dma_semaphore, #tpu.memory_space<semaphore_mem>>)
      %c3_i32_81 = arith.constant 3 : i32
      %185 = arith.addi %153, %c3_i32_81 : i32
      %186 = arith.index_cast %185 : i32 to index
      %187 = memref.load %arg2[%186] : memref<16xi32, #tpu.memory_space<smem>>
      %c3_i32_82 = arith.constant 3 : i32
      %188 = arith.addi %154, %c3_i32_82 : i32
      %c0_i32_83 = arith.constant 0 : i32
      %189 = tpu.memref_slice %arg3[%187, %c0_i32_83] : memref<16x32xi32, #tpu.memory_space<any>> -> memref<1x32xi32, #tpu.memory_space<any>>
      %190 = tpu.memref_squeeze %189 : memref<1x32xi32, #tpu.memory_space<any>> -> memref<32xi32, #tpu.memory_space<any>>
      %c0_i32_84 = arith.constant 0 : i32
      %191 = tpu.memref_slice %arg6[%188, %c0_i32_84] : memref<32x32xi32, #tpu.memory_space<vmem>> -> memref<1x32xi32, #tpu.memory_space<vmem>>
      %192 = tpu.memref_squeeze %191 : memref<1x32xi32, #tpu.memory_space<vmem>> -> memref<32xi32, #tpu.memory_space<vmem>>
      %193 = tpu.memref_slice %arg7[%152] : memref<2x!tpu.dma_semaphore, #tpu.memory_space<semaphore_mem>> -> memref<1x!tpu.dma_semaphore, #tpu.memory_space<semaphore_mem>>
      %194 = tpu.memref_squeeze %193 : memref<1x!tpu.dma_semaphore, #tpu.memory_space<semaphore_mem>> -> memref<!tpu.dma_semaphore, #tpu.memory_space<semaphore_mem>>
      tpu.enqueue_dma source(%190 : memref<32xi32, #tpu.memory_space<any>>) target(%192 : memref<32xi32, #tpu.memory_space<vmem>>) target_semaphore(%194 : memref<!tpu.dma_semaphore, #tpu.memory_space<semaphore_mem>>)
      %c4_i32_85 = arith.constant 4 : i32
      %195 = arith.addi %153, %c4_i32_85 : i32
      %196 = arith.index_cast %195 : i32 to index
      %197 = memref.load %arg2[%196] : memref<16xi32, #tpu.memory_space<smem>>
      %c4_i32_86 = arith.constant 4 : i32
      %198 = arith.addi %154, %c4_i32_86 : i32
      %c0_i32_87 = arith.constant 0 : i32
      %199 = tpu.memref_slice %arg3[%197, %c0_i32_87] : memref<16x32xi32, #tpu.memory_space<any>> -> memref<1x32xi32, #tpu.memory_space<any>>
      %200 = tpu.memref_squeeze %199 : memref<1x32xi32, #tpu.memory_space<any>> -> memref<32xi32, #tpu.memory_space<any>>
      %c0_i32_88 = arith.constant 0 : i32
      %201 = tpu.memref_slice %arg6[%198, %c0_i32_88] : memref<32x32xi32, #tpu.memory_space<vmem>> -> memref<1x32xi32, #tpu.memory_space<vmem>>
      %202 = tpu.memref_squeeze %201 : memref<1x32xi32, #tpu.memory_space<vmem>> -> memref<32xi32, #tpu.memory_space<vmem>>
      %203 = tpu.memref_slice %arg7[%152] : memref<2x!tpu.dma_semaphore, #tpu.memory_space<semaphore_mem>> -> memref<1x!tpu.dma_semaphore, #tpu.memory_space<semaphore_mem>>
      %204 = tpu.memref_squeeze %203 : memref<1x!tpu.dma_semaphore, #tpu.memory_space<semaphore_mem>> -> memref<!tpu.dma_semaphore, #tpu.memory_space<semaphore_mem>>
      tpu.enqueue_dma source(%200 : memref<32xi32, #tpu.memory_space<any>>) target(%202 : memref<32xi32, #tpu.memory_space<vmem>>) target_semaphore(%204 : memref<!tpu.dma_semaphore, #tpu.memory_space<semaphore_mem>>)
      %c5_i32_89 = arith.constant 5 : i32
      %205 = arith.addi %153, %c5_i32_89 : i32
      %206 = arith.index_cast %205 : i32 to index
      %207 = memref.load %arg2[%206] : memref<16xi32, #tpu.memory_space<smem>>
      %c5_i32_90 = arith.constant 5 : i32
      %208 = arith.addi %154, %c5_i32_90 : i32
      %c0_i32_91 = arith.constant 0 : i32
      %209 = tpu.memref_slice %arg3[%207, %c0_i32_91] : memref<16x32xi32, #tpu.memory_space<any>> -> memref<1x32xi32, #tpu.memory_space<any>>
      %210 = tpu.memref_squeeze %209 : memref<1x32xi32, #tpu.memory_space<any>> -> memref<32xi32, #tpu.memory_space<any>>
      %c0_i32_92 = arith.constant 0 : i32
      %211 = tpu.memref_slice %arg6[%208, %c0_i32_92] : memref<32x32xi32, #tpu.memory_space<vmem>> -> memref<1x32xi32, #tpu.memory_space<vmem>>
      %212 = tpu.memref_squeeze %211 : memref<1x32xi32, #tpu.memory_space<vmem>> -> memref<32xi32, #tpu.memory_space<vmem>>
      %213 = tpu.memref_slice %arg7[%152] : memref<2x!tpu.dma_semaphore, #tpu.memory_space<semaphore_mem>> -> memref<1x!tpu.dma_semaphore, #tpu.memory_space<semaphore_mem>>
      %214 = tpu.memref_squeeze %213 : memref<1x!tpu.dma_semaphore, #tpu.memory_space<semaphore_mem>> -> memref<!tpu.dma_semaphore, #tpu.memory_space<semaphore_mem>>
      tpu.enqueue_dma source(%210 : memref<32xi32, #tpu.memory_space<any>>) target(%212 : memref<32xi32, #tpu.memory_space<vmem>>) target_semaphore(%214 : memref<!tpu.dma_semaphore, #tpu.memory_space<semaphore_mem>>)
      %c6_i32_93 = arith.constant 6 : i32
      %215 = arith.addi %153, %c6_i32_93 : i32
      %216 = arith.index_cast %215 : i32 to index
      %217 = memref.load %arg2[%216] : memref<16xi32, #tpu.memory_space<smem>>
      %c6_i32_94 = arith.constant 6 : i32
      %218 = arith.addi %154, %c6_i32_94 : i32
      %c0_i32_95 = arith.constant 0 : i32
      %219 = tpu.memref_slice %arg3[%217, %c0_i32_95] : memref<16x32xi32, #tpu.memory_space<any>> -> memref<1x32xi32, #tpu.memory_space<any>>
      %220 = tpu.memref_squeeze %219 : memref<1x32xi32, #tpu.memory_space<any>> -> memref<32xi32, #tpu.memory_space<any>>
      %c0_i32_96 = arith.constant 0 : i32
      %221 = tpu.memref_slice %arg6[%218, %c0_i32_96] : memref<32x32xi32, #tpu.memory_space<vmem>> -> memref<1x32xi32, #tpu.memory_space<vmem>>
      %222 = tpu.memref_squeeze %221 : memref<1x32xi32, #tpu.memory_space<vmem>> -> memref<32xi32, #tpu.memory_space<vmem>>
      %223 = tpu.memref_slice %arg7[%152] : memref<2x!tpu.dma_semaphore, #tpu.memory_space<semaphore_mem>> -> memref<1x!tpu.dma_semaphore, #tpu.memory_space<semaphore_mem>>
      %224 = tpu.memref_squeeze %223 : memref<1x!tpu.dma_semaphore, #tpu.memory_space<semaphore_mem>> -> memref<!tpu.dma_semaphore, #tpu.memory_space<semaphore_mem>>
      tpu.enqueue_dma source(%220 : memref<32xi32, #tpu.memory_space<any>>) target(%222 : memref<32xi32, #tpu.memory_space<vmem>>) target_semaphore(%224 : memref<!tpu.dma_semaphore, #tpu.memory_space<semaphore_mem>>)
      %c7_i32_97 = arith.constant 7 : i32
      %225 = arith.addi %153, %c7_i32_97 : i32
      %226 = arith.index_cast %225 : i32 to index
      %227 = memref.load %arg2[%226] : memref<16xi32, #tpu.memory_space<smem>>
      %c7_i32_98 = arith.constant 7 : i32
      %228 = arith.addi %154, %c7_i32_98 : i32
      %c0_i32_99 = arith.constant 0 : i32
      %229 = tpu.memref_slice %arg3[%227, %c0_i32_99] : memref<16x32xi32, #tpu.memory_space<any>> -> memref<1x32xi32, #tpu.memory_space<any>>
      %230 = tpu.memref_squeeze %229 : memref<1x32xi32, #tpu.memory_space<any>> -> memref<32xi32, #tpu.memory_space<any>>
      %c0_i32_100 = arith.constant 0 : i32
      %231 = tpu.memref_slice %arg6[%228, %c0_i32_100] : memref<32x32xi32, #tpu.memory_space<vmem>> -> memref<1x32xi32, #tpu.memory_space<vmem>>
      %232 = tpu.memref_squeeze %231 : memref<1x32xi32, #tpu.memory_space<vmem>> -> memref<32xi32, #tpu.memory_space<vmem>>
      %233 = tpu.memref_slice %arg7[%152] : memref<2x!tpu.dma_semaphore, #tpu.memory_space<semaphore_mem>> -> memref<1x!tpu.dma_semaphore, #tpu.memory_space<semaphore_mem>>
      %234 = tpu.memref_squeeze %233 : memref<1x!tpu.dma_semaphore, #tpu.memory_space<semaphore_mem>> -> memref<!tpu.dma_semaphore, #tpu.memory_space<semaphore_mem>>
      tpu.enqueue_dma source(%230 : memref<32xi32, #tpu.memory_space<any>>) target(%232 : memref<32xi32, #tpu.memory_space<vmem>>) target_semaphore(%234 : memref<!tpu.dma_semaphore, #tpu.memory_space<semaphore_mem>>)
      %c8_i32_101 = arith.constant 8 : i32
      %235 = arith.addi %153, %c8_i32_101 : i32
      %236 = arith.index_cast %235 : i32 to index
      %237 = memref.load %arg2[%236] : memref<16xi32, #tpu.memory_space<smem>>
      %c8_i32_102 = arith.constant 8 : i32
      %238 = arith.addi %154, %c8_i32_102 : i32
      %c0_i32_103 = arith.constant 0 : i32
      %239 = tpu.memref_slice %arg3[%237, %c0_i32_103] : memref<16x32xi32, #tpu.memory_space<any>> -> memref<1x32xi32, #tpu.memory_space<any>>
      %240 = tpu.memref_squeeze %239 : memref<1x32xi32, #tpu.memory_space<any>> -> memref<32xi32, #tpu.memory_space<any>>
      %c0_i32_104 = arith.constant 0 : i32
      %241 = tpu.memref_slice %arg6[%238, %c0_i32_104] : memref<32x32xi32, #tpu.memory_space<vmem>> -> memref<1x32xi32, #tpu.memory_space<vmem>>
      %242 = tpu.memref_squeeze %241 : memref<1x32xi32, #tpu.memory_space<vmem>> -> memref<32xi32, #tpu.memory_space<vmem>>
      %243 = tpu.memref_slice %arg7[%152] : memref<2x!tpu.dma_semaphore, #tpu.memory_space<semaphore_mem>> -> memref<1x!tpu.dma_semaphore, #tpu.memory_space<semaphore_mem>>
      %244 = tpu.memref_squeeze %243 : memref<1x!tpu.dma_semaphore, #tpu.memory_space<semaphore_mem>> -> memref<!tpu.dma_semaphore, #tpu.memory_space<semaphore_mem>>
      tpu.enqueue_dma source(%240 : memref<32xi32, #tpu.memory_space<any>>) target(%242 : memref<32xi32, #tpu.memory_space<vmem>>) target_semaphore(%244 : memref<!tpu.dma_semaphore, #tpu.memory_space<semaphore_mem>>)
      %c9_i32_105 = arith.constant 9 : i32
      %245 = arith.addi %153, %c9_i32_105 : i32
      %246 = arith.index_cast %245 : i32 to index
      %247 = memref.load %arg2[%246] : memref<16xi32, #tpu.memory_space<smem>>
      %c9_i32_106 = arith.constant 9 : i32
      %248 = arith.addi %154, %c9_i32_106 : i32
      %c0_i32_107 = arith.constant 0 : i32
      %249 = tpu.memref_slice %arg3[%247, %c0_i32_107] : memref<16x32xi32, #tpu.memory_space<any>> -> memref<1x32xi32, #tpu.memory_space<any>>
      %250 = tpu.memref_squeeze %249 : memref<1x32xi32, #tpu.memory_space<any>> -> memref<32xi32, #tpu.memory_space<any>>
      %c0_i32_108 = arith.constant 0 : i32
      %251 = tpu.memref_slice %arg6[%248, %c0_i32_108] : memref<32x32xi32, #tpu.memory_space<vmem>> -> memref<1x32xi32, #tpu.memory_space<vmem>>
      %252 = tpu.memref_squeeze %251 : memref<1x32xi32, #tpu.memory_space<vmem>> -> memref<32xi32, #tpu.memory_space<vmem>>
      %253 = tpu.memref_slice %arg7[%152] : memref<2x!tpu.dma_semaphore, #tpu.memory_space<semaphore_mem>> -> memref<1x!tpu.dma_semaphore, #tpu.memory_space<semaphore_mem>>
      %254 = tpu.memref_squeeze %253 : memref<1x!tpu.dma_semaphore, #tpu.memory_space<semaphore_mem>> -> memref<!tpu.dma_semaphore, #tpu.memory_space<semaphore_mem>>
      tpu.enqueue_dma source(%250 : memref<32xi32, #tpu.memory_space<any>>) target(%252 : memref<32xi32, #tpu.memory_space<vmem>>) target_semaphore(%254 : memref<!tpu.dma_semaphore, #tpu.memory_space<semaphore_mem>>)
      %c10_i32_109 = arith.constant 10 : i32
      %255 = arith.addi %153, %c10_i32_109 : i32
      %256 = arith.index_cast %255 : i32 to index
      %257 = memref.load %arg2[%256] : memref<16xi32, #tpu.memory_space<smem>>
      %c10_i32_110 = arith.constant 10 : i32
      %258 = arith.addi %154, %c10_i32_110 : i32
      %c0_i32_111 = arith.constant 0 : i32
      %259 = tpu.memref_slice %arg3[%257, %c0_i32_111] : memref<16x32xi32, #tpu.memory_space<any>> -> memref<1x32xi32, #tpu.memory_space<any>>
      %260 = tpu.memref_squeeze %259 : memref<1x32xi32, #tpu.memory_space<any>> -> memref<32xi32, #tpu.memory_space<any>>
      %c0_i32_112 = arith.constant 0 : i32
      %261 = tpu.memref_slice %arg6[%258, %c0_i32_112] : memref<32x32xi32, #tpu.memory_space<vmem>> -> memref<1x32xi32, #tpu.memory_space<vmem>>
      %262 = tpu.memref_squeeze %261 : memref<1x32xi32, #tpu.memory_space<vmem>> -> memref<32xi32, #tpu.memory_space<vmem>>
      %263 = tpu.memref_slice %arg7[%152] : memref<2x!tpu.dma_semaphore, #tpu.memory_space<semaphore_mem>> -> memref<1x!tpu.dma_semaphore, #tpu.memory_space<semaphore_mem>>
      %264 = tpu.memref_squeeze %263 : memref<1x!tpu.dma_semaphore, #tpu.memory_space<semaphore_mem>> -> memref<!tpu.dma_semaphore, #tpu.memory_space<semaphore_mem>>
      tpu.enqueue_dma source(%260 : memref<32xi32, #tpu.memory_space<any>>) target(%262 : memref<32xi32, #tpu.memory_space<vmem>>) target_semaphore(%264 : memref<!tpu.dma_semaphore, #tpu.memory_space<semaphore_mem>>)
      %c11_i32_113 = arith.constant 11 : i32
      %265 = arith.addi %153, %c11_i32_113 : i32
      %266 = arith.index_cast %265 : i32 to index
      %267 = memref.load %arg2[%266] : memref<16xi32, #tpu.memory_space<smem>>
      %c11_i32_114 = arith.constant 11 : i32
      %268 = arith.addi %154, %c11_i32_114 : i32
      %c0_i32_115 = arith.constant 0 : i32
      %269 = tpu.memref_slice %arg3[%267, %c0_i32_115] : memref<16x32xi32, #tpu.memory_space<any>> -> memref<1x32xi32, #tpu.memory_space<any>>
      %270 = tpu.memref_squeeze %269 : memref<1x32xi32, #tpu.memory_space<any>> -> memref<32xi32, #tpu.memory_space<any>>
      %c0_i32_116 = arith.constant 0 : i32
      %271 = tpu.memref_slice %arg6[%268, %c0_i32_116] : memref<32x32xi32, #tpu.memory_space<vmem>> -> memref<1x32xi32, #tpu.memory_space<vmem>>
      %272 = tpu.memref_squeeze %271 : memref<1x32xi32, #tpu.memory_space<vmem>> -> memref<32xi32, #tpu.memory_space<vmem>>
      %273 = tpu.memref_slice %arg7[%152] : memref<2x!tpu.dma_semaphore, #tpu.memory_space<semaphore_mem>> -> memref<1x!tpu.dma_semaphore, #tpu.memory_space<semaphore_mem>>
      %274 = tpu.memref_squeeze %273 : memref<1x!tpu.dma_semaphore, #tpu.memory_space<semaphore_mem>> -> memref<!tpu.dma_semaphore, #tpu.memory_space<semaphore_mem>>
      tpu.enqueue_dma source(%270 : memref<32xi32, #tpu.memory_space<any>>) target(%272 : memref<32xi32, #tpu.memory_space<vmem>>) target_semaphore(%274 : memref<!tpu.dma_semaphore, #tpu.memory_space<semaphore_mem>>)
      %c12_i32_117 = arith.constant 12 : i32
      %275 = arith.addi %153, %c12_i32_117 : i32
      %276 = arith.index_cast %275 : i32 to index
      %277 = memref.load %arg2[%276] : memref<16xi32, #tpu.memory_space<smem>>
      %c12_i32_118 = arith.constant 12 : i32
      %278 = arith.addi %154, %c12_i32_118 : i32
      %c0_i32_119 = arith.constant 0 : i32
      %279 = tpu.memref_slice %arg3[%277, %c0_i32_119] : memref<16x32xi32, #tpu.memory_space<any>> -> memref<1x32xi32, #tpu.memory_space<any>>
      %280 = tpu.memref_squeeze %279 : memref<1x32xi32, #tpu.memory_space<any>> -> memref<32xi32, #tpu.memory_space<any>>
      %c0_i32_120 = arith.constant 0 : i32
      %281 = tpu.memref_slice %arg6[%278, %c0_i32_120] : memref<32x32xi32, #tpu.memory_space<vmem>> -> memref<1x32xi32, #tpu.memory_space<vmem>>
      %282 = tpu.memref_squeeze %281 : memref<1x32xi32, #tpu.memory_space<vmem>> -> memref<32xi32, #tpu.memory_space<vmem>>
      %283 = tpu.memref_slice %arg7[%152] : memref<2x!tpu.dma_semaphore, #tpu.memory_space<semaphore_mem>> -> memref<1x!tpu.dma_semaphore, #tpu.memory_space<semaphore_mem>>
      %284 = tpu.memref_squeeze %283 : memref<1x!tpu.dma_semaphore, #tpu.memory_space<semaphore_mem>> -> memref<!tpu.dma_semaphore, #tpu.memory_space<semaphore_mem>>
      tpu.enqueue_dma source(%280 : memref<32xi32, #tpu.memory_space<any>>) target(%282 : memref<32xi32, #tpu.memory_space<vmem>>) target_semaphore(%284 : memref<!tpu.dma_semaphore, #tpu.memory_space<semaphore_mem>>)
      %c13_i32_121 = arith.constant 13 : i32
      %285 = arith.addi %153, %c13_i32_121 : i32
      %286 = arith.index_cast %285 : i32 to index
      %287 = memref.load %arg2[%286] : memref<16xi32, #tpu.memory_space<smem>>
      %c13_i32_122 = arith.constant 13 : i32
      %288 = arith.addi %154, %c13_i32_122 : i32
      %c0_i32_123 = arith.constant 0 : i32
      %289 = tpu.memref_slice %arg3[%287, %c0_i32_123] : memref<16x32xi32, #tpu.memory_space<any>> -> memref<1x32xi32, #tpu.memory_space<any>>
      %290 = tpu.memref_squeeze %289 : memref<1x32xi32, #tpu.memory_space<any>> -> memref<32xi32, #tpu.memory_space<any>>
      %c0_i32_124 = arith.constant 0 : i32
      %291 = tpu.memref_slice %arg6[%288, %c0_i32_124] : memref<32x32xi32, #tpu.memory_space<vmem>> -> memref<1x32xi32, #tpu.memory_space<vmem>>
      %292 = tpu.memref_squeeze %291 : memref<1x32xi32, #tpu.memory_space<vmem>> -> memref<32xi32, #tpu.memory_space<vmem>>
      %293 = tpu.memref_slice %arg7[%152] : memref<2x!tpu.dma_semaphore, #tpu.memory_space<semaphore_mem>> -> memref<1x!tpu.dma_semaphore, #tpu.memory_space<semaphore_mem>>
      %294 = tpu.memref_squeeze %293 : memref<1x!tpu.dma_semaphore, #tpu.memory_space<semaphore_mem>> -> memref<!tpu.dma_semaphore, #tpu.memory_space<semaphore_mem>>
      tpu.enqueue_dma source(%290 : memref<32xi32, #tpu.memory_space<any>>) target(%292 : memref<32xi32, #tpu.memory_space<vmem>>) target_semaphore(%294 : memref<!tpu.dma_semaphore, #tpu.memory_space<semaphore_mem>>)
      %c14_i32_125 = arith.constant 14 : i32
      %295 = arith.addi %153, %c14_i32_125 : i32
      %296 = arith.index_cast %295 : i32 to index
      %297 = memref.load %arg2[%296] : memref<16xi32, #tpu.memory_space<smem>>
      %c14_i32_126 = arith.constant 14 : i32
      %298 = arith.addi %154, %c14_i32_126 : i32
      %c0_i32_127 = arith.constant 0 : i32
      %299 = tpu.memref_slice %arg3[%297, %c0_i32_127] : memref<16x32xi32, #tpu.memory_space<any>> -> memref<1x32xi32, #tpu.memory_space<any>>
      %300 = tpu.memref_squeeze %299 : memref<1x32xi32, #tpu.memory_space<any>> -> memref<32xi32, #tpu.memory_space<any>>
      %c0_i32_128 = arith.constant 0 : i32
      %301 = tpu.memref_slice %arg6[%298, %c0_i32_128] : memref<32x32xi32, #tpu.memory_space<vmem>> -> memref<1x32xi32, #tpu.memory_space<vmem>>
      %302 = tpu.memref_squeeze %301 : memref<1x32xi32, #tpu.memory_space<vmem>> -> memref<32xi32, #tpu.memory_space<vmem>>
      %303 = tpu.memref_slice %arg7[%152] : memref<2x!tpu.dma_semaphore, #tpu.memory_space<semaphore_mem>> -> memref<1x!tpu.dma_semaphore, #tpu.memory_space<semaphore_mem>>
      %304 = tpu.memref_squeeze %303 : memref<1x!tpu.dma_semaphore, #tpu.memory_space<semaphore_mem>> -> memref<!tpu.dma_semaphore, #tpu.memory_space<semaphore_mem>>
      tpu.enqueue_dma source(%300 : memref<32xi32, #tpu.memory_space<any>>) target(%302 : memref<32xi32, #tpu.memory_space<vmem>>) target_semaphore(%304 : memref<!tpu.dma_semaphore, #tpu.memory_space<semaphore_mem>>)
      %c15_i32_129 = arith.constant 15 : i32
      %305 = arith.addi %153, %c15_i32_129 : i32
      %306 = arith.index_cast %305 : i32 to index
      %307 = memref.load %arg2[%306] : memref<16xi32, #tpu.memory_space<smem>>
      %c15_i32_130 = arith.constant 15 : i32
      %308 = arith.addi %154, %c15_i32_130 : i32
      %c0_i32_131 = arith.constant 0 : i32
      %309 = tpu.memref_slice %arg3[%307, %c0_i32_131] : memref<16x32xi32, #tpu.memory_space<any>> -> memref<1x32xi32, #tpu.memory_space<any>>
      %310 = tpu.memref_squeeze %309 : memref<1x32xi32, #tpu.memory_space<any>> -> memref<32xi32, #tpu.memory_space<any>>
      %c0_i32_132 = arith.constant 0 : i32
      %311 = tpu.memref_slice %arg6[%308, %c0_i32_132] : memref<32x32xi32, #tpu.memory_space<vmem>> -> memref<1x32xi32, #tpu.memory_space<vmem>>
      %312 = tpu.memref_squeeze %311 : memref<1x32xi32, #tpu.memory_space<vmem>> -> memref<32xi32, #tpu.memory_space<vmem>>
      %313 = tpu.memref_slice %arg7[%152] : memref<2x!tpu.dma_semaphore, #tpu.memory_space<semaphore_mem>> -> memref<1x!tpu.dma_semaphore, #tpu.memory_space<semaphore_mem>>
      %314 = tpu.memref_squeeze %313 : memref<1x!tpu.dma_semaphore, #tpu.memory_space<semaphore_mem>> -> memref<!tpu.dma_semaphore, #tpu.memory_space<semaphore_mem>>
      tpu.enqueue_dma source(%310 : memref<32xi32, #tpu.memory_space<any>>) target(%312 : memref<32xi32, #tpu.memory_space<vmem>>) target_semaphore(%314 : memref<!tpu.dma_semaphore, #tpu.memory_space<semaphore_mem>>)
    } else {
    }
    %c16_i32 = arith.constant 16 : i32
    %10 = arith.muli %0, %c16_i32 : i32
    %c0_i32_4 = arith.constant 0 : i32
    %11 = arith.addi %10, %c0_i32_4 : i32
    %c0_i32_5 = arith.constant 0 : i32
    %c0_i32_6 = arith.constant 0 : i32
    %12 = tpu.memref_slice %arg3[%c0_i32_5, %c0_i32_6] : memref<16x32xi32, #tpu.memory_space<any>> -> memref<1x32xi32, #tpu.memory_space<any>>
    %13 = tpu.memref_squeeze %12 : memref<1x32xi32, #tpu.memory_space<any>> -> memref<32xi32, #tpu.memory_space<any>>
    %c0_i32_7 = arith.constant 0 : i32
    %14 = tpu.memref_slice %arg6[%11, %c0_i32_7] : memref<32x32xi32, #tpu.memory_space<vmem>> -> memref<1x32xi32, #tpu.memory_space<vmem>>
    %15 = tpu.memref_squeeze %14 : memref<1x32xi32, #tpu.memory_space<vmem>> -> memref<32xi32, #tpu.memory_space<vmem>>
    %16 = tpu.memref_slice %arg7[%0] : memref<2x!tpu.dma_semaphore, #tpu.memory_space<semaphore_mem>> -> memref<1x!tpu.dma_semaphore, #tpu.memory_space<semaphore_mem>>
    %17 = tpu.memref_squeeze %16 : memref<1x!tpu.dma_semaphore, #tpu.memory_space<semaphore_mem>> -> memref<!tpu.dma_semaphore, #tpu.memory_space<semaphore_mem>>
    tpu.wait_dma2 semaphore(%17 : memref<!tpu.dma_semaphore, #tpu.memory_space<semaphore_mem>>) src(%13 : memref<32xi32, #tpu.memory_space<any>>) dst(%15 : memref<32xi32, #tpu.memory_space<vmem>>)
    %c1_i32_8 = arith.constant 1 : i32
    %18 = arith.addi %10, %c1_i32_8 : i32
    %c0_i32_9 = arith.constant 0 : i32
    %c0_i32_10 = arith.constant 0 : i32
    %19 = tpu.memref_slice %arg3[%c0_i32_9, %c0_i32_10] : memref<16x32xi32, #tpu.memory_space<any>> -> memref<1x32xi32, #tpu.memory_space<any>>
    %20 = tpu.memref_squeeze %19 : memref<1x32xi32, #tpu.memory_space<any>> -> memref<32xi32, #tpu.memory_space<any>>
    %c0_i32_11 = arith.constant 0 : i32
    %21 = tpu.memref_slice %arg6[%18, %c0_i32_11] : memref<32x32xi32, #tpu.memory_space<vmem>> -> memref<1x32xi32, #tpu.memory_space<vmem>>
    %22 = tpu.memref_squeeze %21 : memref<1x32xi32, #tpu.memory_space<vmem>> -> memref<32xi32, #tpu.memory_space<vmem>>
    %23 = tpu.memref_slice %arg7[%0] : memref<2x!tpu.dma_semaphore, #tpu.memory_space<semaphore_mem>> -> memref<1x!tpu.dma_semaphore, #tpu.memory_space<semaphore_mem>>
    %24 = tpu.memref_squeeze %23 : memref<1x!tpu.dma_semaphore, #tpu.memory_space<semaphore_mem>> -> memref<!tpu.dma_semaphore, #tpu.memory_space<semaphore_mem>>
    tpu.wait_dma2 semaphore(%24 : memref<!tpu.dma_semaphore, #tpu.memory_space<semaphore_mem>>) src(%20 : memref<32xi32, #tpu.memory_space<any>>) dst(%22 : memref<32xi32, #tpu.memory_space<vmem>>)
    %c2_i32_12 = arith.constant 2 : i32
    %25 = arith.addi %10, %c2_i32_12 : i32
    %c0_i32_13 = arith.constant 0 : i32
    %c0_i32_14 = arith.constant 0 : i32
    %26 = tpu.memref_slice %arg3[%c0_i32_13, %c0_i32_14] : memref<16x32xi32, #tpu.memory_space<any>> -> memref<1x32xi32, #tpu.memory_space<any>>
    %27 = tpu.memref_squeeze %26 : memref<1x32xi32, #tpu.memory_space<any>> -> memref<32xi32, #tpu.memory_space<any>>
    %c0_i32_15 = arith.constant 0 : i32
    %28 = tpu.memref_slice %arg6[%25, %c0_i32_15] : memref<32x32xi32, #tpu.memory_space<vmem>> -> memref<1x32xi32, #tpu.memory_space<vmem>>
    %29 = tpu.memref_squeeze %28 : memref<1x32xi32, #tpu.memory_space<vmem>> -> memref<32xi32, #tpu.memory_space<vmem>>
    %30 = tpu.memref_slice %arg7[%0] : memref<2x!tpu.dma_semaphore, #tpu.memory_space<semaphore_mem>> -> memref<1x!tpu.dma_semaphore, #tpu.memory_space<semaphore_mem>>
    %31 = tpu.memref_squeeze %30 : memref<1x!tpu.dma_semaphore, #tpu.memory_space<semaphore_mem>> -> memref<!tpu.dma_semaphore, #tpu.memory_space<semaphore_mem>>
    tpu.wait_dma2 semaphore(%31 : memref<!tpu.dma_semaphore, #tpu.memory_space<semaphore_mem>>) src(%27 : memref<32xi32, #tpu.memory_space<any>>) dst(%29 : memref<32xi32, #tpu.memory_space<vmem>>)
    %c3_i32 = arith.constant 3 : i32
    %32 = arith.addi %10, %c3_i32 : i32
    %c0_i32_16 = arith.constant 0 : i32
    %c0_i32_17 = arith.constant 0 : i32
    %33 = tpu.memref_slice %arg3[%c0_i32_16, %c0_i32_17] : memref<16x32xi32, #tpu.memory_space<any>> -> memref<1x32xi32, #tpu.memory_space<any>>
    %34 = tpu.memref_squeeze %33 : memref<1x32xi32, #tpu.memory_space<any>> -> memref<32xi32, #tpu.memory_space<any>>
    %c0_i32_18 = arith.constant 0 : i32
    %35 = tpu.memref_slice %arg6[%32, %c0_i32_18] : memref<32x32xi32, #tpu.memory_space<vmem>> -> memref<1x32xi32, #tpu.memory_space<vmem>>
    %36 = tpu.memref_squeeze %35 : memref<1x32xi32, #tpu.memory_space<vmem>> -> memref<32xi32, #tpu.memory_space<vmem>>
    %37 = tpu.memref_slice %arg7[%0] : memref<2x!tpu.dma_semaphore, #tpu.memory_space<semaphore_mem>> -> memref<1x!tpu.dma_semaphore, #tpu.memory_space<semaphore_mem>>
    %38 = tpu.memref_squeeze %37 : memref<1x!tpu.dma_semaphore, #tpu.memory_space<semaphore_mem>> -> memref<!tpu.dma_semaphore, #tpu.memory_space<semaphore_mem>>
    tpu.wait_dma2 semaphore(%38 : memref<!tpu.dma_semaphore, #tpu.memory_space<semaphore_mem>>) src(%34 : memref<32xi32, #tpu.memory_space<any>>) dst(%36 : memref<32xi32, #tpu.memory_space<vmem>>)
    %c4_i32 = arith.constant 4 : i32
    %39 = arith.addi %10, %c4_i32 : i32
    %c0_i32_19 = arith.constant 0 : i32
    %c0_i32_20 = arith.constant 0 : i32
    %40 = tpu.memref_slice %arg3[%c0_i32_19, %c0_i32_20] : memref<16x32xi32, #tpu.memory_space<any>> -> memref<1x32xi32, #tpu.memory_space<any>>
    %41 = tpu.memref_squeeze %40 : memref<1x32xi32, #tpu.memory_space<any>> -> memref<32xi32, #tpu.memory_space<any>>
    %c0_i32_21 = arith.constant 0 : i32
    %42 = tpu.memref_slice %arg6[%39, %c0_i32_21] : memref<32x32xi32, #tpu.memory_space<vmem>> -> memref<1x32xi32, #tpu.memory_space<vmem>>
    %43 = tpu.memref_squeeze %42 : memref<1x32xi32, #tpu.memory_space<vmem>> -> memref<32xi32, #tpu.memory_space<vmem>>
    %44 = tpu.memref_slice %arg7[%0] : memref<2x!tpu.dma_semaphore, #tpu.memory_space<semaphore_mem>> -> memref<1x!tpu.dma_semaphore, #tpu.memory_space<semaphore_mem>>
    %45 = tpu.memref_squeeze %44 : memref<1x!tpu.dma_semaphore, #tpu.memory_space<semaphore_mem>> -> memref<!tpu.dma_semaphore, #tpu.memory_space<semaphore_mem>>
    tpu.wait_dma2 semaphore(%45 : memref<!tpu.dma_semaphore, #tpu.memory_space<semaphore_mem>>) src(%41 : memref<32xi32, #tpu.memory_space<any>>) dst(%43 : memref<32xi32, #tpu.memory_space<vmem>>)
    %c5_i32 = arith.constant 5 : i32
    %46 = arith.addi %10, %c5_i32 : i32
    %c0_i32_22 = arith.constant 0 : i32
    %c0_i32_23 = arith.constant 0 : i32
    %47 = tpu.memref_slice %arg3[%c0_i32_22, %c0_i32_23] : memref<16x32xi32, #tpu.memory_space<any>> -> memref<1x32xi32, #tpu.memory_space<any>>
    %48 = tpu.memref_squeeze %47 : memref<1x32xi32, #tpu.memory_space<any>> -> memref<32xi32, #tpu.memory_space<any>>
    %c0_i32_24 = arith.constant 0 : i32
    %49 = tpu.memref_slice %arg6[%46, %c0_i32_24] : memref<32x32xi32, #tpu.memory_space<vmem>> -> memref<1x32xi32, #tpu.memory_space<vmem>>
    %50 = tpu.memref_squeeze %49 : memref<1x32xi32, #tpu.memory_space<vmem>> -> memref<32xi32, #tpu.memory_space<vmem>>
    %51 = tpu.memref_slice %arg7[%0] : memref<2x!tpu.dma_semaphore, #tpu.memory_space<semaphore_mem>> -> memref<1x!tpu.dma_semaphore, #tpu.memory_space<semaphore_mem>>
    %52 = tpu.memref_squeeze %51 : memref<1x!tpu.dma_semaphore, #tpu.memory_space<semaphore_mem>> -> memref<!tpu.dma_semaphore, #tpu.memory_space<semaphore_mem>>
    tpu.wait_dma2 semaphore(%52 : memref<!tpu.dma_semaphore, #tpu.memory_space<semaphore_mem>>) src(%48 : memref<32xi32, #tpu.memory_space<any>>) dst(%50 : memref<32xi32, #tpu.memory_space<vmem>>)
    %c6_i32 = arith.constant 6 : i32
    %53 = arith.addi %10, %c6_i32 : i32
    %c0_i32_25 = arith.constant 0 : i32
    %c0_i32_26 = arith.constant 0 : i32
    %54 = tpu.memref_slice %arg3[%c0_i32_25, %c0_i32_26] : memref<16x32xi32, #tpu.memory_space<any>> -> memref<1x32xi32, #tpu.memory_space<any>>
    %55 = tpu.memref_squeeze %54 : memref<1x32xi32, #tpu.memory_space<any>> -> memref<32xi32, #tpu.memory_space<any>>
    %c0_i32_27 = arith.constant 0 : i32
    %56 = tpu.memref_slice %arg6[%53, %c0_i32_27] : memref<32x32xi32, #tpu.memory_space<vmem>> -> memref<1x32xi32, #tpu.memory_space<vmem>>
    %57 = tpu.memref_squeeze %56 : memref<1x32xi32, #tpu.memory_space<vmem>> -> memref<32xi32, #tpu.memory_space<vmem>>
    %58 = tpu.memref_slice %arg7[%0] : memref<2x!tpu.dma_semaphore, #tpu.memory_space<semaphore_mem>> -> memref<1x!tpu.dma_semaphore, #tpu.memory_space<semaphore_mem>>
    %59 = tpu.memref_squeeze %58 : memref<1x!tpu.dma_semaphore, #tpu.memory_space<semaphore_mem>> -> memref<!tpu.dma_semaphore, #tpu.memory_space<semaphore_mem>>
    tpu.wait_dma2 semaphore(%59 : memref<!tpu.dma_semaphore, #tpu.memory_space<semaphore_mem>>) src(%55 : memref<32xi32, #tpu.memory_space<any>>) dst(%57 : memref<32xi32, #tpu.memory_space<vmem>>)
    %c7_i32 = arith.constant 7 : i32
    %60 = arith.addi %10, %c7_i32 : i32
    %c0_i32_28 = arith.constant 0 : i32
    %c0_i32_29 = arith.constant 0 : i32
    %61 = tpu.memref_slice %arg3[%c0_i32_28, %c0_i32_29] : memref<16x32xi32, #tpu.memory_space<any>> -> memref<1x32xi32, #tpu.memory_space<any>>
    %62 = tpu.memref_squeeze %61 : memref<1x32xi32, #tpu.memory_space<any>> -> memref<32xi32, #tpu.memory_space<any>>
    %c0_i32_30 = arith.constant 0 : i32
    %63 = tpu.memref_slice %arg6[%60, %c0_i32_30] : memref<32x32xi32, #tpu.memory_space<vmem>> -> memref<1x32xi32, #tpu.memory_space<vmem>>
    %64 = tpu.memref_squeeze %63 : memref<1x32xi32, #tpu.memory_space<vmem>> -> memref<32xi32, #tpu.memory_space<vmem>>
    %65 = tpu.memref_slice %arg7[%0] : memref<2x!tpu.dma_semaphore, #tpu.memory_space<semaphore_mem>> -> memref<1x!tpu.dma_semaphore, #tpu.memory_space<semaphore_mem>>
    %66 = tpu.memref_squeeze %65 : memref<1x!tpu.dma_semaphore, #tpu.memory_space<semaphore_mem>> -> memref<!tpu.dma_semaphore, #tpu.memory_space<semaphore_mem>>
    tpu.wait_dma2 semaphore(%66 : memref<!tpu.dma_semaphore, #tpu.memory_space<semaphore_mem>>) src(%62 : memref<32xi32, #tpu.memory_space<any>>) dst(%64 : memref<32xi32, #tpu.memory_space<vmem>>)
    %c8_i32 = arith.constant 8 : i32
    %67 = arith.addi %10, %c8_i32 : i32
    %c0_i32_31 = arith.constant 0 : i32
    %c0_i32_32 = arith.constant 0 : i32
    %68 = tpu.memref_slice %arg3[%c0_i32_31, %c0_i32_32] : memref<16x32xi32, #tpu.memory_space<any>> -> memref<1x32xi32, #tpu.memory_space<any>>
    %69 = tpu.memref_squeeze %68 : memref<1x32xi32, #tpu.memory_space<any>> -> memref<32xi32, #tpu.memory_space<any>>
    %c0_i32_33 = arith.constant 0 : i32
    %70 = tpu.memref_slice %arg6[%67, %c0_i32_33] : memref<32x32xi32, #tpu.memory_space<vmem>> -> memref<1x32xi32, #tpu.memory_space<vmem>>
    %71 = tpu.memref_squeeze %70 : memref<1x32xi32, #tpu.memory_space<vmem>> -> memref<32xi32, #tpu.memory_space<vmem>>
    %72 = tpu.memref_slice %arg7[%0] : memref<2x!tpu.dma_semaphore, #tpu.memory_space<semaphore_mem>> -> memref<1x!tpu.dma_semaphore, #tpu.memory_space<semaphore_mem>>
    %73 = tpu.memref_squeeze %72 : memref<1x!tpu.dma_semaphore, #tpu.memory_space<semaphore_mem>> -> memref<!tpu.dma_semaphore, #tpu.memory_space<semaphore_mem>>
    tpu.wait_dma2 semaphore(%73 : memref<!tpu.dma_semaphore, #tpu.memory_space<semaphore_mem>>) src(%69 : memref<32xi32, #tpu.memory_space<any>>) dst(%71 : memref<32xi32, #tpu.memory_space<vmem>>)
    %c9_i32 = arith.constant 9 : i32
    %74 = arith.addi %10, %c9_i32 : i32
    %c0_i32_34 = arith.constant 0 : i32
    %c0_i32_35 = arith.constant 0 : i32
    %75 = tpu.memref_slice %arg3[%c0_i32_34, %c0_i32_35] : memref<16x32xi32, #tpu.memory_space<any>> -> memref<1x32xi32, #tpu.memory_space<any>>
    %76 = tpu.memref_squeeze %75 : memref<1x32xi32, #tpu.memory_space<any>> -> memref<32xi32, #tpu.memory_space<any>>
    %c0_i32_36 = arith.constant 0 : i32
    %77 = tpu.memref_slice %arg6[%74, %c0_i32_36] : memref<32x32xi32, #tpu.memory_space<vmem>> -> memref<1x32xi32, #tpu.memory_space<vmem>>
    %78 = tpu.memref_squeeze %77 : memref<1x32xi32, #tpu.memory_space<vmem>> -> memref<32xi32, #tpu.memory_space<vmem>>
    %79 = tpu.memref_slice %arg7[%0] : memref<2x!tpu.dma_semaphore, #tpu.memory_space<semaphore_mem>> -> memref<1x!tpu.dma_semaphore, #tpu.memory_space<semaphore_mem>>
    %80 = tpu.memref_squeeze %79 : memref<1x!tpu.dma_semaphore, #tpu.memory_space<semaphore_mem>> -> memref<!tpu.dma_semaphore, #tpu.memory_space<semaphore_mem>>
    tpu.wait_dma2 semaphore(%80 : memref<!tpu.dma_semaphore, #tpu.memory_space<semaphore_mem>>) src(%76 : memref<32xi32, #tpu.memory_space<any>>) dst(%78 : memref<32xi32, #tpu.memory_space<vmem>>)
    %c10_i32 = arith.constant 10 : i32
    %81 = arith.addi %10, %c10_i32 : i32
    %c0_i32_37 = arith.constant 0 : i32
    %c0_i32_38 = arith.constant 0 : i32
    %82 = tpu.memref_slice %arg3[%c0_i32_37, %c0_i32_38] : memref<16x32xi32, #tpu.memory_space<any>> -> memref<1x32xi32, #tpu.memory_space<any>>
    %83 = tpu.memref_squeeze %82 : memref<1x32xi32, #tpu.memory_space<any>> -> memref<32xi32, #tpu.memory_space<any>>
    %c0_i32_39 = arith.constant 0 : i32
    %84 = tpu.memref_slice %arg6[%81, %c0_i32_39] : memref<32x32xi32, #tpu.memory_space<vmem>> -> memref<1x32xi32, #tpu.memory_space<vmem>>
    %85 = tpu.memref_squeeze %84 : memref<1x32xi32, #tpu.memory_space<vmem>> -> memref<32xi32, #tpu.memory_space<vmem>>
    %86 = tpu.memref_slice %arg7[%0] : memref<2x!tpu.dma_semaphore, #tpu.memory_space<semaphore_mem>> -> memref<1x!tpu.dma_semaphore, #tpu.memory_space<semaphore_mem>>
    %87 = tpu.memref_squeeze %86 : memref<1x!tpu.dma_semaphore, #tpu.memory_space<semaphore_mem>> -> memref<!tpu.dma_semaphore, #tpu.memory_space<semaphore_mem>>
    tpu.wait_dma2 semaphore(%87 : memref<!tpu.dma_semaphore, #tpu.memory_space<semaphore_mem>>) src(%83 : memref<32xi32, #tpu.memory_space<any>>) dst(%85 : memref<32xi32, #tpu.memory_space<vmem>>)
    %c11_i32 = arith.constant 11 : i32
    %88 = arith.addi %10, %c11_i32 : i32
    %c0_i32_40 = arith.constant 0 : i32
    %c0_i32_41 = arith.constant 0 : i32
    %89 = tpu.memref_slice %arg3[%c0_i32_40, %c0_i32_41] : memref<16x32xi32, #tpu.memory_space<any>> -> memref<1x32xi32, #tpu.memory_space<any>>
    %90 = tpu.memref_squeeze %89 : memref<1x32xi32, #tpu.memory_space<any>> -> memref<32xi32, #tpu.memory_space<any>>
    %c0_i32_42 = arith.constant 0 : i32
    %91 = tpu.memref_slice %arg6[%88, %c0_i32_42] : memref<32x32xi32, #tpu.memory_space<vmem>> -> memref<1x32xi32, #tpu.memory_space<vmem>>
    %92 = tpu.memref_squeeze %91 : memref<1x32xi32, #tpu.memory_space<vmem>> -> memref<32xi32, #tpu.memory_space<vmem>>
    %93 = tpu.memref_slice %arg7[%0] : memref<2x!tpu.dma_semaphore, #tpu.memory_space<semaphore_mem>> -> memref<1x!tpu.dma_semaphore, #tpu.memory_space<semaphore_mem>>
    %94 = tpu.memref_squeeze %93 : memref<1x!tpu.dma_semaphore, #tpu.memory_space<semaphore_mem>> -> memref<!tpu.dma_semaphore, #tpu.memory_space<semaphore_mem>>
    tpu.wait_dma2 semaphore(%94 : memref<!tpu.dma_semaphore, #tpu.memory_space<semaphore_mem>>) src(%90 : memref<32xi32, #tpu.memory_space<any>>) dst(%92 : memref<32xi32, #tpu.memory_space<vmem>>)
    %c12_i32 = arith.constant 12 : i32
    %95 = arith.addi %10, %c12_i32 : i32
    %c0_i32_43 = arith.constant 0 : i32
    %c0_i32_44 = arith.constant 0 : i32
    %96 = tpu.memref_slice %arg3[%c0_i32_43, %c0_i32_44] : memref<16x32xi32, #tpu.memory_space<any>> -> memref<1x32xi32, #tpu.memory_space<any>>
    %97 = tpu.memref_squeeze %96 : memref<1x32xi32, #tpu.memory_space<any>> -> memref<32xi32, #tpu.memory_space<any>>
    %c0_i32_45 = arith.constant 0 : i32
    %98 = tpu.memref_slice %arg6[%95, %c0_i32_45] : memref<32x32xi32, #tpu.memory_space<vmem>> -> memref<1x32xi32, #tpu.memory_space<vmem>>
    %99 = tpu.memref_squeeze %98 : memref<1x32xi32, #tpu.memory_space<vmem>> -> memref<32xi32, #tpu.memory_space<vmem>>
    %100 = tpu.memref_slice %arg7[%0] : memref<2x!tpu.dma_semaphore, #tpu.memory_space<semaphore_mem>> -> memref<1x!tpu.dma_semaphore, #tpu.memory_space<semaphore_mem>>
    %101 = tpu.memref_squeeze %100 : memref<1x!tpu.dma_semaphore, #tpu.memory_space<semaphore_mem>> -> memref<!tpu.dma_semaphore, #tpu.memory_space<semaphore_mem>>
    tpu.wait_dma2 semaphore(%101 : memref<!tpu.dma_semaphore, #tpu.memory_space<semaphore_mem>>) src(%97 : memref<32xi32, #tpu.memory_space<any>>) dst(%99 : memref<32xi32, #tpu.memory_space<vmem>>)
    %c13_i32 = arith.constant 13 : i32
    %102 = arith.addi %10, %c13_i32 : i32
    %c0_i32_46 = arith.constant 0 : i32
    %c0_i32_47 = arith.constant 0 : i32
    %103 = tpu.memref_slice %arg3[%c0_i32_46, %c0_i32_47] : memref<16x32xi32, #tpu.memory_space<any>> -> memref<1x32xi32, #tpu.memory_space<any>>
    %104 = tpu.memref_squeeze %103 : memref<1x32xi32, #tpu.memory_space<any>> -> memref<32xi32, #tpu.memory_space<any>>
    %c0_i32_48 = arith.constant 0 : i32
    %105 = tpu.memref_slice %arg6[%102, %c0_i32_48] : memref<32x32xi32, #tpu.memory_space<vmem>> -> memref<1x32xi32, #tpu.memory_space<vmem>>
    %106 = tpu.memref_squeeze %105 : memref<1x32xi32, #tpu.memory_space<vmem>> -> memref<32xi32, #tpu.memory_space<vmem>>
    %107 = tpu.memref_slice %arg7[%0] : memref<2x!tpu.dma_semaphore, #tpu.memory_space<semaphore_mem>> -> memref<1x!tpu.dma_semaphore, #tpu.memory_space<semaphore_mem>>
    %108 = tpu.memref_squeeze %107 : memref<1x!tpu.dma_semaphore, #tpu.memory_space<semaphore_mem>> -> memref<!tpu.dma_semaphore, #tpu.memory_space<semaphore_mem>>
    tpu.wait_dma2 semaphore(%108 : memref<!tpu.dma_semaphore, #tpu.memory_space<semaphore_mem>>) src(%104 : memref<32xi32, #tpu.memory_space<any>>) dst(%106 : memref<32xi32, #tpu.memory_space<vmem>>)
    %c14_i32 = arith.constant 14 : i32
    %109 = arith.addi %10, %c14_i32 : i32
    %c0_i32_49 = arith.constant 0 : i32
    %c0_i32_50 = arith.constant 0 : i32
    %110 = tpu.memref_slice %arg3[%c0_i32_49, %c0_i32_50] : memref<16x32xi32, #tpu.memory_space<any>> -> memref<1x32xi32, #tpu.memory_space<any>>
    %111 = tpu.memref_squeeze %110 : memref<1x32xi32, #tpu.memory_space<any>> -> memref<32xi32, #tpu.memory_space<any>>
    %c0_i32_51 = arith.constant 0 : i32
    %112 = tpu.memref_slice %arg6[%109, %c0_i32_51] : memref<32x32xi32, #tpu.memory_space<vmem>> -> memref<1x32xi32, #tpu.memory_space<vmem>>
    %113 = tpu.memref_squeeze %112 : memref<1x32xi32, #tpu.memory_space<vmem>> -> memref<32xi32, #tpu.memory_space<vmem>>
    %114 = tpu.memref_slice %arg7[%0] : memref<2x!tpu.dma_semaphore, #tpu.memory_space<semaphore_mem>> -> memref<1x!tpu.dma_semaphore, #tpu.memory_space<semaphore_mem>>
    %115 = tpu.memref_squeeze %114 : memref<1x!tpu.dma_semaphore, #tpu.memory_space<semaphore_mem>> -> memref<!tpu.dma_semaphore, #tpu.memory_space<semaphore_mem>>
    tpu.wait_dma2 semaphore(%115 : memref<!tpu.dma_semaphore, #tpu.memory_space<semaphore_mem>>) src(%111 : memref<32xi32, #tpu.memory_space<any>>) dst(%113 : memref<32xi32, #tpu.memory_space<vmem>>)
    %c15_i32 = arith.constant 15 : i32
    %116 = arith.addi %10, %c15_i32 : i32
    %c0_i32_52 = arith.constant 0 : i32
    %c0_i32_53 = arith.constant 0 : i32
    %117 = tpu.memref_slice %arg3[%c0_i32_52, %c0_i32_53] : memref<16x32xi32, #tpu.memory_space<any>> -> memref<1x32xi32, #tpu.memory_space<any>>
    %118 = tpu.memref_squeeze %117 : memref<1x32xi32, #tpu.memory_space<any>> -> memref<32xi32, #tpu.memory_space<any>>
    %c0_i32_54 = arith.constant 0 : i32
    %119 = tpu.memref_slice %arg6[%116, %c0_i32_54] : memref<32x32xi32, #tpu.memory_space<vmem>> -> memref<1x32xi32, #tpu.memory_space<vmem>>
    %120 = tpu.memref_squeeze %119 : memref<1x32xi32, #tpu.memory_space<vmem>> -> memref<32xi32, #tpu.memory_space<vmem>>
    %121 = tpu.memref_slice %arg7[%0] : memref<2x!tpu.dma_semaphore, #tpu.memory_space<semaphore_mem>> -> memref<1x!tpu.dma_semaphore, #tpu.memory_space<semaphore_mem>>
    %122 = tpu.memref_squeeze %121 : memref<1x!tpu.dma_semaphore, #tpu.memory_space<semaphore_mem>> -> memref<!tpu.dma_semaphore, #tpu.memory_space<semaphore_mem>>
    tpu.wait_dma2 semaphore(%122 : memref<!tpu.dma_semaphore, #tpu.memory_space<semaphore_mem>>) src(%118 : memref<32xi32, #tpu.memory_space<any>>) dst(%120 : memref<32xi32, #tpu.memory_space<vmem>>)
    %c16_i32_55 = arith.constant 16 : i32
    %123 = arith.muli %0, %c16_i32_55 : i32
    %124 = tpu.assume_multiple %123, 8 : i32
    %125 = arith.index_cast %124 : i32 to index
    %c0 = arith.constant 0 : index
    %126 = vector.load %arg6[%125, %c0] : memref<32x32xi32, #tpu.memory_space<vmem>>, vector<16x32xi32>
    %c255_i32 = arith.constant 255 : i32
    %127 = vector.broadcast %c255_i32 : i32 to vector<16x32xi32>
    %128 = arith.andi %126, %127 : vector<16x32xi32>
    %c8_i32_56 = arith.constant 8 : i32
    %129 = vector.broadcast %c8_i32_56 : i32 to vector<16x32xi32>
    %130 = arith.shrsi %126, %129 : vector<16x32xi32>
    %c255_i32_57 = arith.constant 255 : i32
    %131 = vector.broadcast %c255_i32_57 : i32 to vector<16x32xi32>
    %132 = arith.andi %130, %131 : vector<16x32xi32>
    %c16_i32_58 = arith.constant 16 : i32
    %133 = vector.broadcast %c16_i32_58 : i32 to vector<16x32xi32>
    %134 = arith.shrsi %126, %133 : vector<16x32xi32>
    %c255_i32_59 = arith.constant 255 : i32
    %135 = vector.broadcast %c255_i32_59 : i32 to vector<16x32xi32>
    %136 = arith.andi %134, %135 : vector<16x32xi32>
    %c24_i32 = arith.constant 24 : i32
    %137 = vector.broadcast %c24_i32 : i32 to vector<16x32xi32>
    %138 = arith.shrsi %126, %137 : vector<16x32xi32>
    %c255_i32_60 = arith.constant 255 : i32
    %139 = vector.broadcast %c255_i32_60 : i32 to vector<16x32xi32>
    %140 = arith.andi %138, %139 : vector<16x32xi32>
    %141 = tpu.concatenate %128, %132, %136, %140 in 1 : vector<16x32xi32>, vector<16x32xi32>, vector<16x32xi32>, vector<16x32xi32> -> vector<16x128xi32>
    %142 = arith.sitofp %141 : vector<16x128xi32> to vector<16x128xf32>
    %c0_61 = arith.constant 0 : index
    %c0_62 = arith.constant 0 : index
    %143 = vector.load %arg4[%c0_61, %c0_62] : memref<16x2xf32, #tpu.memory_space<vmem>>, vector<16x2xf32>
    %144 = vector.extract_strided_slice %143 {offsets = [0, 0], sizes = [16, 1], strides = [1, 1]} : vector<16x2xf32> to vector<16x1xf32>
    %145 = vector.extract_strided_slice %143 {offsets = [0, 1], sizes = [16, 1], strides = [1, 1]} : vector<16x2xf32> to vector<16x1xf32>
    %146 = vector.broadcast %145 : vector<16x1xf32> to vector<16x128xf32>
    %147 = arith.subf %142, %146 : vector<16x128xf32>
    %148 = vector.broadcast %144 : vector<16x1xf32> to vector<16x128xf32>
    %149 = arith.mulf %147, %148 : vector<16x128xf32>
    %c0_63 = arith.constant 0 : index
    %c0_64 = arith.constant 0 : index
    %150 = vector.load %arg5[%c0_63, %c0_64] : memref<16x128xf32, #tpu.memory_space<vmem>>, vector<16x128xf32>
    tpu.vector_store %arg5[%c0_63, %c0_64], %149 {strides = array<i32>} : memref<16x128xf32, #tpu.memory_space<vmem>>, vector<16x128xf32>,
    return
  }
  func.func @transform_1(%arg0: i32, %arg1: i32, %arg2: memref<16xi32, #tpu.memory_space<smem>>) -> (i32, i32) {
    %c1_i32 = arith.constant 1 : i32
    %0 = arith.muli %arg0, %c1_i32 : i32
    %1 = arith.addi %0, %arg1 : i32
    %c0_i32 = arith.constant 0 : i32
    %c0_i32_0 = arith.constant 0 : i32
    return %1, %c0_i32 : i32, i32
  }
  func.func @transform_2(%arg0: i32, %arg1: i32, %arg2: memref<16xi32, #tpu.memory_space<smem>>) -> (i32, i32) {
    %c1_i32 = arith.constant 1 : i32
    %0 = arith.muli %arg0, %c1_i32 : i32
    %1 = arith.addi %0, %arg1 : i32
    %c0_i32 = arith.constant 0 : i32
    %c0_i32_0 = arith.constant 0 : i32
    return %1, %c0_i32 : i32, i32
  }
}

</mosaic_0001>

<llo_original>
// kernel: tpu_custom_call.1
$region0: #{tpu_custom_call.1}
  #allocation0 [shape = 'u32[]', space=smem, size = 0x4, offset = 0x4, fixed_abs, tag = 'smem constant byte address 0x4 - core index']
  #allocation1 [shape = 'u32[144,128]{1,0:T(1,128)}', space=vmem, size = 0x12000, scoped, tag = 'internal scratch']
  #allocation2 [shape = 's32[32,32]{1,0:T(8,128)}', space=vmem, size = 0x4000, scoped, tag = 'scratch operand']
  #allocation3 [shape = 's32[2]{0}', space=sflag, size = 0x8, scoped, tag = 'scratch operand']
  #allocation4 [shape = 's32[1]{0}', space=sflag, size = 0x4, scoped, tag = 'scoped memory for tpu_custom_call.1']
  #allocation5 [shape = 'u8[512]{0}', space=smem, size = 0x200, scoped, tag = 'prefetched SMEM operand 0']
  #allocation8 [shape = 's32[]', space=sflag, size = 0x4, offset = 0, fixed_abs, tag = 'sflag constant byte address 0x0 - dummy sync flag']
  #allocation9 [shape = 's32[]', space=sflag, size = 0x4, offset = 0, fixed_abs, tag = 'sflag constant byte address 0x0 - dummy sync flag']
  #allocation10 [shape = 's32[]', space=sflag, size = 0x4, offset = 0, fixed_abs, tag = 'sflag constant byte address 0x0 - dummy sync flag']
  #allocation11 [shape = 's32[]', space=sflag, size = 0x4, offset = 0, fixed_abs, tag = 'sflag constant byte address 0x0 - dummy sync flag']
  #allocation12 [shape = 's32[]', space=sflag, size = 0x4, offset = 0, fixed_abs, tag = 'sflag constant byte address 0x0 - dummy sync flag']
  #allocation13 [shape = 's32[]', space=sflag, size = 0x4, offset = 0, fixed_abs, tag = 'sflag constant byte address 0x0 - dummy sync flag']
  #allocation14 [shape = 's32[]', space=sflag, size = 0x4, offset = 0, fixed_abs, tag = 'sflag constant byte address 0x0 - dummy sync flag']
  #allocation15 [shape = 's32[]', space=sflag, size = 0x4, offset = 0, fixed_abs, tag = 'sflag constant byte address 0x0 - dummy sync flag']
  #allocation16 [shape = 's32[]', space=sflag, size = 0x4, offset = 0, fixed_abs, tag = 'sflag constant byte address 0x0 - dummy sync flag']
  #allocation17 [shape = 's32[]', space=sflag, size = 0x4, offset = 0, fixed_abs, tag = 'sflag constant byte address 0x0 - dummy sync flag']
  #allocation18 [shape = 's32[]', space=sflag, size = 0x4, offset = 0, fixed_abs, tag = 'sflag constant byte address 0x0 - dummy sync flag']
  #allocation19 [shape = 's32[]', space=sflag, size = 0x4, offset = 0, fixed_abs, tag = 'sflag constant byte address 0x0 - dummy sync flag']
  #allocation20 [shape = 's32[]', space=sflag, size = 0x4, offset = 0, fixed_abs, tag = 'sflag constant byte address 0x0 - dummy sync flag']
  #allocation21 [shape = 's32[]', space=sflag, size = 0x4, offset = 0, fixed_abs, tag = 'sflag constant byte address 0x0 - dummy sync flag']
  #allocation22 [shape = 's32[]', space=sflag, size = 0x4, offset = 0, fixed_abs, tag = 'sflag constant byte address 0x0 - dummy sync flag']
  #allocation23 [shape = 's32[]', space=sflag, size = 0x4, offset = 0, fixed_abs, tag = 'sflag constant byte address 0x0 - dummy sync flag']
  #allocation24 [shape = 's32[]', space=sflag, size = 0x4, offset = 0, fixed_abs, tag = 'sflag constant byte address 0x0 - dummy sync flag']
  #allocation25 [shape = 's32[]', space=sflag, size = 0x4, offset = 0, fixed_abs, tag = 'sflag constant byte address 0x0 - dummy sync flag']
  #allocation26 [shape = 's32[]', space=sflag, size = 0x4, offset = 0, fixed_abs, tag = 'sflag constant byte address 0x0 - dummy sync flag']
  #allocation27 [shape = 's32[]', space=sflag, size = 0x4, offset = 0, fixed_abs, tag = 'sflag constant byte address 0x0 - dummy sync flag']
  #allocation28 [shape = 's32[]', space=sflag, size = 0x4, offset = 0, fixed_abs, tag = 'sflag constant byte address 0x0 - dummy sync flag']
  #allocation29 [shape = 's32[]', space=sflag, size = 0x4, offset = 0, fixed_abs, tag = 'sflag constant byte address 0x0 - dummy sync flag']
  #allocation30 [shape = 's32[]', space=sflag, size = 0x4, offset = 0, fixed_abs, tag = 'sflag constant byte address 0x0 - dummy sync flag']
  #allocation31 [shape = 's32[]', space=sflag, size = 0x4, offset = 0, fixed_abs, tag = 'sflag constant byte address 0x0 - dummy sync flag']
  #allocation32 [shape = 's32[]', space=sflag, size = 0x4, offset = 0, fixed_abs, tag = 'sflag constant byte address 0x0 - dummy sync flag']
  #allocation33 [shape = 's32[]', space=sflag, size = 0x4, offset = 0, fixed_abs, tag = 'sflag constant byte address 0x0 - dummy sync flag']
  #allocation34 [shape = 's32[]', space=sflag, size = 0x4, offset = 0, fixed_abs, tag = 'sflag constant byte address 0x0 - dummy sync flag']
  #allocation35 [shape = 's32[]', space=sflag, size = 0x4, offset = 0, fixed_abs, tag = 'sflag constant byte address 0x0 - dummy sync flag']
  #allocation36 [shape = 's32[]', space=sflag, size = 0x4, offset = 0, fixed_abs, tag = 'sflag constant byte address 0x0 - dummy sync flag']
  #allocation37 [shape = 's32[]', space=sflag, size = 0x4, offset = 0, fixed_abs, tag = 'sflag constant byte address 0x0 - dummy sync flag']
  #allocation38 [shape = 's32[]', space=sflag, size = 0x4, offset = 0, fixed_abs, tag = 'sflag constant byte address 0x0 - dummy sync flag']
  #allocation39 [shape = 's32[]', space=sflag, size = 0x4, offset = 0, fixed_abs, tag = 'sflag constant byte address 0x0 - dummy sync flag']
  %s0 = inlined_call_operand.vmem [shape: s32[16], index: 0, kind: input, shape index: {}]
  %s1 = inlined_call_operand.vmem [shape: s32[16,32], index: 1, kind: input, shape index: {}]
  %s2 = inlined_call_operand.vmem [shape: f32[16,2], index: 2, kind: input, shape index: {}]
  %s3 = inlined_call_operand.hbm [shape: f32[16,128], index: 3, kind: output, shape index: {}]
  %s4 = sld [smem:[#allocation0]]
  $region982: #{tpu_custom_call.1} parent=0
    _
  %s6 = ssub.s32 1, %s4
  %s7 = scalar_select 0, %s6, %s4
  %s8 = sshll.u32 %s0, 4
  %s9 = int_to_ptr.vmem [resolvable:$true] %s8
  %11 = dma.vmem_to_smem %s9, 16, [#allocation5], [#allocation4]
  %12 = dma.done [#allocation4], 16
  %13 = sfence
  $region1: #{tpu_custom_call.1} parent=0
    #allocation6 [shape = 'u8[8192]{0}', space=vmem, size = 0x2000, scoped, tag = 'output window, operand 0, single buffered']
    #allocation7 [shape = 's32[1]{0}', space=sflag, size = 0x4, scoped, tag = 'scoped memory for tpu_custom_call.1']
    %14 = vsyncpa [#allocation7], 0
    // Predicated region
    $region2: #{tpu_custom_call.1} parent=1 // pred_check
      _
    $region3: #{tpu_custom_call.1} parent=1 // pred_check_branch
      %16 = sbr.rel (0) target = $region5
    $region4: #{tpu_custom_call.1} parent=1 // pred_region
      %s17 = sadd.s32 0, 0
      %s18 = smul.u32 2, %s17
      %p19 = scmp.lt.s32.totalorder %s18, 1
      %s20 = scalar_select %p19, %s18, 1
      %s21 = smul.addr %s20, 8
      %s22 = scalar_lea.vmem %s2, %s21
      %s23 = sadd.s32 0, 0
      %s24 = smul.u32 2, %s23
    $region5: #{tpu_custom_call.1} parent=1 // pred_fallthru
      _
    %s25 = sadd.s32 0, 0
    %s26 = smul.u32 2, %s25
    %p27 = scmp.lt.s32.totalorder %s26, 1
    %s28 = scalar_select %p27, %s26, 1
    %s29 = smul.addr %s28, 8
    %s30 = scalar_lea.vmem %s2, %s29
    %s31 = sadd.s32 0, 0
    %s32 = smul.u32 2, %s31
    %p33 = scmp.lt.s32.totalorder %s32, 1
    %s34 = scalar_select %p33, %s32, 1
    %s35 = smul.addr %s34, 8
    %s36 = scalar_lea.vmem %s2, %s35
    %s37 = sadd.s32 0, 0
    %s38 = smul.u32 2, %s37
    %s39 = sadd.s32 0, 0
    %s40 = smul.u32 2, %s39
    %s41 = ssub.s32 0, 0
    %s42 = ssub.s32 0, 0
    %s43 = sadd.s32 0, 0
    %p44 = scmp.eq.s32.totalorder 0, 0
    // Predicated region
    $region6: #{tpu_custom_call.1} parent=1 // pred_check
      %p45 = pneg %p44
    $region7: #{tpu_custom_call.1} parent=1 // pred_check_branch
      %47 = sbr.rel (%p45) target = $region9
    $region8: #{tpu_custom_call.1} parent=1 // pred_region
      %s48 = smul.u32 %s43, 16
      %s49 = smul.u32 0, 16
      %s50 = sld [smem:[#allocation5 + %s48]]
      %s51 = scalar_lea.vmem %s1, %s50
      %s52 = scalar_lea.vmem [#allocation2], %s49
      %p54 = scmp.lt.u32.totalorder 1, 8
      %p55 = pneg %p54
      // Predicated region
      $region10: #{tpu_custom_call.1} parent=8 // pred_check
        _
      $region11: #{tpu_custom_call.1} parent=8 // pred_check_branch
        %57 = sbr.rel (%p54) target = $region13
      $region12: #{tpu_custom_call.1} parent=8 // pred_region
        %s73 = sand.u32 1, 7
        %p74 = scmp.eq.s32.totalorder %s73, 0
        %p75 = pneg %p74
        // Predicated region
        $region25: #{tpu_custom_call.1} parent=12 // pred_check
          _
        $region26: #{tpu_custom_call.1} parent=12 // pred_check_branch
          %77 = sbr.rel (%p74) target = $region28
        $region27: #{tpu_custom_call.1} parent=12 // pred_region
          %s78 = sand.u32 1, 7
          %s79 = ssub.s32 1, %s78
          %s80 = scalar_lea.vmem %s51, %s79
          %s81 = ssub.s32 1, %s78
          %s82 = scalar_lea.vmem %s52, %s81 [#allocation2]
          %s83 = sshll.u32 1, %s78
          %s84 = ssub.s32 %s83, 1
          loop: start=0, step=1, limit=1
          $region29: #{tpu_custom_call.1} parent=27 // loop_pre_header
            _
          $region30: #{tpu_custom_call.1} parent=27 // loop_header
            %s86 = sphi 0, %s90
            %p87 = scmp.ge.s32.totalorder %s86, 1
            %s91 = sphi %s80, %s80
            %s92 = sphi %s82, %s82
          $region31: #{tpu_custom_call.1} parent=27 // loop_header_branch
            %89 = sbr.rel (%p87) target = $region35
          $region32: #{tpu_custom_call.1} parent=27 // loop_body
            %v93 = vld [vmem:[%s91] sm:%s84]
            %94 = vst [vmem:[%s92] sm:%s84] %v93
          $region33: #{tpu_custom_call.1} parent=27 // loop_footer
            %s90 = sadd.s32 1, %s86
          $region34: #{tpu_custom_call.1} parent=27 // loop_footer_branch
            %85 = sbr.rel target = $region30
          $region35: #{tpu_custom_call.1} parent=27 // loop_exit
            _
        $region28: #{tpu_custom_call.1} parent=12 // pred_fallthru
          _
      $region13: #{tpu_custom_call.1} parent=8 // pred_fallthru
        _
      // Predicated region
      $region14: #{tpu_custom_call.1} parent=8 // pred_check
        %p58 = pneg %p54
      $region15: #{tpu_custom_call.1} parent=8 // pred_check_branch
        %60 = sbr.rel (%p58) target = $region17
      $region16: #{tpu_custom_call.1} parent=8 // pred_region
        %s61 = sshll.u32 1, 1
        %s62 = ssub.s32 %s61, 1
        loop: start=0, step=1, limit=1
        $region18: #{tpu_custom_call.1} parent=16 // loop_pre_header
          _
        $region19: #{tpu_custom_call.1} parent=16 // loop_header
          %s64 = sphi 0, %s68
          %p65 = scmp.ge.s32.totalorder %s64, 1
          %s69 = sphi %s51, %s51
          %s70 = sphi %s52, %s52
        $region20: #{tpu_custom_call.1} parent=16 // loop_header_branch
          %67 = sbr.rel (%p65) target = $region24
        $region21: #{tpu_custom_call.1} parent=16 // loop_body
          %v71 = vld [vmem:[%s69] sm:%s62]
          %72 = vst [vmem:[%s70] sm:%s62] %v71
        $region22: #{tpu_custom_call.1} parent=16 // loop_footer
          %s68 = sadd.s32 1, %s64
        $region23: #{tpu_custom_call.1} parent=16 // loop_footer_branch
          %63 = sbr.rel target = $region19
        $region24: #{tpu_custom_call.1} parent=16 // loop_exit
          _
      $region17: #{tpu_custom_call.1} parent=8 // pred_fallthru
        _
      // Predicated region
      $region36: #{tpu_custom_call.1} parent=8 // pred_check
        _
      $region37: #{tpu_custom_call.1} parent=8 // pred_check_branch
        %97 = sbr.rel (0) target = $region39
      $region38: #{tpu_custom_call.1} parent=8 // pred_region
        %98 = vsyncadd [#allocation3], 16
      $region39: #{tpu_custom_call.1} parent=8 // pred_fallthru
        _
      %s99 = sadd.s32 %s48, 1
      %s100 = sld [smem:[#allocation5 + %s99]]
      %s101 = sadd.s32 %s49, 1
      %s102 = scalar_lea.vmem %s1, %s100
      %s103 = scalar_lea.vmem [#allocation2], %s101
      %p105 = scmp.lt.u32.totalorder 1, 8
      %p106 = pneg %p105
      // Predicated region
      $region40: #{tpu_custom_call.1} parent=8 // pred_check
        _
      $region41: #{tpu_custom_call.1} parent=8 // pred_check_branch
        %108 = sbr.rel (%p105) target = $region43
      $region42: #{tpu_custom_call.1} parent=8 // pred_region
        %s124 = sand.u32 1, 7
        %p125 = scmp.eq.s32.totalorder %s124, 0
        %p126 = pneg %p125
        // Predicated region
        $region55: #{tpu_custom_call.1} parent=42 // pred_check
          _
        $region56: #{tpu_custom_call.1} parent=42 // pred_check_branch
          %128 = sbr.rel (%p125) target = $region58
        $region57: #{tpu_custom_call.1} parent=42 // pred_region
          %s129 = sand.u32 1, 7
          %s130 = ssub.s32 1, %s129
          %s131 = scalar_lea.vmem %s102, %s130
          %s132 = ssub.s32 1, %s129
          %s133 = scalar_lea.vmem %s103, %s132 [#allocation2]
          %s134 = sshll.u32 1, %s129
          %s135 = ssub.s32 %s134, 1
          loop: start=0, step=1, limit=1
          $region59: #{tpu_custom_call.1} parent=57 // loop_pre_header
            _
          $region60: #{tpu_custom_call.1} parent=57 // loop_header
            %s137 = sphi 0, %s141
            %p138 = scmp.ge.s32.totalorder %s137, 1
            %s142 = sphi %s131, %s131
            %s143 = sphi %s133, %s133
          $region61: #{tpu_custom_call.1} parent=57 // loop_header_branch
            %140 = sbr.rel (%p138) target = $region65
          $region62: #{tpu_custom_call.1} parent=57 // loop_body
            %v144 = vld [vmem:[%s142] sm:%s135]
            %145 = vst [vmem:[%s143] sm:%s135] %v144
          $region63: #{tpu_custom_call.1} parent=57 // loop_footer
            %s141 = sadd.s32 1, %s137
          $region64: #{tpu_custom_call.1} parent=57 // loop_footer_branch
            %136 = sbr.rel target = $region60
          $region65: #{tpu_custom_call.1} parent=57 // loop_exit
            _
        $region58: #{tpu_custom_call.1} parent=42 // pred_fallthru
          _
      $region43: #{tpu_custom_call.1} parent=8 // pred_fallthru
        _
      // Predicated region
      $region44: #{tpu_custom_call.1} parent=8 // pred_check
        %p109 = pneg %p105
      $region45: #{tpu_custom_call.1} parent=8 // pred_check_branch
        %111 = sbr.rel (%p109) target = $region47
      $region46: #{tpu_custom_call.1} parent=8 // pred_region
        %s112 = sshll.u32 1, 1
        %s113 = ssub.s32 %s112, 1
        loop: start=0, step=1, limit=1
        $region48: #{tpu_custom_call.1} parent=46 // loop_pre_header
          _
        $region49: #{tpu_custom_call.1} parent=46 // loop_header
          %s115 = sphi 0, %s119
          %p116 = scmp.ge.s32.totalorder %s115, 1
          %s120 = sphi %s102, %s102
          %s121 = sphi %s103, %s103
        $region50: #{tpu_custom_call.1} parent=46 // loop_header_branch
          %118 = sbr.rel (%p116) target = $region54
        $region51: #{tpu_custom_call.1} parent=46 // loop_body
          %v122 = vld [vmem:[%s120] sm:%s113]
          %123 = vst [vmem:[%s121] sm:%s113] %v122
        $region52: #{tpu_custom_call.1} parent=46 // loop_footer
          %s119 = sadd.s32 1, %s115
        $region53: #{tpu_custom_call.1} parent=46 // loop_footer_branch
          %114 = sbr.rel target = $region49
        $region54: #{tpu_custom_call.1} parent=46 // loop_exit
          _
      $region47: #{tpu_custom_call.1} parent=8 // pred_fallthru
        _
      // Predicated region
      $region66: #{tpu_custom_call.1} parent=8 // pred_check
        _
      $region67: #{tpu_custom_call.1} parent=8 // pred_check_branch
        %148 = sbr.rel (0) target = $region69
      $region68: #{tpu_custom_call.1} parent=8 // pred_region
        %149 = vsyncadd [#allocation3], 16
      $region69: #{tpu_custom_call.1} parent=8 // pred_fallthru
        _
      %s150 = sadd.s32 %s48, 2
      %s151 = sld [smem:[#allocation5 + %s150]]
      %s152 = sadd.s32 %s49, 2
      %s153 = scalar_lea.vmem %s1, %s151
      %s154 = scalar_lea.vmem [#allocation2], %s152
      %p156 = scmp.lt.u32.totalorder 1, 8
      %p157 = pneg %p156
      // Predicated region
      $region70: #{tpu_custom_call.1} parent=8 // pred_check
        _
      $region71: #{tpu_custom_call.1} parent=8 // pred_check_branch
        %159 = sbr.rel (%p156) target = $region73
      $region72: #{tpu_custom_call.1} parent=8 // pred_region
        %s175 = sand.u32 1, 7
        %p176 = scmp.eq.s32.totalorder %s175, 0
        %p177 = pneg %p176
        // Predicated region
        $region85: #{tpu_custom_call.1} parent=72 // pred_check
          _
        $region86: #{tpu_custom_call.1} parent=72 // pred_check_branch
          %179 = sbr.rel (%p176) target = $region88
        $region87: #{tpu_custom_call.1} parent=72 // pred_region
          %s180 = sand.u32 1, 7
          %s181 = ssub.s32 1, %s180
          %s182 = scalar_lea.vmem %s153, %s181
          %s183 = ssub.s32 1, %s180
          %s184 = scalar_lea.vmem %s154, %s183 [#allocation2]
          %s185 = sshll.u32 1, %s180
          %s186 = ssub.s32 %s185, 1
          loop: start=0, step=1, limit=1
          $region89: #{tpu_custom_call.1} parent=87 // loop_pre_header
            _
          $region90: #{tpu_custom_call.1} parent=87 // loop_header
            %s188 = sphi 0, %s192
            %p189 = scmp.ge.s32.totalorder %s188, 1
            %s193 = sphi %s182, %s182
            %s194 = sphi %s184, %s184
          $region91: #{tpu_custom_call.1} parent=87 // loop_header_branch
            %191 = sbr.rel (%p189) target = $region95
          $region92: #{tpu_custom_call.1} parent=87 // loop_body
            %v195 = vld [vmem:[%s193] sm:%s186]
            %196 = vst [vmem:[%s194] sm:%s186] %v195
          $region93: #{tpu_custom_call.1} parent=87 // loop_footer
            %s192 = sadd.s32 1, %s188
          $region94: #{tpu_custom_call.1} parent=87 // loop_footer_branch
            %187 = sbr.rel target = $region90
          $region95: #{tpu_custom_call.1} parent=87 // loop_exit
            _
        $region88: #{tpu_custom_call.1} parent=72 // pred_fallthru
          _
      $region73: #{tpu_custom_call.1} parent=8 // pred_fallthru
        _
      // Predicated region
      $region74: #{tpu_custom_call.1} parent=8 // pred_check
        %p160 = pneg %p156
      $region75: #{tpu_custom_call.1} parent=8 // pred_check_branch
        %162 = sbr.rel (%p160) target = $region77
      $region76: #{tpu_custom_call.1} parent=8 // pred_region
        %s163 = sshll.u32 1, 1
        %s164 = ssub.s32 %s163, 1
        loop: start=0, step=1, limit=1
        $region78: #{tpu_custom_call.1} parent=76 // loop_pre_header
          _
        $region79: #{tpu_custom_call.1} parent=76 // loop_header
          %s166 = sphi 0, %s170
          %p167 = scmp.ge.s32.totalorder %s166, 1
          %s171 = sphi %s153, %s153
          %s172 = sphi %s154, %s154
        $region80: #{tpu_custom_call.1} parent=76 // loop_header_branch
          %169 = sbr.rel (%p167) target = $region84
        $region81: #{tpu_custom_call.1} parent=76 // loop_body
          %v173 = vld [vmem:[%s171] sm:%s164]
          %174 = vst [vmem:[%s172] sm:%s164] %v173
        $region82: #{tpu_custom_call.1} parent=76 // loop_footer
          %s170 = sadd.s32 1, %s166
        $region83: #{tpu_custom_call.1} parent=76 // loop_footer_branch
          %165 = sbr.rel target = $region79
        $region84: #{tpu_custom_call.1} parent=76 // loop_exit
          _
      $region77: #{tpu_custom_call.1} parent=8 // pred_fallthru
        _
      // Predicated region
      $region96: #{tpu_custom_call.1} parent=8 // pred_check
        _
      $region97: #{tpu_custom_call.1} parent=8 // pred_check_branch
        %199 = sbr.rel (0) target = $region99
      $region98: #{tpu_custom_call.1} parent=8 // pred_region
        %200 = vsyncadd [#allocation3], 16
      $region99: #{tpu_custom_call.1} parent=8 // pred_fallthru
        _
      %s201 = sadd.s32 %s48, 3
      %s202 = sld [smem:[#allocation5 + %s201]]
      %s203 = sadd.s32 %s49, 3
      %s204 = scalar_lea.vmem %s1, %s202
      %s205 = scalar_lea.vmem [#allocation2], %s203
      %p207 = scmp.lt.u32.totalorder 1, 8
      %p208 = pneg %p207
      // Predicated region
      $region100: #{tpu_custom_call.1} parent=8 // pred_check
        _
      $region101: #{tpu_custom_call.1} parent=8 // pred_check_branch
        %210 = sbr.rel (%p207) target = $region103
      $region102: #{tpu_custom_call.1} parent=8 // pred_region
        %s226 = sand.u32 1, 7
        %p227 = scmp.eq.s32.totalorder %s226, 0
        %p228 = pneg %p227
        // Predicated region
        $region115: #{tpu_custom_call.1} parent=102 // pred_check
          _
        $region116: #{tpu_custom_call.1} parent=102 // pred_check_branch
          %230 = sbr.rel (%p227) target = $region118
        $region117: #{tpu_custom_call.1} parent=102 // pred_region
          %s231 = sand.u32 1, 7
          %s232 = ssub.s32 1, %s231
          %s233 = scalar_lea.vmem %s204, %s232
          %s234 = ssub.s32 1, %s231
          %s235 = scalar_lea.vmem %s205, %s234 [#allocation2]
          %s236 = sshll.u32 1, %s231
          %s237 = ssub.s32 %s236, 1
          loop: start=0, step=1, limit=1
          $region119: #{tpu_custom_call.1} parent=117 // loop_pre_header
            _
          $region120: #{tpu_custom_call.1} parent=117 // loop_header
            %s239 = sphi 0, %s243
            %p240 = scmp.ge.s32.totalorder %s239, 1
            %s244 = sphi %s233, %s233
            %s245 = sphi %s235, %s235
          $region121: #{tpu_custom_call.1} parent=117 // loop_header_branch
            %242 = sbr.rel (%p240) target = $region125
          $region122: #{tpu_custom_call.1} parent=117 // loop_body
            %v246 = vld [vmem:[%s244] sm:%s237]
            %247 = vst [vmem:[%s245] sm:%s237] %v246
          $region123: #{tpu_custom_call.1} parent=117 // loop_footer
            %s243 = sadd.s32 1, %s239
          $region124: #{tpu_custom_call.1} parent=117 // loop_footer_branch
            %238 = sbr.rel target = $region120
          $region125: #{tpu_custom_call.1} parent=117 // loop_exit
            _
        $region118: #{tpu_custom_call.1} parent=102 // pred_fallthru
          _
      $region103: #{tpu_custom_call.1} parent=8 // pred_fallthru
        _
      // Predicated region
      $region104: #{tpu_custom_call.1} parent=8 // pred_check
        %p211 = pneg %p207
      $region105: #{tpu_custom_call.1} parent=8 // pred_check_branch
        %213 = sbr.rel (%p211) target = $region107
      $region106: #{tpu_custom_call.1} parent=8 // pred_region
        %s214 = sshll.u32 1, 1
        %s215 = ssub.s32 %s214, 1
        loop: start=0, step=1, limit=1
        $region108: #{tpu_custom_call.1} parent=106 // loop_pre_header
          _
        $region109: #{tpu_custom_call.1} parent=106 // loop_header
          %s217 = sphi 0, %s221
          %p218 = scmp.ge.s32.totalorder %s217, 1
          %s222 = sphi %s204, %s204
          %s223 = sphi %s205, %s205
        $region110: #{tpu_custom_call.1} parent=106 // loop_header_branch
          %220 = sbr.rel (%p218) target = $region114
        $region111: #{tpu_custom_call.1} parent=106 // loop_body
          %v224 = vld [vmem:[%s222] sm:%s215]
          %225 = vst [vmem:[%s223] sm:%s215] %v224
        $region112: #{tpu_custom_call.1} parent=106 // loop_footer
          %s221 = sadd.s32 1, %s217
        $region113: #{tpu_custom_call.1} parent=106 // loop_footer_branch
          %216 = sbr.rel target = $region109
        $region114: #{tpu_custom_call.1} parent=106 // loop_exit
          _
      $region107: #{tpu_custom_call.1} parent=8 // pred_fallthru
        _
      // Predicated region
      $region126: #{tpu_custom_call.1} parent=8 // pred_check
        _
      $region127: #{tpu_custom_call.1} parent=8 // pred_check_branch
        %250 = sbr.rel (0) target = $region129
      $region128: #{tpu_custom_call.1} parent=8 // pred_region
        %251 = vsyncadd [#allocation3], 16
      $region129: #{tpu_custom_call.1} parent=8 // pred_fallthru
        _
      %s252 = sadd.s32 %s48, 4
      %s253 = sld [smem:[#allocation5 + %s252]]
      %s254 = sadd.s32 %s49, 4
      %s255 = scalar_lea.vmem %s1, %s253
      %s256 = scalar_lea.vmem [#allocation2], %s254
      %p258 = scmp.lt.u32.totalorder 1, 8
      %p259 = pneg %p258
      // Predicated region
      $region130: #{tpu_custom_call.1} parent=8 // pred_check
        _
      $region131: #{tpu_custom_call.1} parent=8 // pred_check_branch
        %261 = sbr.rel (%p258) target = $region133
      $region132: #{tpu_custom_call.1} parent=8 // pred_region
        %s277 = sand.u32 1, 7
        %p278 = scmp.eq.s32.totalorder %s277, 0
        %p279 = pneg %p278
        // Predicated region
        $region145: #{tpu_custom_call.1} parent=132 // pred_check
          _
        $region146: #{tpu_custom_call.1} parent=132 // pred_check_branch
          %281 = sbr.rel (%p278) target = $region148
        $region147: #{tpu_custom_call.1} parent=132 // pred_region
          %s282 = sand.u32 1, 7
          %s283 = ssub.s32 1, %s282
          %s284 = scalar_lea.vmem %s255, %s283
          %s285 = ssub.s32 1, %s282
          %s286 = scalar_lea.vmem %s256, %s285 [#allocation2]
          %s287 = sshll.u32 1, %s282
          %s288 = ssub.s32 %s287, 1
          loop: start=0, step=1, limit=1
          $region149: #{tpu_custom_call.1} parent=147 // loop_pre_header
            _
          $region150: #{tpu_custom_call.1} parent=147 // loop_header
            %s290 = sphi 0, %s294
            %p291 = scmp.ge.s32.totalorder %s290, 1
            %s295 = sphi %s284, %s284
            %s296 = sphi %s286, %s286
          $region151: #{tpu_custom_call.1} parent=147 // loop_header_branch
            %293 = sbr.rel (%p291) target = $region155
          $region152: #{tpu_custom_call.1} parent=147 // loop_body
            %v297 = vld [vmem:[%s295] sm:%s288]
            %298 = vst [vmem:[%s296] sm:%s288] %v297
          $region153: #{tpu_custom_call.1} parent=147 // loop_footer
            %s294 = sadd.s32 1, %s290
          $region154: #{tpu_custom_call.1} parent=147 // loop_footer_branch
            %289 = sbr.rel target = $region150
          $region155: #{tpu_custom_call.1} parent=147 // loop_exit
            _
        $region148: #{tpu_custom_call.1} parent=132 // pred_fallthru
          _
      $region133: #{tpu_custom_call.1} parent=8 // pred_fallthru
        _
      // Predicated region
      $region134: #{tpu_custom_call.1} parent=8 // pred_check
        %p262 = pneg %p258
      $region135: #{tpu_custom_call.1} parent=8 // pred_check_branch
        %264 = sbr.rel (%p262) target = $region137
      $region136: #{tpu_custom_call.1} parent=8 // pred_region
        %s265 = sshll.u32 1, 1
        %s266 = ssub.s32 %s265, 1
        loop: start=0, step=1, limit=1
        $region138: #{tpu_custom_call.1} parent=136 // loop_pre_header
          _
        $region139: #{tpu_custom_call.1} parent=136 // loop_header
          %s268 = sphi 0, %s272
          %p269 = scmp.ge.s32.totalorder %s268, 1
          %s273 = sphi %s255, %s255
          %s274 = sphi %s256, %s256
        $region140: #{tpu_custom_call.1} parent=136 // loop_header_branch
          %271 = sbr.rel (%p269) target = $region144
        $region141: #{tpu_custom_call.1} parent=136 // loop_body
          %v275 = vld [vmem:[%s273] sm:%s266]
          %276 = vst [vmem:[%s274] sm:%s266] %v275
        $region142: #{tpu_custom_call.1} parent=136 // loop_footer
          %s272 = sadd.s32 1, %s268
        $region143: #{tpu_custom_call.1} parent=136 // loop_footer_branch
          %267 = sbr.rel target = $region139
        $region144: #{tpu_custom_call.1} parent=136 // loop_exit
          _
      $region137: #{tpu_custom_call.1} parent=8 // pred_fallthru
        _
      // Predicated region
      $region156: #{tpu_custom_call.1} parent=8 // pred_check
        _
      $region157: #{tpu_custom_call.1} parent=8 // pred_check_branch
        %301 = sbr.rel (0) target = $region159
      $region158: #{tpu_custom_call.1} parent=8 // pred_region
        %302 = vsyncadd [#allocation3], 16
      $region159: #{tpu_custom_call.1} parent=8 // pred_fallthru
        _
      %s303 = sadd.s32 %s48, 5
      %s304 = sld [smem:[#allocation5 + %s303]]
      %s305 = sadd.s32 %s49, 5
      %s306 = scalar_lea.vmem %s1, %s304
      %s307 = scalar_lea.vmem [#allocation2], %s305
      %p309 = scmp.lt.u32.totalorder 1, 8
      %p310 = pneg %p309
      // Predicated region
      $region160: #{tpu_custom_call.1} parent=8 // pred_check
        _
      $region161: #{tpu_custom_call.1} parent=8 // pred_check_branch
        %312 = sbr.rel (%p309) target = $region163
      $region162: #{tpu_custom_call.1} parent=8 // pred_region
        %s328 = sand.u32 1, 7
        %p329 = scmp.eq.s32.totalorder %s328, 0
        %p330 = pneg %p329
        // Predicated region
        $region175: #{tpu_custom_call.1} parent=162 // pred_check
          _
        $region176: #{tpu_custom_call.1} parent=162 // pred_check_branch
          %332 = sbr.rel (%p329) target = $region178
        $region177: #{tpu_custom_call.1} parent=162 // pred_region
          %s333 = sand.u32 1, 7
          %s334 = ssub.s32 1, %s333
          %s335 = scalar_lea.vmem %s306, %s334
          %s336 = ssub.s32 1, %s333
          %s337 = scalar_lea.vmem %s307, %s336 [#allocation2]
          %s338 = sshll.u32 1, %s333
          %s339 = ssub.s32 %s338, 1
          loop: start=0, step=1, limit=1
          $region179: #{tpu_custom_call.1} parent=177 // loop_pre_header
            _
          $region180: #{tpu_custom_call.1} parent=177 // loop_header
            %s341 = sphi 0, %s345
            %p342 = scmp.ge.s32.totalorder %s341, 1
            %s346 = sphi %s335, %s335
            %s347 = sphi %s337, %s337
          $region181: #{tpu_custom_call.1} parent=177 // loop_header_branch
            %344 = sbr.rel (%p342) target = $region185
          $region182: #{tpu_custom_call.1} parent=177 // loop_body
            %v348 = vld [vmem:[%s346] sm:%s339]
            %349 = vst [vmem:[%s347] sm:%s339] %v348
          $region183: #{tpu_custom_call.1} parent=177 // loop_footer
            %s345 = sadd.s32 1, %s341
          $region184: #{tpu_custom_call.1} parent=177 // loop_footer_branch
            %340 = sbr.rel target = $region180
          $region185: #{tpu_custom_call.1} parent=177 // loop_exit
            _
        $region178: #{tpu_custom_call.1} parent=162 // pred_fallthru
          _
      $region163: #{tpu_custom_call.1} parent=8 // pred_fallthru
        _
      // Predicated region
      $region164: #{tpu_custom_call.1} parent=8 // pred_check
        %p313 = pneg %p309
      $region165: #{tpu_custom_call.1} parent=8 // pred_check_branch
        %315 = sbr.rel (%p313) target = $region167
      $region166: #{tpu_custom_call.1} parent=8 // pred_region
        %s316 = sshll.u32 1, 1
        %s317 = ssub.s32 %s316, 1
        loop: start=0, step=1, limit=1
        $region168: #{tpu_custom_call.1} parent=166 // loop_pre_header
          _
        $region169: #{tpu_custom_call.1} parent=166 // loop_header
          %s319 = sphi 0, %s323
          %p320 = scmp.ge.s32.totalorder %s319, 1
          %s324 = sphi %s306, %s306
          %s325 = sphi %s307, %s307
        $region170: #{tpu_custom_call.1} parent=166 // loop_header_branch
          %322 = sbr.rel (%p320) target = $region174
        $region171: #{tpu_custom_call.1} parent=166 // loop_body
          %v326 = vld [vmem:[%s324] sm:%s317]
          %327 = vst [vmem:[%s325] sm:%s317] %v326
        $region172: #{tpu_custom_call.1} parent=166 // loop_footer
          %s323 = sadd.s32 1, %s319
        $region173: #{tpu_custom_call.1} parent=166 // loop_footer_branch
          %318 = sbr.rel target = $region169
        $region174: #{tpu_custom_call.1} parent=166 // loop_exit
          _
      $region167: #{tpu_custom_call.1} parent=8 // pred_fallthru
        _
      // Predicated region
      $region186: #{tpu_custom_call.1} parent=8 // pred_check
        _
      $region187: #{tpu_custom_call.1} parent=8 // pred_check_branch
        %352 = sbr.rel (0) target = $region189
      $region188: #{tpu_custom_call.1} parent=8 // pred_region
        %353 = vsyncadd [#allocation3], 16
      $region189: #{tpu_custom_call.1} parent=8 // pred_fallthru
        _
      %s354 = sadd.s32 %s48, 6
      %s355 = sld [smem:[#allocation5 + %s354]]
      %s356 = sadd.s32 %s49, 6
      %s357 = scalar_lea.vmem %s1, %s355
      %s358 = scalar_lea.vmem [#allocation2], %s356
      %p360 = scmp.lt.u32.totalorder 1, 8
      %p361 = pneg %p360
      // Predicated region
      $region190: #{tpu_custom_call.1} parent=8 // pred_check
        _
      $region191: #{tpu_custom_call.1} parent=8 // pred_check_branch
        %363 = sbr.rel (%p360) target = $region193
      $region192: #{tpu_custom_call.1} parent=8 // pred_region
        %s379 = sand.u32 1, 7
        %p380 = scmp.eq.s32.totalorder %s379, 0
        %p381 = pneg %p380
        // Predicated region
        $region205: #{tpu_custom_call.1} parent=192 // pred_check
          _
        $region206: #{tpu_custom_call.1} parent=192 // pred_check_branch
          %383 = sbr.rel (%p380) target = $region208
        $region207: #{tpu_custom_call.1} parent=192 // pred_region
          %s384 = sand.u32 1, 7
          %s385 = ssub.s32 1, %s384
          %s386 = scalar_lea.vmem %s357, %s385
          %s387 = ssub.s32 1, %s384
          %s388 = scalar_lea.vmem %s358, %s387 [#allocation2]
          %s389 = sshll.u32 1, %s384
          %s390 = ssub.s32 %s389, 1
          loop: start=0, step=1, limit=1
          $region209: #{tpu_custom_call.1} parent=207 // loop_pre_header
            _
          $region210: #{tpu_custom_call.1} parent=207 // loop_header
            %s392 = sphi 0, %s396
            %p393 = scmp.ge.s32.totalorder %s392, 1
            %s397 = sphi %s386, %s386
            %s398 = sphi %s388, %s388
          $region211: #{tpu_custom_call.1} parent=207 // loop_header_branch
            %395 = sbr.rel (%p393) target = $region215
          $region212: #{tpu_custom_call.1} parent=207 // loop_body
            %v399 = vld [vmem:[%s397] sm:%s390]
            %400 = vst [vmem:[%s398] sm:%s390] %v399
          $region213: #{tpu_custom_call.1} parent=207 // loop_footer
            %s396 = sadd.s32 1, %s392
          $region214: #{tpu_custom_call.1} parent=207 // loop_footer_branch
            %391 = sbr.rel target = $region210
          $region215: #{tpu_custom_call.1} parent=207 // loop_exit
            _
        $region208: #{tpu_custom_call.1} parent=192 // pred_fallthru
          _
      $region193: #{tpu_custom_call.1} parent=8 // pred_fallthru
        _
      // Predicated region
      $region194: #{tpu_custom_call.1} parent=8 // pred_check
        %p364 = pneg %p360
      $region195: #{tpu_custom_call.1} parent=8 // pred_check_branch
        %366 = sbr.rel (%p364) target = $region197
      $region196: #{tpu_custom_call.1} parent=8 // pred_region
        %s367 = sshll.u32 1, 1
        %s368 = ssub.s32 %s367, 1
        loop: start=0, step=1, limit=1
        $region198: #{tpu_custom_call.1} parent=196 // loop_pre_header
          _
        $region199: #{tpu_custom_call.1} parent=196 // loop_header
          %s370 = sphi 0, %s374
          %p371 = scmp.ge.s32.totalorder %s370, 1
          %s375 = sphi %s357, %s357
          %s376 = sphi %s358, %s358
        $region200: #{tpu_custom_call.1} parent=196 // loop_header_branch
          %373 = sbr.rel (%p371) target = $region204
        $region201: #{tpu_custom_call.1} parent=196 // loop_body
          %v377 = vld [vmem:[%s375] sm:%s368]
          %378 = vst [vmem:[%s376] sm:%s368] %v377
        $region202: #{tpu_custom_call.1} parent=196 // loop_footer
          %s374 = sadd.s32 1, %s370
        $region203: #{tpu_custom_call.1} parent=196 // loop_footer_branch
          %369 = sbr.rel target = $region199
        $region204: #{tpu_custom_call.1} parent=196 // loop_exit
          _
      $region197: #{tpu_custom_call.1} parent=8 // pred_fallthru
        _
      // Predicated region
      $region216: #{tpu_custom_call.1} parent=8 // pred_check
        _
      $region217: #{tpu_custom_call.1} parent=8 // pred_check_branch
        %403 = sbr.rel (0) target = $region219
      $region218: #{tpu_custom_call.1} parent=8 // pred_region
        %404 = vsyncadd [#allocation3], 16
      $region219: #{tpu_custom_call.1} parent=8 // pred_fallthru
        _
      %s405 = sadd.s32 %s48, 7
      %s406 = sld [smem:[#allocation5 + %s405]]
      %s407 = sadd.s32 %s49, 7
      %s408 = scalar_lea.vmem %s1, %s406
      %s409 = scalar_lea.vmem [#allocation2], %s407
      %p411 = scmp.lt.u32.totalorder 1, 8
      %p412 = pneg %p411
      // Predicated region
      $region220: #{tpu_custom_call.1} parent=8 // pred_check
        _
      $region221: #{tpu_custom_call.1} parent=8 // pred_check_branch
        %414 = sbr.rel (%p411) target = $region223
      $region222: #{tpu_custom_call.1} parent=8 // pred_region
        %s430 = sand.u32 1, 7
        %p431 = scmp.eq.s32.totalorder %s430, 0
        %p432 = pneg %p431
        // Predicated region
        $region235: #{tpu_custom_call.1} parent=222 // pred_check
          _
        $region236: #{tpu_custom_call.1} parent=222 // pred_check_branch
          %434 = sbr.rel (%p431) target = $region238
        $region237: #{tpu_custom_call.1} parent=222 // pred_region
          %s435 = sand.u32 1, 7
          %s436 = ssub.s32 1, %s435
          %s437 = scalar_lea.vmem %s408, %s436
          %s438 = ssub.s32 1, %s435
          %s439 = scalar_lea.vmem %s409, %s438 [#allocation2]
          %s440 = sshll.u32 1, %s435
          %s441 = ssub.s32 %s440, 1
          loop: start=0, step=1, limit=1
          $region239: #{tpu_custom_call.1} parent=237 // loop_pre_header
            _
          $region240: #{tpu_custom_call.1} parent=237 // loop_header
            %s443 = sphi 0, %s447
            %p444 = scmp.ge.s32.totalorder %s443, 1
            %s448 = sphi %s437, %s437
            %s449 = sphi %s439, %s439
          $region241: #{tpu_custom_call.1} parent=237 // loop_header_branch
            %446 = sbr.rel (%p444) target = $region245
          $region242: #{tpu_custom_call.1} parent=237 // loop_body
            %v450 = vld [vmem:[%s448] sm:%s441]
            %451 = vst [vmem:[%s449] sm:%s441] %v450
          $region243: #{tpu_custom_call.1} parent=237 // loop_footer
            %s447 = sadd.s32 1, %s443
          $region244: #{tpu_custom_call.1} parent=237 // loop_footer_branch
            %442 = sbr.rel target = $region240
          $region245: #{tpu_custom_call.1} parent=237 // loop_exit
            _
        $region238: #{tpu_custom_call.1} parent=222 // pred_fallthru
          _
      $region223: #{tpu_custom_call.1} parent=8 // pred_fallthru
        _
      // Predicated region
      $region224: #{tpu_custom_call.1} parent=8 // pred_check
        %p415 = pneg %p411
      $region225: #{tpu_custom_call.1} parent=8 // pred_check_branch
        %417 = sbr.rel (%p415) target = $region227
      $region226: #{tpu_custom_call.1} parent=8 // pred_region
        %s418 = sshll.u32 1, 1
        %s419 = ssub.s32 %s418, 1
        loop: start=0, step=1, limit=1
        $region228: #{tpu_custom_call.1} parent=226 // loop_pre_header
          _
        $region229: #{tpu_custom_call.1} parent=226 // loop_header
          %s421 = sphi 0, %s425
          %p422 = scmp.ge.s32.totalorder %s421, 1
          %s426 = sphi %s408, %s408
          %s427 = sphi %s409, %s409
        $region230: #{tpu_custom_call.1} parent=226 // loop_header_branch
          %424 = sbr.rel (%p422) target = $region234
        $region231: #{tpu_custom_call.1} parent=226 // loop_body
          %v428 = vld [vmem:[%s426] sm:%s419]
          %429 = vst [vmem:[%s427] sm:%s419] %v428
        $region232: #{tpu_custom_call.1} parent=226 // loop_footer
          %s425 = sadd.s32 1, %s421
        $region233: #{tpu_custom_call.1} parent=226 // loop_footer_branch
          %420 = sbr.rel target = $region229
        $region234: #{tpu_custom_call.1} parent=226 // loop_exit
          _
      $region227: #{tpu_custom_call.1} parent=8 // pred_fallthru
        _
      // Predicated region
      $region246: #{tpu_custom_call.1} parent=8 // pred_check
        _
      $region247: #{tpu_custom_call.1} parent=8 // pred_check_branch
        %454 = sbr.rel (0) target = $region249
      $region248: #{tpu_custom_call.1} parent=8 // pred_region
        %455 = vsyncadd [#allocation3], 16
      $region249: #{tpu_custom_call.1} parent=8 // pred_fallthru
        _
      %s456 = sadd.s32 %s48, 8
      %s457 = sld [smem:[#allocation5 + %s456]]
      %s458 = sadd.s32 %s49, 8
      %s459 = scalar_lea.vmem %s1, %s457
      %s460 = scalar_lea.vmem [#allocation2], %s458
      %p462 = scmp.lt.u32.totalorder 1, 8
      %p463 = pneg %p462
      // Predicated region
      $region250: #{tpu_custom_call.1} parent=8 // pred_check
        _
      $region251: #{tpu_custom_call.1} parent=8 // pred_check_branch
        %465 = sbr.rel (%p462) target = $region253
      $region252: #{tpu_custom_call.1} parent=8 // pred_region
        %s481 = sand.u32 1, 7
        %p482 = scmp.eq.s32.totalorder %s481, 0
        %p483 = pneg %p482
        // Predicated region
        $region265: #{tpu_custom_call.1} parent=252 // pred_check
          _
        $region266: #{tpu_custom_call.1} parent=252 // pred_check_branch
          %485 = sbr.rel (%p482) target = $region268
        $region267: #{tpu_custom_call.1} parent=252 // pred_region
          %s486 = sand.u32 1, 7
          %s487 = ssub.s32 1, %s486
          %s488 = scalar_lea.vmem %s459, %s487
          %s489 = ssub.s32 1, %s486
          %s490 = scalar_lea.vmem %s460, %s489 [#allocation2]
          %s491 = sshll.u32 1, %s486
          %s492 = ssub.s32 %s491, 1
          loop: start=0, step=1, limit=1
          $region269: #{tpu_custom_call.1} parent=267 // loop_pre_header
            _
          $region270: #{tpu_custom_call.1} parent=267 // loop_header
            %s494 = sphi 0, %s498
            %p495 = scmp.ge.s32.totalorder %s494, 1
            %s499 = sphi %s488, %s488
            %s500 = sphi %s490, %s490
          $region271: #{tpu_custom_call.1} parent=267 // loop_header_branch
            %497 = sbr.rel (%p495) target = $region275
          $region272: #{tpu_custom_call.1} parent=267 // loop_body
            %v501 = vld [vmem:[%s499] sm:%s492]
            %502 = vst [vmem:[%s500] sm:%s492] %v501
          $region273: #{tpu_custom_call.1} parent=267 // loop_footer
            %s498 = sadd.s32 1, %s494
          $region274: #{tpu_custom_call.1} parent=267 // loop_footer_branch
            %493 = sbr.rel target = $region270
          $region275: #{tpu_custom_call.1} parent=267 // loop_exit
            _
        $region268: #{tpu_custom_call.1} parent=252 // pred_fallthru
          _
      $region253: #{tpu_custom_call.1} parent=8 // pred_fallthru
        _
      // Predicated region
      $region254: #{tpu_custom_call.1} parent=8 // pred_check
        %p466 = pneg %p462
      $region255: #{tpu_custom_call.1} parent=8 // pred_check_branch
        %468 = sbr.rel (%p466) target = $region257
      $region256: #{tpu_custom_call.1} parent=8 // pred_region
        %s469 = sshll.u32 1, 1
        %s470 = ssub.s32 %s469, 1
        loop: start=0, step=1, limit=1
        $region258: #{tpu_custom_call.1} parent=256 // loop_pre_header
          _
        $region259: #{tpu_custom_call.1} parent=256 // loop_header
          %s472 = sphi 0, %s476
          %p473 = scmp.ge.s32.totalorder %s472, 1
          %s477 = sphi %s459, %s459
          %s478 = sphi %s460, %s460
        $region260: #{tpu_custom_call.1} parent=256 // loop_header_branch
          %475 = sbr.rel (%p473) target = $region264
        $region261: #{tpu_custom_call.1} parent=256 // loop_body
          %v479 = vld [vmem:[%s477] sm:%s470]
          %480 = vst [vmem:[%s478] sm:%s470] %v479
        $region262: #{tpu_custom_call.1} parent=256 // loop_footer
          %s476 = sadd.s32 1, %s472
        $region263: #{tpu_custom_call.1} parent=256 // loop_footer_branch
          %471 = sbr.rel target = $region259
        $region264: #{tpu_custom_call.1} parent=256 // loop_exit
          _
      $region257: #{tpu_custom_call.1} parent=8 // pred_fallthru
        _
      // Predicated region
      $region276: #{tpu_custom_call.1} parent=8 // pred_check
        _
      $region277: #{tpu_custom_call.1} parent=8 // pred_check_branch
        %505 = sbr.rel (0) target = $region279
      $region278: #{tpu_custom_call.1} parent=8 // pred_region
        %506 = vsyncadd [#allocation3], 16
      $region279: #{tpu_custom_call.1} parent=8 // pred_fallthru
        _
      %s507 = sadd.s32 %s48, 9
      %s508 = sld [smem:[#allocation5 + %s507]]
      %s509 = sadd.s32 %s49, 9
      %s510 = scalar_lea.vmem %s1, %s508
      %s511 = scalar_lea.vmem [#allocation2], %s509
      %p513 = scmp.lt.u32.totalorder 1, 8
      %p514 = pneg %p513
      // Predicated region
      $region280: #{tpu_custom_call.1} parent=8 // pred_check
        _
      $region281: #{tpu_custom_call.1} parent=8 // pred_check_branch
        %516 = sbr.rel (%p513) target = $region283
      $region282: #{tpu_custom_call.1} parent=8 // pred_region
        %s532 = sand.u32 1, 7
        %p533 = scmp.eq.s32.totalorder %s532, 0
        %p534 = pneg %p533
        // Predicated region
        $region295: #{tpu_custom_call.1} parent=282 // pred_check
          _
        $region296: #{tpu_custom_call.1} parent=282 // pred_check_branch
          %536 = sbr.rel (%p533) target = $region298
        $region297: #{tpu_custom_call.1} parent=282 // pred_region
          %s537 = sand.u32 1, 7
          %s538 = ssub.s32 1, %s537
          %s539 = scalar_lea.vmem %s510, %s538
          %s540 = ssub.s32 1, %s537
          %s541 = scalar_lea.vmem %s511, %s540 [#allocation2]
          %s542 = sshll.u32 1, %s537
          %s543 = ssub.s32 %s542, 1
          loop: start=0, step=1, limit=1
          $region299: #{tpu_custom_call.1} parent=297 // loop_pre_header
            _
          $region300: #{tpu_custom_call.1} parent=297 // loop_header
            %s545 = sphi 0, %s549
            %p546 = scmp.ge.s32.totalorder %s545, 1
            %s550 = sphi %s539, %s539
            %s551 = sphi %s541, %s541
          $region301: #{tpu_custom_call.1} parent=297 // loop_header_branch
            %548 = sbr.rel (%p546) target = $region305
          $region302: #{tpu_custom_call.1} parent=297 // loop_body
            %v552 = vld [vmem:[%s550] sm:%s543]
            %553 = vst [vmem:[%s551] sm:%s543] %v552
          $region303: #{tpu_custom_call.1} parent=297 // loop_footer
            %s549 = sadd.s32 1, %s545
          $region304: #{tpu_custom_call.1} parent=297 // loop_footer_branch
            %544 = sbr.rel target = $region300
          $region305: #{tpu_custom_call.1} parent=297 // loop_exit
            _
        $region298: #{tpu_custom_call.1} parent=282 // pred_fallthru
          _
      $region283: #{tpu_custom_call.1} parent=8 // pred_fallthru
        _
      // Predicated region
      $region284: #{tpu_custom_call.1} parent=8 // pred_check
        %p517 = pneg %p513
      $region285: #{tpu_custom_call.1} parent=8 // pred_check_branch
        %519 = sbr.rel (%p517) target = $region287
      $region286: #{tpu_custom_call.1} parent=8 // pred_region
        %s520 = sshll.u32 1, 1
        %s521 = ssub.s32 %s520, 1
        loop: start=0, step=1, limit=1
        $region288: #{tpu_custom_call.1} parent=286 // loop_pre_header
          _
        $region289: #{tpu_custom_call.1} parent=286 // loop_header
          %s523 = sphi 0, %s527
          %p524 = scmp.ge.s32.totalorder %s523, 1
          %s528 = sphi %s510, %s510
          %s529 = sphi %s511, %s511
        $region290: #{tpu_custom_call.1} parent=286 // loop_header_branch
          %526 = sbr.rel (%p524) target = $region294
        $region291: #{tpu_custom_call.1} parent=286 // loop_body
          %v530 = vld [vmem:[%s528] sm:%s521]
          %531 = vst [vmem:[%s529] sm:%s521] %v530
        $region292: #{tpu_custom_call.1} parent=286 // loop_footer
          %s527 = sadd.s32 1, %s523
        $region293: #{tpu_custom_call.1} parent=286 // loop_footer_branch
          %522 = sbr.rel target = $region289
        $region294: #{tpu_custom_call.1} parent=286 // loop_exit
          _
      $region287: #{tpu_custom_call.1} parent=8 // pred_fallthru
        _
      // Predicated region
      $region306: #{tpu_custom_call.1} parent=8 // pred_check
        _
      $region307: #{tpu_custom_call.1} parent=8 // pred_check_branch
        %556 = sbr.rel (0) target = $region309
      $region308: #{tpu_custom_call.1} parent=8 // pred_region
        %557 = vsyncadd [#allocation3], 16
      $region309: #{tpu_custom_call.1} parent=8 // pred_fallthru
        _
      %s558 = sadd.s32 %s48, 10
      %s559 = sld [smem:[#allocation5 + %s558]]
      %s560 = sadd.s32 %s49, 10
      %s561 = scalar_lea.vmem %s1, %s559
      %s562 = scalar_lea.vmem [#allocation2], %s560
      %p564 = scmp.lt.u32.totalorder 1, 8
      %p565 = pneg %p564
      // Predicated region
      $region310: #{tpu_custom_call.1} parent=8 // pred_check
        _
      $region311: #{tpu_custom_call.1} parent=8 // pred_check_branch
        %567 = sbr.rel (%p564) target = $region313
      $region312: #{tpu_custom_call.1} parent=8 // pred_region
        %s583 = sand.u32 1, 7
        %p584 = scmp.eq.s32.totalorder %s583, 0
        %p585 = pneg %p584
        // Predicated region
        $region325: #{tpu_custom_call.1} parent=312 // pred_check
          _
        $region326: #{tpu_custom_call.1} parent=312 // pred_check_branch
          %587 = sbr.rel (%p584) target = $region328
        $region327: #{tpu_custom_call.1} parent=312 // pred_region
          %s588 = sand.u32 1, 7
          %s589 = ssub.s32 1, %s588
          %s590 = scalar_lea.vmem %s561, %s589
          %s591 = ssub.s32 1, %s588
          %s592 = scalar_lea.vmem %s562, %s591 [#allocation2]
          %s593 = sshll.u32 1, %s588
          %s594 = ssub.s32 %s593, 1
          loop: start=0, step=1, limit=1
          $region329: #{tpu_custom_call.1} parent=327 // loop_pre_header
            _
          $region330: #{tpu_custom_call.1} parent=327 // loop_header
            %s596 = sphi 0, %s600
            %p597 = scmp.ge.s32.totalorder %s596, 1
            %s601 = sphi %s590, %s590
            %s602 = sphi %s592, %s592
          $region331: #{tpu_custom_call.1} parent=327 // loop_header_branch
            %599 = sbr.rel (%p597) target = $region335
          $region332: #{tpu_custom_call.1} parent=327 // loop_body
            %v603 = vld [vmem:[%s601] sm:%s594]
            %604 = vst [vmem:[%s602] sm:%s594] %v603
          $region333: #{tpu_custom_call.1} parent=327 // loop_footer
            %s600 = sadd.s32 1, %s596
          $region334: #{tpu_custom_call.1} parent=327 // loop_footer_branch
            %595 = sbr.rel target = $region330
          $region335: #{tpu_custom_call.1} parent=327 // loop_exit
            _
        $region328: #{tpu_custom_call.1} parent=312 // pred_fallthru
          _
      $region313: #{tpu_custom_call.1} parent=8 // pred_fallthru
        _
      // Predicated region
      $region314: #{tpu_custom_call.1} parent=8 // pred_check
        %p568 = pneg %p564
      $region315: #{tpu_custom_call.1} parent=8 // pred_check_branch
        %570 = sbr.rel (%p568) target = $region317
      $region316: #{tpu_custom_call.1} parent=8 // pred_region
        %s571 = sshll.u32 1, 1
        %s572 = ssub.s32 %s571, 1
        loop: start=0, step=1, limit=1
        $region318: #{tpu_custom_call.1} parent=316 // loop_pre_header
          _
        $region319: #{tpu_custom_call.1} parent=316 // loop_header
          %s574 = sphi 0, %s578
          %p575 = scmp.ge.s32.totalorder %s574, 1
          %s579 = sphi %s561, %s561
          %s580 = sphi %s562, %s562
        $region320: #{tpu_custom_call.1} parent=316 // loop_header_branch
          %577 = sbr.rel (%p575) target = $region324
        $region321: #{tpu_custom_call.1} parent=316 // loop_body
          %v581 = vld [vmem:[%s579] sm:%s572]
          %582 = vst [vmem:[%s580] sm:%s572] %v581
        $region322: #{tpu_custom_call.1} parent=316 // loop_footer
          %s578 = sadd.s32 1, %s574
        $region323: #{tpu_custom_call.1} parent=316 // loop_footer_branch
          %573 = sbr.rel target = $region319
        $region324: #{tpu_custom_call.1} parent=316 // loop_exit
          _
      $region317: #{tpu_custom_call.1} parent=8 // pred_fallthru
        _
      // Predicated region
      $region336: #{tpu_custom_call.1} parent=8 // pred_check
        _
      $region337: #{tpu_custom_call.1} parent=8 // pred_check_branch
        %607 = sbr.rel (0) target = $region339
      $region338: #{tpu_custom_call.1} parent=8 // pred_region
        %608 = vsyncadd [#allocation3], 16
      $region339: #{tpu_custom_call.1} parent=8 // pred_fallthru
        _
      %s609 = sadd.s32 %s48, 11
      %s610 = sld [smem:[#allocation5 + %s609]]
      %s611 = sadd.s32 %s49, 11
      %s612 = scalar_lea.vmem %s1, %s610
      %s613 = scalar_lea.vmem [#allocation2], %s611
      %p615 = scmp.lt.u32.totalorder 1, 8
      %p616 = pneg %p615
      // Predicated region
      $region340: #{tpu_custom_call.1} parent=8 // pred_check
        _
      $region341: #{tpu_custom_call.1} parent=8 // pred_check_branch
        %618 = sbr.rel (%p615) target = $region343
      $region342: #{tpu_custom_call.1} parent=8 // pred_region
        %s634 = sand.u32 1, 7
        %p635 = scmp.eq.s32.totalorder %s634, 0
        %p636 = pneg %p635
        // Predicated region
        $region355: #{tpu_custom_call.1} parent=342 // pred_check
          _
        $region356: #{tpu_custom_call.1} parent=342 // pred_check_branch
          %638 = sbr.rel (%p635) target = $region358
        $region357: #{tpu_custom_call.1} parent=342 // pred_region
          %s639 = sand.u32 1, 7
          %s640 = ssub.s32 1, %s639
          %s641 = scalar_lea.vmem %s612, %s640
          %s642 = ssub.s32 1, %s639
          %s643 = scalar_lea.vmem %s613, %s642 [#allocation2]
          %s644 = sshll.u32 1, %s639
          %s645 = ssub.s32 %s644, 1
          loop: start=0, step=1, limit=1
          $region359: #{tpu_custom_call.1} parent=357 // loop_pre_header
            _
          $region360: #{tpu_custom_call.1} parent=357 // loop_header
            %s647 = sphi 0, %s651
            %p648 = scmp.ge.s32.totalorder %s647, 1
            %s652 = sphi %s641, %s641
            %s653 = sphi %s643, %s643
          $region361: #{tpu_custom_call.1} parent=357 // loop_header_branch
            %650 = sbr.rel (%p648) target = $region365
          $region362: #{tpu_custom_call.1} parent=357 // loop_body
            %v654 = vld [vmem:[%s652] sm:%s645]
            %655 = vst [vmem:[%s653] sm:%s645] %v654
          $region363: #{tpu_custom_call.1} parent=357 // loop_footer
            %s651 = sadd.s32 1, %s647
          $region364: #{tpu_custom_call.1} parent=357 // loop_footer_branch
            %646 = sbr.rel target = $region360
          $region365: #{tpu_custom_call.1} parent=357 // loop_exit
            _
        $region358: #{tpu_custom_call.1} parent=342 // pred_fallthru
          _
      $region343: #{tpu_custom_call.1} parent=8 // pred_fallthru
        _
      // Predicated region
      $region344: #{tpu_custom_call.1} parent=8 // pred_check
        %p619 = pneg %p615
      $region345: #{tpu_custom_call.1} parent=8 // pred_check_branch
        %621 = sbr.rel (%p619) target = $region347
      $region346: #{tpu_custom_call.1} parent=8 // pred_region
        %s622 = sshll.u32 1, 1
        %s623 = ssub.s32 %s622, 1
        loop: start=0, step=1, limit=1
        $region348: #{tpu_custom_call.1} parent=346 // loop_pre_header
          _
        $region349: #{tpu_custom_call.1} parent=346 // loop_header
          %s625 = sphi 0, %s629
          %p626 = scmp.ge.s32.totalorder %s625, 1
          %s630 = sphi %s612, %s612
          %s631 = sphi %s613, %s613
        $region350: #{tpu_custom_call.1} parent=346 // loop_header_branch
          %628 = sbr.rel (%p626) target = $region354
        $region351: #{tpu_custom_call.1} parent=346 // loop_body
          %v632 = vld [vmem:[%s630] sm:%s623]
          %633 = vst [vmem:[%s631] sm:%s623] %v632
        $region352: #{tpu_custom_call.1} parent=346 // loop_footer
          %s629 = sadd.s32 1, %s625
        $region353: #{tpu_custom_call.1} parent=346 // loop_footer_branch
          %624 = sbr.rel target = $region349
        $region354: #{tpu_custom_call.1} parent=346 // loop_exit
          _
      $region347: #{tpu_custom_call.1} parent=8 // pred_fallthru
        _
      // Predicated region
      $region366: #{tpu_custom_call.1} parent=8 // pred_check
        _
      $region367: #{tpu_custom_call.1} parent=8 // pred_check_branch
        %658 = sbr.rel (0) target = $region369
      $region368: #{tpu_custom_call.1} parent=8 // pred_region
        %659 = vsyncadd [#allocation3], 16
      $region369: #{tpu_custom_call.1} parent=8 // pred_fallthru
        _
      %s660 = sadd.s32 %s48, 12
      %s661 = sld [smem:[#allocation5 + %s660]]
      %s662 = sadd.s32 %s49, 12
      %s663 = scalar_lea.vmem %s1, %s661
      %s664 = scalar_lea.vmem [#allocation2], %s662
      %p666 = scmp.lt.u32.totalorder 1, 8
      %p667 = pneg %p666
      // Predicated region
      $region370: #{tpu_custom_call.1} parent=8 // pred_check
        _
      $region371: #{tpu_custom_call.1} parent=8 // pred_check_branch
        %669 = sbr.rel (%p666) target = $region373
      $region372: #{tpu_custom_call.1} parent=8 // pred_region
        %s685 = sand.u32 1, 7
        %p686 = scmp.eq.s32.totalorder %s685, 0
        %p687 = pneg %p686
        // Predicated region
        $region385: #{tpu_custom_call.1} parent=372 // pred_check
          _
        $region386: #{tpu_custom_call.1} parent=372 // pred_check_branch
          %689 = sbr.rel (%p686) target = $region388
        $region387: #{tpu_custom_call.1} parent=372 // pred_region
          %s690 = sand.u32 1, 7
          %s691 = ssub.s32 1, %s690
          %s692 = scalar_lea.vmem %s663, %s691
          %s693 = ssub.s32 1, %s690
          %s694 = scalar_lea.vmem %s664, %s693 [#allocation2]
          %s695 = sshll.u32 1, %s690
          %s696 = ssub.s32 %s695, 1
          loop: start=0, step=1, limit=1
          $region389: #{tpu_custom_call.1} parent=387 // loop_pre_header
            _
          $region390: #{tpu_custom_call.1} parent=387 // loop_header
            %s698 = sphi 0, %s702
            %p699 = scmp.ge.s32.totalorder %s698, 1
            %s703 = sphi %s692, %s692
            %s704 = sphi %s694, %s694
          $region391: #{tpu_custom_call.1} parent=387 // loop_header_branch
            %701 = sbr.rel (%p699) target = $region395
          $region392: #{tpu_custom_call.1} parent=387 // loop_body
            %v705 = vld [vmem:[%s703] sm:%s696]
            %706 = vst [vmem:[%s704] sm:%s696] %v705
          $region393: #{tpu_custom_call.1} parent=387 // loop_footer
            %s702 = sadd.s32 1, %s698
          $region394: #{tpu_custom_call.1} parent=387 // loop_footer_branch
            %697 = sbr.rel target = $region390
          $region395: #{tpu_custom_call.1} parent=387 // loop_exit
            _
        $region388: #{tpu_custom_call.1} parent=372 // pred_fallthru
          _
      $region373: #{tpu_custom_call.1} parent=8 // pred_fallthru
        _
      // Predicated region
      $region374: #{tpu_custom_call.1} parent=8 // pred_check
        %p670 = pneg %p666
      $region375: #{tpu_custom_call.1} parent=8 // pred_check_branch
        %672 = sbr.rel (%p670) target = $region377
      $region376: #{tpu_custom_call.1} parent=8 // pred_region
        %s673 = sshll.u32 1, 1
        %s674 = ssub.s32 %s673, 1
        loop: start=0, step=1, limit=1
        $region378: #{tpu_custom_call.1} parent=376 // loop_pre_header
          _
        $region379: #{tpu_custom_call.1} parent=376 // loop_header
          %s676 = sphi 0, %s680
          %p677 = scmp.ge.s32.totalorder %s676, 1
          %s681 = sphi %s663, %s663
          %s682 = sphi %s664, %s664
        $region380: #{tpu_custom_call.1} parent=376 // loop_header_branch
          %679 = sbr.rel (%p677) target = $region384
        $region381: #{tpu_custom_call.1} parent=376 // loop_body
          %v683 = vld [vmem:[%s681] sm:%s674]
          %684 = vst [vmem:[%s682] sm:%s674] %v683
        $region382: #{tpu_custom_call.1} parent=376 // loop_footer
          %s680 = sadd.s32 1, %s676
        $region383: #{tpu_custom_call.1} parent=376 // loop_footer_branch
          %675 = sbr.rel target = $region379
        $region384: #{tpu_custom_call.1} parent=376 // loop_exit
          _
      $region377: #{tpu_custom_call.1} parent=8 // pred_fallthru
        _
      // Predicated region
      $region396: #{tpu_custom_call.1} parent=8 // pred_check
        _
      $region397: #{tpu_custom_call.1} parent=8 // pred_check_branch
        %709 = sbr.rel (0) target = $region399
      $region398: #{tpu_custom_call.1} parent=8 // pred_region
        %710 = vsyncadd [#allocation3], 16
      $region399: #{tpu_custom_call.1} parent=8 // pred_fallthru
        _
      %s711 = sadd.s32 %s48, 13
      %s712 = sld [smem:[#allocation5 + %s711]]
      %s713 = sadd.s32 %s49, 13
      %s714 = scalar_lea.vmem %s1, %s712
      %s715 = scalar_lea.vmem [#allocation2], %s713
      %p717 = scmp.lt.u32.totalorder 1, 8
      %p718 = pneg %p717
      // Predicated region
      $region400: #{tpu_custom_call.1} parent=8 // pred_check
        _
      $region401: #{tpu_custom_call.1} parent=8 // pred_check_branch
        %720 = sbr.rel (%p717) target = $region403
      $region402: #{tpu_custom_call.1} parent=8 // pred_region
        %s736 = sand.u32 1, 7
        %p737 = scmp.eq.s32.totalorder %s736, 0
        %p738 = pneg %p737
        // Predicated region
        $region415: #{tpu_custom_call.1} parent=402 // pred_check
          _
        $region416: #{tpu_custom_call.1} parent=402 // pred_check_branch
          %740 = sbr.rel (%p737) target = $region418
        $region417: #{tpu_custom_call.1} parent=402 // pred_region
          %s741 = sand.u32 1, 7
          %s742 = ssub.s32 1, %s741
          %s743 = scalar_lea.vmem %s714, %s742
          %s744 = ssub.s32 1, %s741
          %s745 = scalar_lea.vmem %s715, %s744 [#allocation2]
          %s746 = sshll.u32 1, %s741
          %s747 = ssub.s32 %s746, 1
          loop: start=0, step=1, limit=1
          $region419: #{tpu_custom_call.1} parent=417 // loop_pre_header
            _
          $region420: #{tpu_custom_call.1} parent=417 // loop_header
            %s749 = sphi 0, %s753
            %p750 = scmp.ge.s32.totalorder %s749, 1
            %s754 = sphi %s743, %s743
            %s755 = sphi %s745, %s745
          $region421: #{tpu_custom_call.1} parent=417 // loop_header_branch
            %752 = sbr.rel (%p750) target = $region425
          $region422: #{tpu_custom_call.1} parent=417 // loop_body
            %v756 = vld [vmem:[%s754] sm:%s747]
            %757 = vst [vmem:[%s755] sm:%s747] %v756
          $region423: #{tpu_custom_call.1} parent=417 // loop_footer
            %s753 = sadd.s32 1, %s749
          $region424: #{tpu_custom_call.1} parent=417 // loop_footer_branch
            %748 = sbr.rel target = $region420
          $region425: #{tpu_custom_call.1} parent=417 // loop_exit
            _
        $region418: #{tpu_custom_call.1} parent=402 // pred_fallthru
          _
      $region403: #{tpu_custom_call.1} parent=8 // pred_fallthru
        _
      // Predicated region
      $region404: #{tpu_custom_call.1} parent=8 // pred_check
        %p721 = pneg %p717
      $region405: #{tpu_custom_call.1} parent=8 // pred_check_branch
        %723 = sbr.rel (%p721) target = $region407
      $region406: #{tpu_custom_call.1} parent=8 // pred_region
        %s724 = sshll.u32 1, 1
        %s725 = ssub.s32 %s724, 1
        loop: start=0, step=1, limit=1
        $region408: #{tpu_custom_call.1} parent=406 // loop_pre_header
          _
        $region409: #{tpu_custom_call.1} parent=406 // loop_header
          %s727 = sphi 0, %s731
          %p728 = scmp.ge.s32.totalorder %s727, 1
          %s732 = sphi %s714, %s714
          %s733 = sphi %s715, %s715
        $region410: #{tpu_custom_call.1} parent=406 // loop_header_branch
          %730 = sbr.rel (%p728) target = $region414
        $region411: #{tpu_custom_call.1} parent=406 // loop_body
          %v734 = vld [vmem:[%s732] sm:%s725]
          %735 = vst [vmem:[%s733] sm:%s725] %v734
        $region412: #{tpu_custom_call.1} parent=406 // loop_footer
          %s731 = sadd.s32 1, %s727
        $region413: #{tpu_custom_call.1} parent=406 // loop_footer_branch
          %726 = sbr.rel target = $region409
        $region414: #{tpu_custom_call.1} parent=406 // loop_exit
          _
      $region407: #{tpu_custom_call.1} parent=8 // pred_fallthru
        _
      // Predicated region
      $region426: #{tpu_custom_call.1} parent=8 // pred_check
        _
      $region427: #{tpu_custom_call.1} parent=8 // pred_check_branch
        %760 = sbr.rel (0) target = $region429
      $region428: #{tpu_custom_call.1} parent=8 // pred_region
        %761 = vsyncadd [#allocation3], 16
      $region429: #{tpu_custom_call.1} parent=8 // pred_fallthru
        _
      %s762 = sadd.s32 %s48, 14
      %s763 = sld [smem:[#allocation5 + %s762]]
      %s764 = sadd.s32 %s49, 14
      %s765 = scalar_lea.vmem %s1, %s763
      %s766 = scalar_lea.vmem [#allocation2], %s764
      %p768 = scmp.lt.u32.totalorder 1, 8
      %p769 = pneg %p768
      // Predicated region
      $region430: #{tpu_custom_call.1} parent=8 // pred_check
        _
      $region431: #{tpu_custom_call.1} parent=8 // pred_check_branch
        %771 = sbr.rel (%p768) target = $region433
      $region432: #{tpu_custom_call.1} parent=8 // pred_region
        %s787 = sand.u32 1, 7
        %p788 = scmp.eq.s32.totalorder %s787, 0
        %p789 = pneg %p788
        // Predicated region
        $region445: #{tpu_custom_call.1} parent=432 // pred_check
          _
        $region446: #{tpu_custom_call.1} parent=432 // pred_check_branch
          %791 = sbr.rel (%p788) target = $region448
        $region447: #{tpu_custom_call.1} parent=432 // pred_region
          %s792 = sand.u32 1, 7
          %s793 = ssub.s32 1, %s792
          %s794 = scalar_lea.vmem %s765, %s793
          %s795 = ssub.s32 1, %s792
          %s796 = scalar_lea.vmem %s766, %s795 [#allocation2]
          %s797 = sshll.u32 1, %s792
          %s798 = ssub.s32 %s797, 1
          loop: start=0, step=1, limit=1
          $region449: #{tpu_custom_call.1} parent=447 // loop_pre_header
            _
          $region450: #{tpu_custom_call.1} parent=447 // loop_header
            %s800 = sphi 0, %s804
            %p801 = scmp.ge.s32.totalorder %s800, 1
            %s805 = sphi %s794, %s794
            %s806 = sphi %s796, %s796
          $region451: #{tpu_custom_call.1} parent=447 // loop_header_branch
            %803 = sbr.rel (%p801) target = $region455
          $region452: #{tpu_custom_call.1} parent=447 // loop_body
            %v807 = vld [vmem:[%s805] sm:%s798]
            %808 = vst [vmem:[%s806] sm:%s798] %v807
          $region453: #{tpu_custom_call.1} parent=447 // loop_footer
            %s804 = sadd.s32 1, %s800
          $region454: #{tpu_custom_call.1} parent=447 // loop_footer_branch
            %799 = sbr.rel target = $region450
          $region455: #{tpu_custom_call.1} parent=447 // loop_exit
            _
        $region448: #{tpu_custom_call.1} parent=432 // pred_fallthru
          _
      $region433: #{tpu_custom_call.1} parent=8 // pred_fallthru
        _
      // Predicated region
      $region434: #{tpu_custom_call.1} parent=8 // pred_check
        %p772 = pneg %p768
      $region435: #{tpu_custom_call.1} parent=8 // pred_check_branch
        %774 = sbr.rel (%p772) target = $region437
      $region436: #{tpu_custom_call.1} parent=8 // pred_region
        %s775 = sshll.u32 1, 1
        %s776 = ssub.s32 %s775, 1
        loop: start=0, step=1, limit=1
        $region438: #{tpu_custom_call.1} parent=436 // loop_pre_header
          _
        $region439: #{tpu_custom_call.1} parent=436 // loop_header
          %s778 = sphi 0, %s782
          %p779 = scmp.ge.s32.totalorder %s778, 1
          %s783 = sphi %s765, %s765
          %s784 = sphi %s766, %s766
        $region440: #{tpu_custom_call.1} parent=436 // loop_header_branch
          %781 = sbr.rel (%p779) target = $region444
        $region441: #{tpu_custom_call.1} parent=436 // loop_body
          %v785 = vld [vmem:[%s783] sm:%s776]
          %786 = vst [vmem:[%s784] sm:%s776] %v785
        $region442: #{tpu_custom_call.1} parent=436 // loop_footer
          %s782 = sadd.s32 1, %s778
        $region443: #{tpu_custom_call.1} parent=436 // loop_footer_branch
          %777 = sbr.rel target = $region439
        $region444: #{tpu_custom_call.1} parent=436 // loop_exit
          _
      $region437: #{tpu_custom_call.1} parent=8 // pred_fallthru
        _
      // Predicated region
      $region456: #{tpu_custom_call.1} parent=8 // pred_check
        _
      $region457: #{tpu_custom_call.1} parent=8 // pred_check_branch
        %811 = sbr.rel (0) target = $region459
      $region458: #{tpu_custom_call.1} parent=8 // pred_region
        %812 = vsyncadd [#allocation3], 16
      $region459: #{tpu_custom_call.1} parent=8 // pred_fallthru
        _
      %s813 = sadd.s32 %s48, 15
      %s814 = sld [smem:[#allocation5 + %s813]]
      %s815 = sadd.s32 %s49, 15
      %s816 = scalar_lea.vmem %s1, %s814
      %s817 = scalar_lea.vmem [#allocation2], %s815
      %p819 = scmp.lt.u32.totalorder 1, 8
      %p820 = pneg %p819
      // Predicated region
      $region460: #{tpu_custom_call.1} parent=8 // pred_check
        _
      $region461: #{tpu_custom_call.1} parent=8 // pred_check_branch
        %822 = sbr.rel (%p819) target = $region463
      $region462: #{tpu_custom_call.1} parent=8 // pred_region
        %s838 = sand.u32 1, 7
        %p839 = scmp.eq.s32.totalorder %s838, 0
        %p840 = pneg %p839
        // Predicated region
        $region475: #{tpu_custom_call.1} parent=462 // pred_check
          _
        $region476: #{tpu_custom_call.1} parent=462 // pred_check_branch
          %842 = sbr.rel (%p839) target = $region478
        $region477: #{tpu_custom_call.1} parent=462 // pred_region
          %s843 = sand.u32 1, 7
          %s844 = ssub.s32 1, %s843
          %s845 = scalar_lea.vmem %s816, %s844
          %s846 = ssub.s32 1, %s843
          %s847 = scalar_lea.vmem %s817, %s846 [#allocation2]
          %s848 = sshll.u32 1, %s843
          %s849 = ssub.s32 %s848, 1
          loop: start=0, step=1, limit=1
          $region479: #{tpu_custom_call.1} parent=477 // loop_pre_header
            _
          $region480: #{tpu_custom_call.1} parent=477 // loop_header
            %s851 = sphi 0, %s855
            %p852 = scmp.ge.s32.totalorder %s851, 1
            %s856 = sphi %s845, %s845
            %s857 = sphi %s847, %s847
          $region481: #{tpu_custom_call.1} parent=477 // loop_header_branch
            %854 = sbr.rel (%p852) target = $region485
          $region482: #{tpu_custom_call.1} parent=477 // loop_body
            %v858 = vld [vmem:[%s856] sm:%s849]
            %859 = vst [vmem:[%s857] sm:%s849] %v858
          $region483: #{tpu_custom_call.1} parent=477 // loop_footer
            %s855 = sadd.s32 1, %s851
          $region484: #{tpu_custom_call.1} parent=477 // loop_footer_branch
            %850 = sbr.rel target = $region480
          $region485: #{tpu_custom_call.1} parent=477 // loop_exit
            _
        $region478: #{tpu_custom_call.1} parent=462 // pred_fallthru
          _
      $region463: #{tpu_custom_call.1} parent=8 // pred_fallthru
        _
      // Predicated region
      $region464: #{tpu_custom_call.1} parent=8 // pred_check
        %p823 = pneg %p819
      $region465: #{tpu_custom_call.1} parent=8 // pred_check_branch
        %825 = sbr.rel (%p823) target = $region467
      $region466: #{tpu_custom_call.1} parent=8 // pred_region
        %s826 = sshll.u32 1, 1
        %s827 = ssub.s32 %s826, 1
        loop: start=0, step=1, limit=1
        $region468: #{tpu_custom_call.1} parent=466 // loop_pre_header
          _
        $region469: #{tpu_custom_call.1} parent=466 // loop_header
          %s829 = sphi 0, %s833
          %p830 = scmp.ge.s32.totalorder %s829, 1
          %s834 = sphi %s816, %s816
          %s835 = sphi %s817, %s817
        $region470: #{tpu_custom_call.1} parent=466 // loop_header_branch
          %832 = sbr.rel (%p830) target = $region474
        $region471: #{tpu_custom_call.1} parent=466 // loop_body
          %v836 = vld [vmem:[%s834] sm:%s827]
          %837 = vst [vmem:[%s835] sm:%s827] %v836
        $region472: #{tpu_custom_call.1} parent=466 // loop_footer
          %s833 = sadd.s32 1, %s829
        $region473: #{tpu_custom_call.1} parent=466 // loop_footer_branch
          %828 = sbr.rel target = $region469
        $region474: #{tpu_custom_call.1} parent=466 // loop_exit
          _
      $region467: #{tpu_custom_call.1} parent=8 // pred_fallthru
        _
      // Predicated region
      $region486: #{tpu_custom_call.1} parent=8 // pred_check
        _
      $region487: #{tpu_custom_call.1} parent=8 // pred_check_branch
        %862 = sbr.rel (0) target = $region489
      $region488: #{tpu_custom_call.1} parent=8 // pred_region
        %863 = vsyncadd [#allocation3], 16
      $region489: #{tpu_custom_call.1} parent=8 // pred_fallthru
        _
    $region9: #{tpu_custom_call.1} parent=1 // pred_fallthru
      _
    %s864 = sadd.s32 0, 1
    %p865 = scmp.lt.s32.totalorder %s864, 1
    // Predicated region
    $region490: #{tpu_custom_call.1} parent=1 // pred_check
      %p866 = pneg %p865
    $region491: #{tpu_custom_call.1} parent=1 // pred_check_branch
      %868 = sbr.rel (%p866) target = $region493
    $region492: #{tpu_custom_call.1} parent=1 // pred_region
      %s869 = sadd.s32 %s43, 1
      %s870 = ssub.s32 1, 0
      %s871 = smul.u32 %s869, 16
      %s872 = smul.u32 %s870, 16
      %s873 = sld [smem:[#allocation5 + %s871]]
      %s874 = scalar_lea.vmem %s1, %s873
      %s875 = scalar_lea.vmem [#allocation2], %s872
      %s876 = scalar_lea.sflag [#allocation3], %s870
      %p878 = scmp.lt.u32.totalorder 1, 8
      %p879 = pneg %p878
      // Predicated region
      $region494: #{tpu_custom_call.1} parent=492 // pred_check
        _
      $region495: #{tpu_custom_call.1} parent=492 // pred_check_branch
        %881 = sbr.rel (%p878) target = $region497
      $region496: #{tpu_custom_call.1} parent=492 // pred_region
        %s897 = sand.u32 1, 7
        %p898 = scmp.eq.s32.totalorder %s897, 0
        %p899 = pneg %p898
        // Predicated region
        $region509: #{tpu_custom_call.1} parent=496 // pred_check
          _
        $region510: #{tpu_custom_call.1} parent=496 // pred_check_branch
          %901 = sbr.rel (%p898) target = $region512
        $region511: #{tpu_custom_call.1} parent=496 // pred_region
          %s902 = sand.u32 1, 7
          %s903 = ssub.s32 1, %s902
          %s904 = scalar_lea.vmem %s874, %s903
          %s905 = ssub.s32 1, %s902
          %s906 = scalar_lea.vmem %s875, %s905 [#allocation2]
          %s907 = sshll.u32 1, %s902
          %s908 = ssub.s32 %s907, 1
          loop: start=0, step=1, limit=1
          $region513: #{tpu_custom_call.1} parent=511 // loop_pre_header
            _
          $region514: #{tpu_custom_call.1} parent=511 // loop_header
            %s910 = sphi 0, %s914
            %p911 = scmp.ge.s32.totalorder %s910, 1
            %s915 = sphi %s904, %s904
            %s916 = sphi %s906, %s906
          $region515: #{tpu_custom_call.1} parent=511 // loop_header_branch
            %913 = sbr.rel (%p911) target = $region519
          $region516: #{tpu_custom_call.1} parent=511 // loop_body
            %v917 = vld [vmem:[%s915] sm:%s908]
            %918 = vst [vmem:[%s916] sm:%s908] %v917
          $region517: #{tpu_custom_call.1} parent=511 // loop_footer
            %s914 = sadd.s32 1, %s910
          $region518: #{tpu_custom_call.1} parent=511 // loop_footer_branch
            %909 = sbr.rel target = $region514
          $region519: #{tpu_custom_call.1} parent=511 // loop_exit
            _
        $region512: #{tpu_custom_call.1} parent=496 // pred_fallthru
          _
      $region497: #{tpu_custom_call.1} parent=492 // pred_fallthru
        _
      // Predicated region
      $region498: #{tpu_custom_call.1} parent=492 // pred_check
        %p882 = pneg %p878
      $region499: #{tpu_custom_call.1} parent=492 // pred_check_branch
        %884 = sbr.rel (%p882) target = $region501
      $region500: #{tpu_custom_call.1} parent=492 // pred_region
        %s885 = sshll.u32 1, 1
        %s886 = ssub.s32 %s885, 1
        loop: start=0, step=1, limit=1
        $region502: #{tpu_custom_call.1} parent=500 // loop_pre_header
          _
        $region503: #{tpu_custom_call.1} parent=500 // loop_header
          %s888 = sphi 0, %s892
          %p889 = scmp.ge.s32.totalorder %s888, 1
          %s893 = sphi %s874, %s874
          %s894 = sphi %s875, %s875
        $region504: #{tpu_custom_call.1} parent=500 // loop_header_branch
          %891 = sbr.rel (%p889) target = $region508
        $region505: #{tpu_custom_call.1} parent=500 // loop_body
          %v895 = vld [vmem:[%s893] sm:%s886]
          %896 = vst [vmem:[%s894] sm:%s886] %v895
        $region506: #{tpu_custom_call.1} parent=500 // loop_footer
          %s892 = sadd.s32 1, %s888
        $region507: #{tpu_custom_call.1} parent=500 // loop_footer_branch
          %887 = sbr.rel target = $region503
        $region508: #{tpu_custom_call.1} parent=500 // loop_exit
          _
      $region501: #{tpu_custom_call.1} parent=492 // pred_fallthru
        _
      // Predicated region
      $region520: #{tpu_custom_call.1} parent=492 // pred_check
        _
      $region521: #{tpu_custom_call.1} parent=492 // pred_check_branch
        %921 = sbr.rel (0) target = $region523
      $region522: #{tpu_custom_call.1} parent=492 // pred_region
        %922 = vsyncadd %s876, 16
      $region523: #{tpu_custom_call.1} parent=492 // pred_fallthru
        _
      %s923 = sadd.s32 %s871, 1
      %s924 = sld [smem:[#allocation5 + %s923]]
      %s925 = sadd.s32 %s872, 1
      %s926 = scalar_lea.vmem %s1, %s924
      %s927 = scalar_lea.vmem [#allocation2], %s925
      %p929 = scmp.lt.u32.totalorder 1, 8
      %p930 = pneg %p929
      // Predicated region
      $region524: #{tpu_custom_call.1} parent=492 // pred_check
        _
      $region525: #{tpu_custom_call.1} parent=492 // pred_check_branch
        %932 = sbr.rel (%p929) target = $region527
      $region526: #{tpu_custom_call.1} parent=492 // pred_region
        %s948 = sand.u32 1, 7
        %p949 = scmp.eq.s32.totalorder %s948, 0
        %p950 = pneg %p949
        // Predicated region
        $region539: #{tpu_custom_call.1} parent=526 // pred_check
          _
        $region540: #{tpu_custom_call.1} parent=526 // pred_check_branch
          %952 = sbr.rel (%p949) target = $region542
        $region541: #{tpu_custom_call.1} parent=526 // pred_region
          %s953 = sand.u32 1, 7
          %s954 = ssub.s32 1, %s953
          %s955 = scalar_lea.vmem %s926, %s954
          %s956 = ssub.s32 1, %s953
          %s957 = scalar_lea.vmem %s927, %s956 [#allocation2]
          %s958 = sshll.u32 1, %s953
          %s959 = ssub.s32 %s958, 1
          loop: start=0, step=1, limit=1
          $region543: #{tpu_custom_call.1} parent=541 // loop_pre_header
            _
          $region544: #{tpu_custom_call.1} parent=541 // loop_header
            %s961 = sphi 0, %s965
            %p962 = scmp.ge.s32.totalorder %s961, 1
            %s966 = sphi %s955, %s955
            %s967 = sphi %s957, %s957
          $region545: #{tpu_custom_call.1} parent=541 // loop_header_branch
            %964 = sbr.rel (%p962) target = $region549
          $region546: #{tpu_custom_call.1} parent=541 // loop_body
            %v968 = vld [vmem:[%s966] sm:%s959]
            %969 = vst [vmem:[%s967] sm:%s959] %v968
          $region547: #{tpu_custom_call.1} parent=541 // loop_footer
            %s965 = sadd.s32 1, %s961
          $region548: #{tpu_custom_call.1} parent=541 // loop_footer_branch
            %960 = sbr.rel target = $region544
          $region549: #{tpu_custom_call.1} parent=541 // loop_exit
            _
        $region542: #{tpu_custom_call.1} parent=526 // pred_fallthru
          _
      $region527: #{tpu_custom_call.1} parent=492 // pred_fallthru
        _
      // Predicated region
      $region528: #{tpu_custom_call.1} parent=492 // pred_check
        %p933 = pneg %p929
      $region529: #{tpu_custom_call.1} parent=492 // pred_check_branch
        %935 = sbr.rel (%p933) target = $region531
      $region530: #{tpu_custom_call.1} parent=492 // pred_region
        %s936 = sshll.u32 1, 1
        %s937 = ssub.s32 %s936, 1
        loop: start=0, step=1, limit=1
        $region532: #{tpu_custom_call.1} parent=530 // loop_pre_header
          _
        $region533: #{tpu_custom_call.1} parent=530 // loop_header
          %s939 = sphi 0, %s943
          %p940 = scmp.ge.s32.totalorder %s939, 1
          %s944 = sphi %s926, %s926
          %s945 = sphi %s927, %s927
        $region534: #{tpu_custom_call.1} parent=530 // loop_header_branch
          %942 = sbr.rel (%p940) target = $region538
        $region535: #{tpu_custom_call.1} parent=530 // loop_body
          %v946 = vld [vmem:[%s944] sm:%s937]
          %947 = vst [vmem:[%s945] sm:%s937] %v946
        $region536: #{tpu_custom_call.1} parent=530 // loop_footer
          %s943 = sadd.s32 1, %s939
        $region537: #{tpu_custom_call.1} parent=530 // loop_footer_branch
          %938 = sbr.rel target = $region533
        $region538: #{tpu_custom_call.1} parent=530 // loop_exit
          _
      $region531: #{tpu_custom_call.1} parent=492 // pred_fallthru
        _
      // Predicated region
      $region550: #{tpu_custom_call.1} parent=492 // pred_check
        _
      $region551: #{tpu_custom_call.1} parent=492 // pred_check_branch
        %972 = sbr.rel (0) target = $region553
      $region552: #{tpu_custom_call.1} parent=492 // pred_region
        %973 = vsyncadd %s876, 16
      $region553: #{tpu_custom_call.1} parent=492 // pred_fallthru
        _
      %s974 = sadd.s32 %s871, 2
      %s975 = sld [smem:[#allocation5 + %s974]]
      %s976 = sadd.s32 %s872, 2
      %s977 = scalar_lea.vmem %s1, %s975
      %s978 = scalar_lea.vmem [#allocation2], %s976
      %p980 = scmp.lt.u32.totalorder 1, 8
      %p981 = pneg %p980
      // Predicated region
      $region554: #{tpu_custom_call.1} parent=492 // pred_check
        _
      $region555: #{tpu_custom_call.1} parent=492 // pred_check_branch
        %983 = sbr.rel (%p980) target = $region557
      $region556: #{tpu_custom_call.1} parent=492 // pred_region
        %s999 = sand.u32 1, 7
        %p1000 = scmp.eq.s32.totalorder %s999, 0
        %p1001 = pneg %p1000
        // Predicated region
        $region569: #{tpu_custom_call.1} parent=556 // pred_check
          _
        $region570: #{tpu_custom_call.1} parent=556 // pred_check_branch
          %1003 = sbr.rel (%p1000) target = $region572
        $region571: #{tpu_custom_call.1} parent=556 // pred_region
          %s1004 = sand.u32 1, 7
          %s1005 = ssub.s32 1, %s1004
          %s1006 = scalar_lea.vmem %s977, %s1005
          %s1007 = ssub.s32 1, %s1004
          %s1008 = scalar_lea.vmem %s978, %s1007 [#allocation2]
          %s1009 = sshll.u32 1, %s1004
          %s1010 = ssub.s32 %s1009, 1
          loop: start=0, step=1, limit=1
          $region573: #{tpu_custom_call.1} parent=571 // loop_pre_header
            _
          $region574: #{tpu_custom_call.1} parent=571 // loop_header
            %s1012 = sphi 0, %s1016
            %p1013 = scmp.ge.s32.totalorder %s1012, 1
            %s1017 = sphi %s1006, %s1006
            %s1018 = sphi %s1008, %s1008
          $region575: #{tpu_custom_call.1} parent=571 // loop_header_branch
            %1015 = sbr.rel (%p1013) target = $region579
          $region576: #{tpu_custom_call.1} parent=571 // loop_body
            %v1019 = vld [vmem:[%s1017] sm:%s1010]
            %1020 = vst [vmem:[%s1018] sm:%s1010] %v1019
          $region577: #{tpu_custom_call.1} parent=571 // loop_footer
            %s1016 = sadd.s32 1, %s1012
          $region578: #{tpu_custom_call.1} parent=571 // loop_footer_branch
            %1011 = sbr.rel target = $region574
          $region579: #{tpu_custom_call.1} parent=571 // loop_exit
            _
        $region572: #{tpu_custom_call.1} parent=556 // pred_fallthru
          _
      $region557: #{tpu_custom_call.1} parent=492 // pred_fallthru
        _
      // Predicated region
      $region558: #{tpu_custom_call.1} parent=492 // pred_check
        %p984 = pneg %p980
      $region559: #{tpu_custom_call.1} parent=492 // pred_check_branch
        %986 = sbr.rel (%p984) target = $region561
      $region560: #{tpu_custom_call.1} parent=492 // pred_region
        %s987 = sshll.u32 1, 1
        %s988 = ssub.s32 %s987, 1
        loop: start=0, step=1, limit=1
        $region562: #{tpu_custom_call.1} parent=560 // loop_pre_header
          _
        $region563: #{tpu_custom_call.1} parent=560 // loop_header
          %s990 = sphi 0, %s994
          %p991 = scmp.ge.s32.totalorder %s990, 1
          %s995 = sphi %s977, %s977
          %s996 = sphi %s978, %s978
        $region564: #{tpu_custom_call.1} parent=560 // loop_header_branch
          %993 = sbr.rel (%p991) target = $region568
        $region565: #{tpu_custom_call.1} parent=560 // loop_body
          %v997 = vld [vmem:[%s995] sm:%s988]
          %998 = vst [vmem:[%s996] sm:%s988] %v997
        $region566: #{tpu_custom_call.1} parent=560 // loop_footer
          %s994 = sadd.s32 1, %s990
        $region567: #{tpu_custom_call.1} parent=560 // loop_footer_branch
          %989 = sbr.rel target = $region563
        $region568: #{tpu_custom_call.1} parent=560 // loop_exit
          _
      $region561: #{tpu_custom_call.1} parent=492 // pred_fallthru
        _
      // Predicated region
      $region580: #{tpu_custom_call.1} parent=492 // pred_check
        _
      $region581: #{tpu_custom_call.1} parent=492 // pred_check_branch
        %1023 = sbr.rel (0) target = $region583
      $region582: #{tpu_custom_call.1} parent=492 // pred_region
        %1024 = vsyncadd %s876, 16
      $region583: #{tpu_custom_call.1} parent=492 // pred_fallthru
        _
      %s1025 = sadd.s32 %s871, 3
      %s1026 = sld [smem:[#allocation5 + %s1025]]
      %s1027 = sadd.s32 %s872, 3
      %s1028 = scalar_lea.vmem %s1, %s1026
      %s1029 = scalar_lea.vmem [#allocation2], %s1027
      %p1031 = scmp.lt.u32.totalorder 1, 8
      %p1032 = pneg %p1031
      // Predicated region
      $region584: #{tpu_custom_call.1} parent=492 // pred_check
        _
      $region585: #{tpu_custom_call.1} parent=492 // pred_check_branch
        %1034 = sbr.rel (%p1031) target = $region587
      $region586: #{tpu_custom_call.1} parent=492 // pred_region
        %s1050 = sand.u32 1, 7
        %p1051 = scmp.eq.s32.totalorder %s1050, 0
        %p1052 = pneg %p1051
        // Predicated region
        $region599: #{tpu_custom_call.1} parent=586 // pred_check
          _
        $region600: #{tpu_custom_call.1} parent=586 // pred_check_branch
          %1054 = sbr.rel (%p1051) target = $region602
        $region601: #{tpu_custom_call.1} parent=586 // pred_region
          %s1055 = sand.u32 1, 7
          %s1056 = ssub.s32 1, %s1055
          %s1057 = scalar_lea.vmem %s1028, %s1056
          %s1058 = ssub.s32 1, %s1055
          %s1059 = scalar_lea.vmem %s1029, %s1058 [#allocation2]
          %s1060 = sshll.u32 1, %s1055
          %s1061 = ssub.s32 %s1060, 1
          loop: start=0, step=1, limit=1
          $region603: #{tpu_custom_call.1} parent=601 // loop_pre_header
            _
          $region604: #{tpu_custom_call.1} parent=601 // loop_header
            %s1063 = sphi 0, %s1067
            %p1064 = scmp.ge.s32.totalorder %s1063, 1
            %s1068 = sphi %s1057, %s1057
            %s1069 = sphi %s1059, %s1059
          $region605: #{tpu_custom_call.1} parent=601 // loop_header_branch
            %1066 = sbr.rel (%p1064) target = $region609
          $region606: #{tpu_custom_call.1} parent=601 // loop_body
            %v1070 = vld [vmem:[%s1068] sm:%s1061]
            %1071 = vst [vmem:[%s1069] sm:%s1061] %v1070
          $region607: #{tpu_custom_call.1} parent=601 // loop_footer
            %s1067 = sadd.s32 1, %s1063
          $region608: #{tpu_custom_call.1} parent=601 // loop_footer_branch
            %1062 = sbr.rel target = $region604
          $region609: #{tpu_custom_call.1} parent=601 // loop_exit
            _
        $region602: #{tpu_custom_call.1} parent=586 // pred_fallthru
          _
      $region587: #{tpu_custom_call.1} parent=492 // pred_fallthru
        _
      // Predicated region
      $region588: #{tpu_custom_call.1} parent=492 // pred_check
        %p1035 = pneg %p1031
      $region589: #{tpu_custom_call.1} parent=492 // pred_check_branch
        %1037 = sbr.rel (%p1035) target = $region591
      $region590: #{tpu_custom_call.1} parent=492 // pred_region
        %s1038 = sshll.u32 1, 1
        %s1039 = ssub.s32 %s1038, 1
        loop: start=0, step=1, limit=1
        $region592: #{tpu_custom_call.1} parent=590 // loop_pre_header
          _
        $region593: #{tpu_custom_call.1} parent=590 // loop_header
          %s1041 = sphi 0, %s1045
          %p1042 = scmp.ge.s32.totalorder %s1041, 1
          %s1046 = sphi %s1028, %s1028
          %s1047 = sphi %s1029, %s1029
        $region594: #{tpu_custom_call.1} parent=590 // loop_header_branch
          %1044 = sbr.rel (%p1042) target = $region598
        $region595: #{tpu_custom_call.1} parent=590 // loop_body
          %v1048 = vld [vmem:[%s1046] sm:%s1039]
          %1049 = vst [vmem:[%s1047] sm:%s1039] %v1048
        $region596: #{tpu_custom_call.1} parent=590 // loop_footer
          %s1045 = sadd.s32 1, %s1041
        $region597: #{tpu_custom_call.1} parent=590 // loop_footer_branch
          %1040 = sbr.rel target = $region593
        $region598: #{tpu_custom_call.1} parent=590 // loop_exit
          _
      $region591: #{tpu_custom_call.1} parent=492 // pred_fallthru
        _
      // Predicated region
      $region610: #{tpu_custom_call.1} parent=492 // pred_check
        _
      $region611: #{tpu_custom_call.1} parent=492 // pred_check_branch
        %1074 = sbr.rel (0) target = $region613
      $region612: #{tpu_custom_call.1} parent=492 // pred_region
        %1075 = vsyncadd %s876, 16
      $region613: #{tpu_custom_call.1} parent=492 // pred_fallthru
        _
      %s1076 = sadd.s32 %s871, 4
      %s1077 = sld [smem:[#allocation5 + %s1076]]
      %s1078 = sadd.s32 %s872, 4
      %s1079 = scalar_lea.vmem %s1, %s1077
      %s1080 = scalar_lea.vmem [#allocation2], %s1078
      %p1082 = scmp.lt.u32.totalorder 1, 8
      %p1083 = pneg %p1082
      // Predicated region
      $region614: #{tpu_custom_call.1} parent=492 // pred_check
        _
      $region615: #{tpu_custom_call.1} parent=492 // pred_check_branch
        %1085 = sbr.rel (%p1082) target = $region617
      $region616: #{tpu_custom_call.1} parent=492 // pred_region
        %s1101 = sand.u32 1, 7
        %p1102 = scmp.eq.s32.totalorder %s1101, 0
        %p1103 = pneg %p1102
        // Predicated region
        $region629: #{tpu_custom_call.1} parent=616 // pred_check
          _
        $region630: #{tpu_custom_call.1} parent=616 // pred_check_branch
          %1105 = sbr.rel (%p1102) target = $region632
        $region631: #{tpu_custom_call.1} parent=616 // pred_region
          %s1106 = sand.u32 1, 7
          %s1107 = ssub.s32 1, %s1106
          %s1108 = scalar_lea.vmem %s1079, %s1107
          %s1109 = ssub.s32 1, %s1106
          %s1110 = scalar_lea.vmem %s1080, %s1109 [#allocation2]
          %s1111 = sshll.u32 1, %s1106
          %s1112 = ssub.s32 %s1111, 1
          loop: start=0, step=1, limit=1
          $region633: #{tpu_custom_call.1} parent=631 // loop_pre_header
            _
          $region634: #{tpu_custom_call.1} parent=631 // loop_header
            %s1114 = sphi 0, %s1118
            %p1115 = scmp.ge.s32.totalorder %s1114, 1
            %s1119 = sphi %s1108, %s1108
            %s1120 = sphi %s1110, %s1110
          $region635: #{tpu_custom_call.1} parent=631 // loop_header_branch
            %1117 = sbr.rel (%p1115) target = $region639
          $region636: #{tpu_custom_call.1} parent=631 // loop_body
            %v1121 = vld [vmem:[%s1119] sm:%s1112]
            %1122 = vst [vmem:[%s1120] sm:%s1112] %v1121
          $region637: #{tpu_custom_call.1} parent=631 // loop_footer
            %s1118 = sadd.s32 1, %s1114
          $region638: #{tpu_custom_call.1} parent=631 // loop_footer_branch
            %1113 = sbr.rel target = $region634
          $region639: #{tpu_custom_call.1} parent=631 // loop_exit
            _
        $region632: #{tpu_custom_call.1} parent=616 // pred_fallthru
          _
      $region617: #{tpu_custom_call.1} parent=492 // pred_fallthru
        _
      // Predicated region
      $region618: #{tpu_custom_call.1} parent=492 // pred_check
        %p1086 = pneg %p1082
      $region619: #{tpu_custom_call.1} parent=492 // pred_check_branch
        %1088 = sbr.rel (%p1086) target = $region621
      $region620: #{tpu_custom_call.1} parent=492 // pred_region
        %s1089 = sshll.u32 1, 1
        %s1090 = ssub.s32 %s1089, 1
        loop: start=0, step=1, limit=1
        $region622: #{tpu_custom_call.1} parent=620 // loop_pre_header
          _
        $region623: #{tpu_custom_call.1} parent=620 // loop_header
          %s1092 = sphi 0, %s1096
          %p1093 = scmp.ge.s32.totalorder %s1092, 1
          %s1097 = sphi %s1079, %s1079
          %s1098 = sphi %s1080, %s1080
        $region624: #{tpu_custom_call.1} parent=620 // loop_header_branch
          %1095 = sbr.rel (%p1093) target = $region628
        $region625: #{tpu_custom_call.1} parent=620 // loop_body
          %v1099 = vld [vmem:[%s1097] sm:%s1090]
          %1100 = vst [vmem:[%s1098] sm:%s1090] %v1099
        $region626: #{tpu_custom_call.1} parent=620 // loop_footer
          %s1096 = sadd.s32 1, %s1092
        $region627: #{tpu_custom_call.1} parent=620 // loop_footer_branch
          %1091 = sbr.rel target = $region623
        $region628: #{tpu_custom_call.1} parent=620 // loop_exit
          _
      $region621: #{tpu_custom_call.1} parent=492 // pred_fallthru
        _
      // Predicated region
      $region640: #{tpu_custom_call.1} parent=492 // pred_check
        _
      $region641: #{tpu_custom_call.1} parent=492 // pred_check_branch
        %1125 = sbr.rel (0) target = $region643
      $region642: #{tpu_custom_call.1} parent=492 // pred_region
        %1126 = vsyncadd %s876, 16
      $region643: #{tpu_custom_call.1} parent=492 // pred_fallthru
        _
      %s1127 = sadd.s32 %s871, 5
      %s1128 = sld [smem:[#allocation5 + %s1127]]
      %s1129 = sadd.s32 %s872, 5
      %s1130 = scalar_lea.vmem %s1, %s1128
      %s1131 = scalar_lea.vmem [#allocation2], %s1129
      %p1133 = scmp.lt.u32.totalorder 1, 8
      %p1134 = pneg %p1133
      // Predicated region
      $region644: #{tpu_custom_call.1} parent=492 // pred_check
        _
      $region645: #{tpu_custom_call.1} parent=492 // pred_check_branch
        %1136 = sbr.rel (%p1133) target = $region647
      $region646: #{tpu_custom_call.1} parent=492 // pred_region
        %s1152 = sand.u32 1, 7
        %p1153 = scmp.eq.s32.totalorder %s1152, 0
        %p1154 = pneg %p1153
        // Predicated region
        $region659: #{tpu_custom_call.1} parent=646 // pred_check
          _
        $region660: #{tpu_custom_call.1} parent=646 // pred_check_branch
          %1156 = sbr.rel (%p1153) target = $region662
        $region661: #{tpu_custom_call.1} parent=646 // pred_region
          %s1157 = sand.u32 1, 7
          %s1158 = ssub.s32 1, %s1157
          %s1159 = scalar_lea.vmem %s1130, %s1158
          %s1160 = ssub.s32 1, %s1157
          %s1161 = scalar_lea.vmem %s1131, %s1160 [#allocation2]
          %s1162 = sshll.u32 1, %s1157
          %s1163 = ssub.s32 %s1162, 1
          loop: start=0, step=1, limit=1
          $region663: #{tpu_custom_call.1} parent=661 // loop_pre_header
            _
          $region664: #{tpu_custom_call.1} parent=661 // loop_header
            %s1165 = sphi 0, %s1169
            %p1166 = scmp.ge.s32.totalorder %s1165, 1
            %s1170 = sphi %s1159, %s1159
            %s1171 = sphi %s1161, %s1161
          $region665: #{tpu_custom_call.1} parent=661 // loop_header_branch
            %1168 = sbr.rel (%p1166) target = $region669
          $region666: #{tpu_custom_call.1} parent=661 // loop_body
            %v1172 = vld [vmem:[%s1170] sm:%s1163]
            %1173 = vst [vmem:[%s1171] sm:%s1163] %v1172
          $region667: #{tpu_custom_call.1} parent=661 // loop_footer
            %s1169 = sadd.s32 1, %s1165
          $region668: #{tpu_custom_call.1} parent=661 // loop_footer_branch
            %1164 = sbr.rel target = $region664
          $region669: #{tpu_custom_call.1} parent=661 // loop_exit
            _
        $region662: #{tpu_custom_call.1} parent=646 // pred_fallthru
          _
      $region647: #{tpu_custom_call.1} parent=492 // pred_fallthru
        _
      // Predicated region
      $region648: #{tpu_custom_call.1} parent=492 // pred_check
        %p1137 = pneg %p1133
      $region649: #{tpu_custom_call.1} parent=492 // pred_check_branch
        %1139 = sbr.rel (%p1137) target = $region651
      $region650: #{tpu_custom_call.1} parent=492 // pred_region
        %s1140 = sshll.u32 1, 1
        %s1141 = ssub.s32 %s1140, 1
        loop: start=0, step=1, limit=1
        $region652: #{tpu_custom_call.1} parent=650 // loop_pre_header
          _
        $region653: #{tpu_custom_call.1} parent=650 // loop_header
          %s1143 = sphi 0, %s1147
          %p1144 = scmp.ge.s32.totalorder %s1143, 1
          %s1148 = sphi %s1130, %s1130
          %s1149 = sphi %s1131, %s1131
        $region654: #{tpu_custom_call.1} parent=650 // loop_header_branch
          %1146 = sbr.rel (%p1144) target = $region658
        $region655: #{tpu_custom_call.1} parent=650 // loop_body
          %v1150 = vld [vmem:[%s1148] sm:%s1141]
          %1151 = vst [vmem:[%s1149] sm:%s1141] %v1150
        $region656: #{tpu_custom_call.1} parent=650 // loop_footer
          %s1147 = sadd.s32 1, %s1143
        $region657: #{tpu_custom_call.1} parent=650 // loop_footer_branch
          %1142 = sbr.rel target = $region653
        $region658: #{tpu_custom_call.1} parent=650 // loop_exit
          _
      $region651: #{tpu_custom_call.1} parent=492 // pred_fallthru
        _
      // Predicated region
      $region670: #{tpu_custom_call.1} parent=492 // pred_check
        _
      $region671: #{tpu_custom_call.1} parent=492 // pred_check_branch
        %1176 = sbr.rel (0) target = $region673
      $region672: #{tpu_custom_call.1} parent=492 // pred_region
        %1177 = vsyncadd %s876, 16
      $region673: #{tpu_custom_call.1} parent=492 // pred_fallthru
        _
      %s1178 = sadd.s32 %s871, 6
      %s1179 = sld [smem:[#allocation5 + %s1178]]
      %s1180 = sadd.s32 %s872, 6
      %s1181 = scalar_lea.vmem %s1, %s1179
      %s1182 = scalar_lea.vmem [#allocation2], %s1180
      %p1184 = scmp.lt.u32.totalorder 1, 8
      %p1185 = pneg %p1184
      // Predicated region
      $region674: #{tpu_custom_call.1} parent=492 // pred_check
        _
      $region675: #{tpu_custom_call.1} parent=492 // pred_check_branch
        %1187 = sbr.rel (%p1184) target = $region677
      $region676: #{tpu_custom_call.1} parent=492 // pred_region
        %s1203 = sand.u32 1, 7
        %p1204 = scmp.eq.s32.totalorder %s1203, 0
        %p1205 = pneg %p1204
        // Predicated region
        $region689: #{tpu_custom_call.1} parent=676 // pred_check
          _
        $region690: #{tpu_custom_call.1} parent=676 // pred_check_branch
          %1207 = sbr.rel (%p1204) target = $region692
        $region691: #{tpu_custom_call.1} parent=676 // pred_region
          %s1208 = sand.u32 1, 7
          %s1209 = ssub.s32 1, %s1208
          %s1210 = scalar_lea.vmem %s1181, %s1209
          %s1211 = ssub.s32 1, %s1208
          %s1212 = scalar_lea.vmem %s1182, %s1211 [#allocation2]
          %s1213 = sshll.u32 1, %s1208
          %s1214 = ssub.s32 %s1213, 1
          loop: start=0, step=1, limit=1
          $region693: #{tpu_custom_call.1} parent=691 // loop_pre_header
            _
          $region694: #{tpu_custom_call.1} parent=691 // loop_header
            %s1216 = sphi 0, %s1220
            %p1217 = scmp.ge.s32.totalorder %s1216, 1
            %s1221 = sphi %s1210, %s1210
            %s1222 = sphi %s1212, %s1212
          $region695: #{tpu_custom_call.1} parent=691 // loop_header_branch
            %1219 = sbr.rel (%p1217) target = $region699
          $region696: #{tpu_custom_call.1} parent=691 // loop_body
            %v1223 = vld [vmem:[%s1221] sm:%s1214]
            %1224 = vst [vmem:[%s1222] sm:%s1214] %v1223
          $region697: #{tpu_custom_call.1} parent=691 // loop_footer
            %s1220 = sadd.s32 1, %s1216
          $region698: #{tpu_custom_call.1} parent=691 // loop_footer_branch
            %1215 = sbr.rel target = $region694
          $region699: #{tpu_custom_call.1} parent=691 // loop_exit
            _
        $region692: #{tpu_custom_call.1} parent=676 // pred_fallthru
          _
      $region677: #{tpu_custom_call.1} parent=492 // pred_fallthru
        _
      // Predicated region
      $region678: #{tpu_custom_call.1} parent=492 // pred_check
        %p1188 = pneg %p1184
      $region679: #{tpu_custom_call.1} parent=492 // pred_check_branch
        %1190 = sbr.rel (%p1188) target = $region681
      $region680: #{tpu_custom_call.1} parent=492 // pred_region
        %s1191 = sshll.u32 1, 1
        %s1192 = ssub.s32 %s1191, 1
        loop: start=0, step=1, limit=1
        $region682: #{tpu_custom_call.1} parent=680 // loop_pre_header
          _
        $region683: #{tpu_custom_call.1} parent=680 // loop_header
          %s1194 = sphi 0, %s1198
          %p1195 = scmp.ge.s32.totalorder %s1194, 1
          %s1199 = sphi %s1181, %s1181
          %s1200 = sphi %s1182, %s1182
        $region684: #{tpu_custom_call.1} parent=680 // loop_header_branch
          %1197 = sbr.rel (%p1195) target = $region688
        $region685: #{tpu_custom_call.1} parent=680 // loop_body
          %v1201 = vld [vmem:[%s1199] sm:%s1192]
          %1202 = vst [vmem:[%s1200] sm:%s1192] %v1201
        $region686: #{tpu_custom_call.1} parent=680 // loop_footer
          %s1198 = sadd.s32 1, %s1194
        $region687: #{tpu_custom_call.1} parent=680 // loop_footer_branch
          %1193 = sbr.rel target = $region683
        $region688: #{tpu_custom_call.1} parent=680 // loop_exit
          _
      $region681: #{tpu_custom_call.1} parent=492 // pred_fallthru
        _
      // Predicated region
      $region700: #{tpu_custom_call.1} parent=492 // pred_check
        _
      $region701: #{tpu_custom_call.1} parent=492 // pred_check_branch
        %1227 = sbr.rel (0) target = $region703
      $region702: #{tpu_custom_call.1} parent=492 // pred_region
        %1228 = vsyncadd %s876, 16
      $region703: #{tpu_custom_call.1} parent=492 // pred_fallthru
        _
      %s1229 = sadd.s32 %s871, 7
      %s1230 = sld [smem:[#allocation5 + %s1229]]
      %s1231 = sadd.s32 %s872, 7
      %s1232 = scalar_lea.vmem %s1, %s1230
      %s1233 = scalar_lea.vmem [#allocation2], %s1231
      %p1235 = scmp.lt.u32.totalorder 1, 8
      %p1236 = pneg %p1235
      // Predicated region
      $region704: #{tpu_custom_call.1} parent=492 // pred_check
        _
      $region705: #{tpu_custom_call.1} parent=492 // pred_check_branch
        %1238 = sbr.rel (%p1235) target = $region707
      $region706: #{tpu_custom_call.1} parent=492 // pred_region
        %s1254 = sand.u32 1, 7
        %p1255 = scmp.eq.s32.totalorder %s1254, 0
        %p1256 = pneg %p1255
        // Predicated region
        $region719: #{tpu_custom_call.1} parent=706 // pred_check
          _
        $region720: #{tpu_custom_call.1} parent=706 // pred_check_branch
          %1258 = sbr.rel (%p1255) target = $region722
        $region721: #{tpu_custom_call.1} parent=706 // pred_region
          %s1259 = sand.u32 1, 7
          %s1260 = ssub.s32 1, %s1259
          %s1261 = scalar_lea.vmem %s1232, %s1260
          %s1262 = ssub.s32 1, %s1259
          %s1263 = scalar_lea.vmem %s1233, %s1262 [#allocation2]
          %s1264 = sshll.u32 1, %s1259
          %s1265 = ssub.s32 %s1264, 1
          loop: start=0, step=1, limit=1
          $region723: #{tpu_custom_call.1} parent=721 // loop_pre_header
            _
          $region724: #{tpu_custom_call.1} parent=721 // loop_header
            %s1267 = sphi 0, %s1271
            %p1268 = scmp.ge.s32.totalorder %s1267, 1
            %s1272 = sphi %s1261, %s1261
            %s1273 = sphi %s1263, %s1263
          $region725: #{tpu_custom_call.1} parent=721 // loop_header_branch
            %1270 = sbr.rel (%p1268) target = $region729
          $region726: #{tpu_custom_call.1} parent=721 // loop_body
            %v1274 = vld [vmem:[%s1272] sm:%s1265]
            %1275 = vst [vmem:[%s1273] sm:%s1265] %v1274
          $region727: #{tpu_custom_call.1} parent=721 // loop_footer
            %s1271 = sadd.s32 1, %s1267
          $region728: #{tpu_custom_call.1} parent=721 // loop_footer_branch
            %1266 = sbr.rel target = $region724
          $region729: #{tpu_custom_call.1} parent=721 // loop_exit
            _
        $region722: #{tpu_custom_call.1} parent=706 // pred_fallthru
          _
      $region707: #{tpu_custom_call.1} parent=492 // pred_fallthru
        _
      // Predicated region
      $region708: #{tpu_custom_call.1} parent=492 // pred_check
        %p1239 = pneg %p1235
      $region709: #{tpu_custom_call.1} parent=492 // pred_check_branch
        %1241 = sbr.rel (%p1239) target = $region711
      $region710: #{tpu_custom_call.1} parent=492 // pred_region
        %s1242 = sshll.u32 1, 1
        %s1243 = ssub.s32 %s1242, 1
        loop: start=0, step=1, limit=1
        $region712: #{tpu_custom_call.1} parent=710 // loop_pre_header
          _
        $region713: #{tpu_custom_call.1} parent=710 // loop_header
          %s1245 = sphi 0, %s1249
          %p1246 = scmp.ge.s32.totalorder %s1245, 1
          %s1250 = sphi %s1232, %s1232
          %s1251 = sphi %s1233, %s1233
        $region714: #{tpu_custom_call.1} parent=710 // loop_header_branch
          %1248 = sbr.rel (%p1246) target = $region718
        $region715: #{tpu_custom_call.1} parent=710 // loop_body
          %v1252 = vld [vmem:[%s1250] sm:%s1243]
          %1253 = vst [vmem:[%s1251] sm:%s1243] %v1252
        $region716: #{tpu_custom_call.1} parent=710 // loop_footer
          %s1249 = sadd.s32 1, %s1245
        $region717: #{tpu_custom_call.1} parent=710 // loop_footer_branch
          %1244 = sbr.rel target = $region713
        $region718: #{tpu_custom_call.1} parent=710 // loop_exit
          _
      $region711: #{tpu_custom_call.1} parent=492 // pred_fallthru
        _
      // Predicated region
      $region730: #{tpu_custom_call.1} parent=492 // pred_check
        _
      $region731: #{tpu_custom_call.1} parent=492 // pred_check_branch
        %1278 = sbr.rel (0) target = $region733
      $region732: #{tpu_custom_call.1} parent=492 // pred_region
        %1279 = vsyncadd %s876, 16
      $region733: #{tpu_custom_call.1} parent=492 // pred_fallthru
        _
      %s1280 = sadd.s32 %s871, 8
      %s1281 = sld [smem:[#allocation5 + %s1280]]
      %s1282 = sadd.s32 %s872, 8
      %s1283 = scalar_lea.vmem %s1, %s1281
      %s1284 = scalar_lea.vmem [#allocation2], %s1282
      %p1286 = scmp.lt.u32.totalorder 1, 8
      %p1287 = pneg %p1286
      // Predicated region
      $region734: #{tpu_custom_call.1} parent=492 // pred_check
        _
      $region735: #{tpu_custom_call.1} parent=492 // pred_check_branch
        %1289 = sbr.rel (%p1286) target = $region737
      $region736: #{tpu_custom_call.1} parent=492 // pred_region
        %s1305 = sand.u32 1, 7
        %p1306 = scmp.eq.s32.totalorder %s1305, 0
        %p1307 = pneg %p1306
        // Predicated region
        $region749: #{tpu_custom_call.1} parent=736 // pred_check
          _
        $region750: #{tpu_custom_call.1} parent=736 // pred_check_branch
          %1309 = sbr.rel (%p1306) target = $region752
        $region751: #{tpu_custom_call.1} parent=736 // pred_region
          %s1310 = sand.u32 1, 7
          %s1311 = ssub.s32 1, %s1310
          %s1312 = scalar_lea.vmem %s1283, %s1311
          %s1313 = ssub.s32 1, %s1310
          %s1314 = scalar_lea.vmem %s1284, %s1313 [#allocation2]
          %s1315 = sshll.u32 1, %s1310
          %s1316 = ssub.s32 %s1315, 1
          loop: start=0, step=1, limit=1
          $region753: #{tpu_custom_call.1} parent=751 // loop_pre_header
            _
          $region754: #{tpu_custom_call.1} parent=751 // loop_header
            %s1318 = sphi 0, %s1322
            %p1319 = scmp.ge.s32.totalorder %s1318, 1
            %s1323 = sphi %s1312, %s1312
            %s1324 = sphi %s1314, %s1314
          $region755: #{tpu_custom_call.1} parent=751 // loop_header_branch
            %1321 = sbr.rel (%p1319) target = $region759
          $region756: #{tpu_custom_call.1} parent=751 // loop_body
            %v1325 = vld [vmem:[%s1323] sm:%s1316]
            %1326 = vst [vmem:[%s1324] sm:%s1316] %v1325
          $region757: #{tpu_custom_call.1} parent=751 // loop_footer
            %s1322 = sadd.s32 1, %s1318
          $region758: #{tpu_custom_call.1} parent=751 // loop_footer_branch
            %1317 = sbr.rel target = $region754
          $region759: #{tpu_custom_call.1} parent=751 // loop_exit
            _
        $region752: #{tpu_custom_call.1} parent=736 // pred_fallthru
          _
      $region737: #{tpu_custom_call.1} parent=492 // pred_fallthru
        _
      // Predicated region
      $region738: #{tpu_custom_call.1} parent=492 // pred_check
        %p1290 = pneg %p1286
      $region739: #{tpu_custom_call.1} parent=492 // pred_check_branch
        %1292 = sbr.rel (%p1290) target = $region741
      $region740: #{tpu_custom_call.1} parent=492 // pred_region
        %s1293 = sshll.u32 1, 1
        %s1294 = ssub.s32 %s1293, 1
        loop: start=0, step=1, limit=1
        $region742: #{tpu_custom_call.1} parent=740 // loop_pre_header
          _
        $region743: #{tpu_custom_call.1} parent=740 // loop_header
          %s1296 = sphi 0, %s1300
          %p1297 = scmp.ge.s32.totalorder %s1296, 1
          %s1301 = sphi %s1283, %s1283
          %s1302 = sphi %s1284, %s1284
        $region744: #{tpu_custom_call.1} parent=740 // loop_header_branch
          %1299 = sbr.rel (%p1297) target = $region748
        $region745: #{tpu_custom_call.1} parent=740 // loop_body
          %v1303 = vld [vmem:[%s1301] sm:%s1294]
          %1304 = vst [vmem:[%s1302] sm:%s1294] %v1303
        $region746: #{tpu_custom_call.1} parent=740 // loop_footer
          %s1300 = sadd.s32 1, %s1296
        $region747: #{tpu_custom_call.1} parent=740 // loop_footer_branch
          %1295 = sbr.rel target = $region743
        $region748: #{tpu_custom_call.1} parent=740 // loop_exit
          _
      $region741: #{tpu_custom_call.1} parent=492 // pred_fallthru
        _
      // Predicated region
      $region760: #{tpu_custom_call.1} parent=492 // pred_check
        _
      $region761: #{tpu_custom_call.1} parent=492 // pred_check_branch
        %1329 = sbr.rel (0) target = $region763
      $region762: #{tpu_custom_call.1} parent=492 // pred_region
        %1330 = vsyncadd %s876, 16
      $region763: #{tpu_custom_call.1} parent=492 // pred_fallthru
        _
      %s1331 = sadd.s32 %s871, 9
      %s1332 = sld [smem:[#allocation5 + %s1331]]
      %s1333 = sadd.s32 %s872, 9
      %s1334 = scalar_lea.vmem %s1, %s1332
      %s1335 = scalar_lea.vmem [#allocation2], %s1333
      %p1337 = scmp.lt.u32.totalorder 1, 8
      %p1338 = pneg %p1337
      // Predicated region
      $region764: #{tpu_custom_call.1} parent=492 // pred_check
        _
      $region765: #{tpu_custom_call.1} parent=492 // pred_check_branch
        %1340 = sbr.rel (%p1337) target = $region767
      $region766: #{tpu_custom_call.1} parent=492 // pred_region
        %s1356 = sand.u32 1, 7
        %p1357 = scmp.eq.s32.totalorder %s1356, 0
        %p1358 = pneg %p1357
        // Predicated region
        $region779: #{tpu_custom_call.1} parent=766 // pred_check
          _
        $region780: #{tpu_custom_call.1} parent=766 // pred_check_branch
          %1360 = sbr.rel (%p1357) target = $region782
        $region781: #{tpu_custom_call.1} parent=766 // pred_region
          %s1361 = sand.u32 1, 7
          %s1362 = ssub.s32 1, %s1361
          %s1363 = scalar_lea.vmem %s1334, %s1362
          %s1364 = ssub.s32 1, %s1361
          %s1365 = scalar_lea.vmem %s1335, %s1364 [#allocation2]
          %s1366 = sshll.u32 1, %s1361
          %s1367 = ssub.s32 %s1366, 1
          loop: start=0, step=1, limit=1
          $region783: #{tpu_custom_call.1} parent=781 // loop_pre_header
            _
          $region784: #{tpu_custom_call.1} parent=781 // loop_header
            %s1369 = sphi 0, %s1373
            %p1370 = scmp.ge.s32.totalorder %s1369, 1
            %s1374 = sphi %s1363, %s1363
            %s1375 = sphi %s1365, %s1365
          $region785: #{tpu_custom_call.1} parent=781 // loop_header_branch
            %1372 = sbr.rel (%p1370) target = $region789
          $region786: #{tpu_custom_call.1} parent=781 // loop_body
            %v1376 = vld [vmem:[%s1374] sm:%s1367]
            %1377 = vst [vmem:[%s1375] sm:%s1367] %v1376
          $region787: #{tpu_custom_call.1} parent=781 // loop_footer
            %s1373 = sadd.s32 1, %s1369
          $region788: #{tpu_custom_call.1} parent=781 // loop_footer_branch
            %1368 = sbr.rel target = $region784
          $region789: #{tpu_custom_call.1} parent=781 // loop_exit
            _
        $region782: #{tpu_custom_call.1} parent=766 // pred_fallthru
          _
      $region767: #{tpu_custom_call.1} parent=492 // pred_fallthru
        _
      // Predicated region
      $region768: #{tpu_custom_call.1} parent=492 // pred_check
        %p1341 = pneg %p1337
      $region769: #{tpu_custom_call.1} parent=492 // pred_check_branch
        %1343 = sbr.rel (%p1341) target = $region771
      $region770: #{tpu_custom_call.1} parent=492 // pred_region
        %s1344 = sshll.u32 1, 1
        %s1345 = ssub.s32 %s1344, 1
        loop: start=0, step=1, limit=1
        $region772: #{tpu_custom_call.1} parent=770 // loop_pre_header
          _
        $region773: #{tpu_custom_call.1} parent=770 // loop_header
          %s1347 = sphi 0, %s1351
          %p1348 = scmp.ge.s32.totalorder %s1347, 1
          %s1352 = sphi %s1334, %s1334
          %s1353 = sphi %s1335, %s1335
        $region774: #{tpu_custom_call.1} parent=770 // loop_header_branch
          %1350 = sbr.rel (%p1348) target = $region778
        $region775: #{tpu_custom_call.1} parent=770 // loop_body
          %v1354 = vld [vmem:[%s1352] sm:%s1345]
          %1355 = vst [vmem:[%s1353] sm:%s1345] %v1354
        $region776: #{tpu_custom_call.1} parent=770 // loop_footer
          %s1351 = sadd.s32 1, %s1347
        $region777: #{tpu_custom_call.1} parent=770 // loop_footer_branch
          %1346 = sbr.rel target = $region773
        $region778: #{tpu_custom_call.1} parent=770 // loop_exit
          _
      $region771: #{tpu_custom_call.1} parent=492 // pred_fallthru
        _
      // Predicated region
      $region790: #{tpu_custom_call.1} parent=492 // pred_check
        _
      $region791: #{tpu_custom_call.1} parent=492 // pred_check_branch
        %1380 = sbr.rel (0) target = $region793
      $region792: #{tpu_custom_call.1} parent=492 // pred_region
        %1381 = vsyncadd %s876, 16
      $region793: #{tpu_custom_call.1} parent=492 // pred_fallthru
        _
      %s1382 = sadd.s32 %s871, 10
      %s1383 = sld [smem:[#allocation5 + %s1382]]
      %s1384 = sadd.s32 %s872, 10
      %s1385 = scalar_lea.vmem %s1, %s1383
      %s1386 = scalar_lea.vmem [#allocation2], %s1384
      %p1388 = scmp.lt.u32.totalorder 1, 8
      %p1389 = pneg %p1388
      // Predicated region
      $region794: #{tpu_custom_call.1} parent=492 // pred_check
        _
      $region795: #{tpu_custom_call.1} parent=492 // pred_check_branch
        %1391 = sbr.rel (%p1388) target = $region797
      $region796: #{tpu_custom_call.1} parent=492 // pred_region
        %s1407 = sand.u32 1, 7
        %p1408 = scmp.eq.s32.totalorder %s1407, 0
        %p1409 = pneg %p1408
        // Predicated region
        $region809: #{tpu_custom_call.1} parent=796 // pred_check
          _
        $region810: #{tpu_custom_call.1} parent=796 // pred_check_branch
          %1411 = sbr.rel (%p1408) target = $region812
        $region811: #{tpu_custom_call.1} parent=796 // pred_region
          %s1412 = sand.u32 1, 7
          %s1413 = ssub.s32 1, %s1412
          %s1414 = scalar_lea.vmem %s1385, %s1413
          %s1415 = ssub.s32 1, %s1412
          %s1416 = scalar_lea.vmem %s1386, %s1415 [#allocation2]
          %s1417 = sshll.u32 1, %s1412
          %s1418 = ssub.s32 %s1417, 1
          loop: start=0, step=1, limit=1
          $region813: #{tpu_custom_call.1} parent=811 // loop_pre_header
            _
          $region814: #{tpu_custom_call.1} parent=811 // loop_header
            %s1420 = sphi 0, %s1424
            %p1421 = scmp.ge.s32.totalorder %s1420, 1
            %s1425 = sphi %s1414, %s1414
            %s1426 = sphi %s1416, %s1416
          $region815: #{tpu_custom_call.1} parent=811 // loop_header_branch
            %1423 = sbr.rel (%p1421) target = $region819
          $region816: #{tpu_custom_call.1} parent=811 // loop_body
            %v1427 = vld [vmem:[%s1425] sm:%s1418]
            %1428 = vst [vmem:[%s1426] sm:%s1418] %v1427
          $region817: #{tpu_custom_call.1} parent=811 // loop_footer
            %s1424 = sadd.s32 1, %s1420
          $region818: #{tpu_custom_call.1} parent=811 // loop_footer_branch
            %1419 = sbr.rel target = $region814
          $region819: #{tpu_custom_call.1} parent=811 // loop_exit
            _
        $region812: #{tpu_custom_call.1} parent=796 // pred_fallthru
          _
      $region797: #{tpu_custom_call.1} parent=492 // pred_fallthru
        _
      // Predicated region
      $region798: #{tpu_custom_call.1} parent=492 // pred_check
        %p1392 = pneg %p1388
      $region799: #{tpu_custom_call.1} parent=492 // pred_check_branch
        %1394 = sbr.rel (%p1392) target = $region801
      $region800: #{tpu_custom_call.1} parent=492 // pred_region
        %s1395 = sshll.u32 1, 1
        %s1396 = ssub.s32 %s1395, 1
        loop: start=0, step=1, limit=1
        $region802: #{tpu_custom_call.1} parent=800 // loop_pre_header
          _
        $region803: #{tpu_custom_call.1} parent=800 // loop_header
          %s1398 = sphi 0, %s1402
          %p1399 = scmp.ge.s32.totalorder %s1398, 1
          %s1403 = sphi %s1385, %s1385
          %s1404 = sphi %s1386, %s1386
        $region804: #{tpu_custom_call.1} parent=800 // loop_header_branch
          %1401 = sbr.rel (%p1399) target = $region808
        $region805: #{tpu_custom_call.1} parent=800 // loop_body
          %v1405 = vld [vmem:[%s1403] sm:%s1396]
          %1406 = vst [vmem:[%s1404] sm:%s1396] %v1405
        $region806: #{tpu_custom_call.1} parent=800 // loop_footer
          %s1402 = sadd.s32 1, %s1398
        $region807: #{tpu_custom_call.1} parent=800 // loop_footer_branch
          %1397 = sbr.rel target = $region803
        $region808: #{tpu_custom_call.1} parent=800 // loop_exit
          _
      $region801: #{tpu_custom_call.1} parent=492 // pred_fallthru
        _
      // Predicated region
      $region820: #{tpu_custom_call.1} parent=492 // pred_check
        _
      $region821: #{tpu_custom_call.1} parent=492 // pred_check_branch
        %1431 = sbr.rel (0) target = $region823
      $region822: #{tpu_custom_call.1} parent=492 // pred_region
        %1432 = vsyncadd %s876, 16
      $region823: #{tpu_custom_call.1} parent=492 // pred_fallthru
        _
      %s1433 = sadd.s32 %s871, 11
      %s1434 = sld [smem:[#allocation5 + %s1433]]
      %s1435 = sadd.s32 %s872, 11
      %s1436 = scalar_lea.vmem %s1, %s1434
      %s1437 = scalar_lea.vmem [#allocation2], %s1435
      %p1439 = scmp.lt.u32.totalorder 1, 8
      %p1440 = pneg %p1439
      // Predicated region
      $region824: #{tpu_custom_call.1} parent=492 // pred_check
        _
      $region825: #{tpu_custom_call.1} parent=492 // pred_check_branch
        %1442 = sbr.rel (%p1439) target = $region827
      $region826: #{tpu_custom_call.1} parent=492 // pred_region
        %s1458 = sand.u32 1, 7
        %p1459 = scmp.eq.s32.totalorder %s1458, 0
        %p1460 = pneg %p1459
        // Predicated region
        $region839: #{tpu_custom_call.1} parent=826 // pred_check
          _
        $region840: #{tpu_custom_call.1} parent=826 // pred_check_branch
          %1462 = sbr.rel (%p1459) target = $region842
        $region841: #{tpu_custom_call.1} parent=826 // pred_region
          %s1463 = sand.u32 1, 7
          %s1464 = ssub.s32 1, %s1463
          %s1465 = scalar_lea.vmem %s1436, %s1464
          %s1466 = ssub.s32 1, %s1463
          %s1467 = scalar_lea.vmem %s1437, %s1466 [#allocation2]
          %s1468 = sshll.u32 1, %s1463
          %s1469 = ssub.s32 %s1468, 1
          loop: start=0, step=1, limit=1
          $region843: #{tpu_custom_call.1} parent=841 // loop_pre_header
            _
          $region844: #{tpu_custom_call.1} parent=841 // loop_header
            %s1471 = sphi 0, %s1475
            %p1472 = scmp.ge.s32.totalorder %s1471, 1
            %s1476 = sphi %s1465, %s1465
            %s1477 = sphi %s1467, %s1467
          $region845: #{tpu_custom_call.1} parent=841 // loop_header_branch
            %1474 = sbr.rel (%p1472) target = $region849
          $region846: #{tpu_custom_call.1} parent=841 // loop_body
            %v1478 = vld [vmem:[%s1476] sm:%s1469]
            %1479 = vst [vmem:[%s1477] sm:%s1469] %v1478
          $region847: #{tpu_custom_call.1} parent=841 // loop_footer
            %s1475 = sadd.s32 1, %s1471
          $region848: #{tpu_custom_call.1} parent=841 // loop_footer_branch
            %1470 = sbr.rel target = $region844
          $region849: #{tpu_custom_call.1} parent=841 // loop_exit
            _
        $region842: #{tpu_custom_call.1} parent=826 // pred_fallthru
          _
      $region827: #{tpu_custom_call.1} parent=492 // pred_fallthru
        _
      // Predicated region
      $region828: #{tpu_custom_call.1} parent=492 // pred_check
        %p1443 = pneg %p1439
      $region829: #{tpu_custom_call.1} parent=492 // pred_check_branch
        %1445 = sbr.rel (%p1443) target = $region831
      $region830: #{tpu_custom_call.1} parent=492 // pred_region
        %s1446 = sshll.u32 1, 1
        %s1447 = ssub.s32 %s1446, 1
        loop: start=0, step=1, limit=1
        $region832: #{tpu_custom_call.1} parent=830 // loop_pre_header
          _
        $region833: #{tpu_custom_call.1} parent=830 // loop_header
          %s1449 = sphi 0, %s1453
          %p1450 = scmp.ge.s32.totalorder %s1449, 1
          %s1454 = sphi %s1436, %s1436
          %s1455 = sphi %s1437, %s1437
        $region834: #{tpu_custom_call.1} parent=830 // loop_header_branch
          %1452 = sbr.rel (%p1450) target = $region838
        $region835: #{tpu_custom_call.1} parent=830 // loop_body
          %v1456 = vld [vmem:[%s1454] sm:%s1447]
          %1457 = vst [vmem:[%s1455] sm:%s1447] %v1456
        $region836: #{tpu_custom_call.1} parent=830 // loop_footer
          %s1453 = sadd.s32 1, %s1449
        $region837: #{tpu_custom_call.1} parent=830 // loop_footer_branch
          %1448 = sbr.rel target = $region833
        $region838: #{tpu_custom_call.1} parent=830 // loop_exit
          _
      $region831: #{tpu_custom_call.1} parent=492 // pred_fallthru
        _
      // Predicated region
      $region850: #{tpu_custom_call.1} parent=492 // pred_check
        _
      $region851: #{tpu_custom_call.1} parent=492 // pred_check_branch
        %1482 = sbr.rel (0) target = $region853
      $region852: #{tpu_custom_call.1} parent=492 // pred_region
        %1483 = vsyncadd %s876, 16
      $region853: #{tpu_custom_call.1} parent=492 // pred_fallthru
        _
      %s1484 = sadd.s32 %s871, 12
      %s1485 = sld [smem:[#allocation5 + %s1484]]
      %s1486 = sadd.s32 %s872, 12
      %s1487 = scalar_lea.vmem %s1, %s1485
      %s1488 = scalar_lea.vmem [#allocation2], %s1486
      %p1490 = scmp.lt.u32.totalorder 1, 8
      %p1491 = pneg %p1490
      // Predicated region
      $region854: #{tpu_custom_call.1} parent=492 // pred_check
        _
      $region855: #{tpu_custom_call.1} parent=492 // pred_check_branch
        %1493 = sbr.rel (%p1490) target = $region857
      $region856: #{tpu_custom_call.1} parent=492 // pred_region
        %s1509 = sand.u32 1, 7
        %p1510 = scmp.eq.s32.totalorder %s1509, 0
        %p1511 = pneg %p1510
        // Predicated region
        $region869: #{tpu_custom_call.1} parent=856 // pred_check
          _
        $region870: #{tpu_custom_call.1} parent=856 // pred_check_branch
          %1513 = sbr.rel (%p1510) target = $region872
        $region871: #{tpu_custom_call.1} parent=856 // pred_region
          %s1514 = sand.u32 1, 7
          %s1515 = ssub.s32 1, %s1514
          %s1516 = scalar_lea.vmem %s1487, %s1515
          %s1517 = ssub.s32 1, %s1514
          %s1518 = scalar_lea.vmem %s1488, %s1517 [#allocation2]
          %s1519 = sshll.u32 1, %s1514
          %s1520 = ssub.s32 %s1519, 1
          loop: start=0, step=1, limit=1
          $region873: #{tpu_custom_call.1} parent=871 // loop_pre_header
            _
          $region874: #{tpu_custom_call.1} parent=871 // loop_header
            %s1522 = sphi 0, %s1526
            %p1523 = scmp.ge.s32.totalorder %s1522, 1
            %s1527 = sphi %s1516, %s1516
            %s1528 = sphi %s1518, %s1518
          $region875: #{tpu_custom_call.1} parent=871 // loop_header_branch
            %1525 = sbr.rel (%p1523) target = $region879
          $region876: #{tpu_custom_call.1} parent=871 // loop_body
            %v1529 = vld [vmem:[%s1527] sm:%s1520]
            %1530 = vst [vmem:[%s1528] sm:%s1520] %v1529
          $region877: #{tpu_custom_call.1} parent=871 // loop_footer
            %s1526 = sadd.s32 1, %s1522
          $region878: #{tpu_custom_call.1} parent=871 // loop_footer_branch
            %1521 = sbr.rel target = $region874
          $region879: #{tpu_custom_call.1} parent=871 // loop_exit
            _
        $region872: #{tpu_custom_call.1} parent=856 // pred_fallthru
          _
      $region857: #{tpu_custom_call.1} parent=492 // pred_fallthru
        _
      // Predicated region
      $region858: #{tpu_custom_call.1} parent=492 // pred_check
        %p1494 = pneg %p1490
      $region859: #{tpu_custom_call.1} parent=492 // pred_check_branch
        %1496 = sbr.rel (%p1494) target = $region861
      $region860: #{tpu_custom_call.1} parent=492 // pred_region
        %s1497 = sshll.u32 1, 1
        %s1498 = ssub.s32 %s1497, 1
        loop: start=0, step=1, limit=1
        $region862: #{tpu_custom_call.1} parent=860 // loop_pre_header
          _
        $region863: #{tpu_custom_call.1} parent=860 // loop_header
          %s1500 = sphi 0, %s1504
          %p1501 = scmp.ge.s32.totalorder %s1500, 1
          %s1505 = sphi %s1487, %s1487
          %s1506 = sphi %s1488, %s1488
        $region864: #{tpu_custom_call.1} parent=860 // loop_header_branch
          %1503 = sbr.rel (%p1501) target = $region868
        $region865: #{tpu_custom_call.1} parent=860 // loop_body
          %v1507 = vld [vmem:[%s1505] sm:%s1498]
          %1508 = vst [vmem:[%s1506] sm:%s1498] %v1507
        $region866: #{tpu_custom_call.1} parent=860 // loop_footer
          %s1504 = sadd.s32 1, %s1500
        $region867: #{tpu_custom_call.1} parent=860 // loop_footer_branch
          %1499 = sbr.rel target = $region863
        $region868: #{tpu_custom_call.1} parent=860 // loop_exit
          _
      $region861: #{tpu_custom_call.1} parent=492 // pred_fallthru
        _
      // Predicated region
      $region880: #{tpu_custom_call.1} parent=492 // pred_check
        _
      $region881: #{tpu_custom_call.1} parent=492 // pred_check_branch
        %1533 = sbr.rel (0) target = $region883
      $region882: #{tpu_custom_call.1} parent=492 // pred_region
        %1534 = vsyncadd %s876, 16
      $region883: #{tpu_custom_call.1} parent=492 // pred_fallthru
        _
      %s1535 = sadd.s32 %s871, 13
      %s1536 = sld [smem:[#allocation5 + %s1535]]
      %s1537 = sadd.s32 %s872, 13
      %s1538 = scalar_lea.vmem %s1, %s1536
      %s1539 = scalar_lea.vmem [#allocation2], %s1537
      %p1541 = scmp.lt.u32.totalorder 1, 8
      %p1542 = pneg %p1541
      // Predicated region
      $region884: #{tpu_custom_call.1} parent=492 // pred_check
        _
      $region885: #{tpu_custom_call.1} parent=492 // pred_check_branch
        %1544 = sbr.rel (%p1541) target = $region887
      $region886: #{tpu_custom_call.1} parent=492 // pred_region
        %s1560 = sand.u32 1, 7
        %p1561 = scmp.eq.s32.totalorder %s1560, 0
        %p1562 = pneg %p1561
        // Predicated region
        $region899: #{tpu_custom_call.1} parent=886 // pred_check
          _
        $region900: #{tpu_custom_call.1} parent=886 // pred_check_branch
          %1564 = sbr.rel (%p1561) target = $region902
        $region901: #{tpu_custom_call.1} parent=886 // pred_region
          %s1565 = sand.u32 1, 7
          %s1566 = ssub.s32 1, %s1565
          %s1567 = scalar_lea.vmem %s1538, %s1566
          %s1568 = ssub.s32 1, %s1565
          %s1569 = scalar_lea.vmem %s1539, %s1568 [#allocation2]
          %s1570 = sshll.u32 1, %s1565
          %s1571 = ssub.s32 %s1570, 1
          loop: start=0, step=1, limit=1
          $region903: #{tpu_custom_call.1} parent=901 // loop_pre_header
            _
          $region904: #{tpu_custom_call.1} parent=901 // loop_header
            %s1573 = sphi 0, %s1577
            %p1574 = scmp.ge.s32.totalorder %s1573, 1
            %s1578 = sphi %s1567, %s1567
            %s1579 = sphi %s1569, %s1569
          $region905: #{tpu_custom_call.1} parent=901 // loop_header_branch
            %1576 = sbr.rel (%p1574) target = $region909
          $region906: #{tpu_custom_call.1} parent=901 // loop_body
            %v1580 = vld [vmem:[%s1578] sm:%s1571]
            %1581 = vst [vmem:[%s1579] sm:%s1571] %v1580
          $region907: #{tpu_custom_call.1} parent=901 // loop_footer
            %s1577 = sadd.s32 1, %s1573
          $region908: #{tpu_custom_call.1} parent=901 // loop_footer_branch
            %1572 = sbr.rel target = $region904
          $region909: #{tpu_custom_call.1} parent=901 // loop_exit
            _
        $region902: #{tpu_custom_call.1} parent=886 // pred_fallthru
          _
      $region887: #{tpu_custom_call.1} parent=492 // pred_fallthru
        _
      // Predicated region
      $region888: #{tpu_custom_call.1} parent=492 // pred_check
        %p1545 = pneg %p1541
      $region889: #{tpu_custom_call.1} parent=492 // pred_check_branch
        %1547 = sbr.rel (%p1545) target = $region891
      $region890: #{tpu_custom_call.1} parent=492 // pred_region
        %s1548 = sshll.u32 1, 1
        %s1549 = ssub.s32 %s1548, 1
        loop: start=0, step=1, limit=1
        $region892: #{tpu_custom_call.1} parent=890 // loop_pre_header
          _
        $region893: #{tpu_custom_call.1} parent=890 // loop_header
          %s1551 = sphi 0, %s1555
          %p1552 = scmp.ge.s32.totalorder %s1551, 1
          %s1556 = sphi %s1538, %s1538
          %s1557 = sphi %s1539, %s1539
        $region894: #{tpu_custom_call.1} parent=890 // loop_header_branch
          %1554 = sbr.rel (%p1552) target = $region898
        $region895: #{tpu_custom_call.1} parent=890 // loop_body
          %v1558 = vld [vmem:[%s1556] sm:%s1549]
          %1559 = vst [vmem:[%s1557] sm:%s1549] %v1558
        $region896: #{tpu_custom_call.1} parent=890 // loop_footer
          %s1555 = sadd.s32 1, %s1551
        $region897: #{tpu_custom_call.1} parent=890 // loop_footer_branch
          %1550 = sbr.rel target = $region893
        $region898: #{tpu_custom_call.1} parent=890 // loop_exit
          _
      $region891: #{tpu_custom_call.1} parent=492 // pred_fallthru
        _
      // Predicated region
      $region910: #{tpu_custom_call.1} parent=492 // pred_check
        _
      $region911: #{tpu_custom_call.1} parent=492 // pred_check_branch
        %1584 = sbr.rel (0) target = $region913
      $region912: #{tpu_custom_call.1} parent=492 // pred_region
        %1585 = vsyncadd %s876, 16
      $region913: #{tpu_custom_call.1} parent=492 // pred_fallthru
        _
      %s1586 = sadd.s32 %s871, 14
      %s1587 = sld [smem:[#allocation5 + %s1586]]
      %s1588 = sadd.s32 %s872, 14
      %s1589 = scalar_lea.vmem %s1, %s1587
      %s1590 = scalar_lea.vmem [#allocation2], %s1588
      %p1592 = scmp.lt.u32.totalorder 1, 8
      %p1593 = pneg %p1592
      // Predicated region
      $region914: #{tpu_custom_call.1} parent=492 // pred_check
        _
      $region915: #{tpu_custom_call.1} parent=492 // pred_check_branch
        %1595 = sbr.rel (%p1592) target = $region917
      $region916: #{tpu_custom_call.1} parent=492 // pred_region
        %s1611 = sand.u32 1, 7
        %p1612 = scmp.eq.s32.totalorder %s1611, 0
        %p1613 = pneg %p1612
        // Predicated region
        $region929: #{tpu_custom_call.1} parent=916 // pred_check
          _
        $region930: #{tpu_custom_call.1} parent=916 // pred_check_branch
          %1615 = sbr.rel (%p1612) target = $region932
        $region931: #{tpu_custom_call.1} parent=916 // pred_region
          %s1616 = sand.u32 1, 7
          %s1617 = ssub.s32 1, %s1616
          %s1618 = scalar_lea.vmem %s1589, %s1617
          %s1619 = ssub.s32 1, %s1616
          %s1620 = scalar_lea.vmem %s1590, %s1619 [#allocation2]
          %s1621 = sshll.u32 1, %s1616
          %s1622 = ssub.s32 %s1621, 1
          loop: start=0, step=1, limit=1
          $region933: #{tpu_custom_call.1} parent=931 // loop_pre_header
            _
          $region934: #{tpu_custom_call.1} parent=931 // loop_header
            %s1624 = sphi 0, %s1628
            %p1625 = scmp.ge.s32.totalorder %s1624, 1
            %s1629 = sphi %s1618, %s1618
            %s1630 = sphi %s1620, %s1620
          $region935: #{tpu_custom_call.1} parent=931 // loop_header_branch
            %1627 = sbr.rel (%p1625) target = $region939
          $region936: #{tpu_custom_call.1} parent=931 // loop_body
            %v1631 = vld [vmem:[%s1629] sm:%s1622]
            %1632 = vst [vmem:[%s1630] sm:%s1622] %v1631
          $region937: #{tpu_custom_call.1} parent=931 // loop_footer
            %s1628 = sadd.s32 1, %s1624
          $region938: #{tpu_custom_call.1} parent=931 // loop_footer_branch
            %1623 = sbr.rel target = $region934
          $region939: #{tpu_custom_call.1} parent=931 // loop_exit
            _
        $region932: #{tpu_custom_call.1} parent=916 // pred_fallthru
          _
      $region917: #{tpu_custom_call.1} parent=492 // pred_fallthru
        _
      // Predicated region
      $region918: #{tpu_custom_call.1} parent=492 // pred_check
        %p1596 = pneg %p1592
      $region919: #{tpu_custom_call.1} parent=492 // pred_check_branch
        %1598 = sbr.rel (%p1596) target = $region921
      $region920: #{tpu_custom_call.1} parent=492 // pred_region
        %s1599 = sshll.u32 1, 1
        %s1600 = ssub.s32 %s1599, 1
        loop: start=0, step=1, limit=1
        $region922: #{tpu_custom_call.1} parent=920 // loop_pre_header
          _
        $region923: #{tpu_custom_call.1} parent=920 // loop_header
          %s1602 = sphi 0, %s1606
          %p1603 = scmp.ge.s32.totalorder %s1602, 1
          %s1607 = sphi %s1589, %s1589
          %s1608 = sphi %s1590, %s1590
        $region924: #{tpu_custom_call.1} parent=920 // loop_header_branch
          %1605 = sbr.rel (%p1603) target = $region928
        $region925: #{tpu_custom_call.1} parent=920 // loop_body
          %v1609 = vld [vmem:[%s1607] sm:%s1600]
          %1610 = vst [vmem:[%s1608] sm:%s1600] %v1609
        $region926: #{tpu_custom_call.1} parent=920 // loop_footer
          %s1606 = sadd.s32 1, %s1602
        $region927: #{tpu_custom_call.1} parent=920 // loop_footer_branch
          %1601 = sbr.rel target = $region923
        $region928: #{tpu_custom_call.1} parent=920 // loop_exit
          _
      $region921: #{tpu_custom_call.1} parent=492 // pred_fallthru
        _
      // Predicated region
      $region940: #{tpu_custom_call.1} parent=492 // pred_check
        _
      $region941: #{tpu_custom_call.1} parent=492 // pred_check_branch
        %1635 = sbr.rel (0) target = $region943
      $region942: #{tpu_custom_call.1} parent=492 // pred_region
        %1636 = vsyncadd %s876, 16
      $region943: #{tpu_custom_call.1} parent=492 // pred_fallthru
        _
      %s1637 = sadd.s32 %s871, 15
      %s1638 = sld [smem:[#allocation5 + %s1637]]
      %s1639 = sadd.s32 %s872, 15
      %s1640 = scalar_lea.vmem %s1, %s1638
      %s1641 = scalar_lea.vmem [#allocation2], %s1639
      %p1643 = scmp.lt.u32.totalorder 1, 8
      %p1644 = pneg %p1643
      // Predicated region
      $region944: #{tpu_custom_call.1} parent=492 // pred_check
        _
      $region945: #{tpu_custom_call.1} parent=492 // pred_check_branch
        %1646 = sbr.rel (%p1643) target = $region947
      $region946: #{tpu_custom_call.1} parent=492 // pred_region
        %s1662 = sand.u32 1, 7
        %p1663 = scmp.eq.s32.totalorder %s1662, 0
        %p1664 = pneg %p1663
        // Predicated region
        $region959: #{tpu_custom_call.1} parent=946 // pred_check
          _
        $region960: #{tpu_custom_call.1} parent=946 // pred_check_branch
          %1666 = sbr.rel (%p1663) target = $region962
        $region961: #{tpu_custom_call.1} parent=946 // pred_region
          %s1667 = sand.u32 1, 7
          %s1668 = ssub.s32 1, %s1667
          %s1669 = scalar_lea.vmem %s1640, %s1668
          %s1670 = ssub.s32 1, %s1667
          %s1671 = scalar_lea.vmem %s1641, %s1670 [#allocation2]
          %s1672 = sshll.u32 1, %s1667
          %s1673 = ssub.s32 %s1672, 1
          loop: start=0, step=1, limit=1
          $region963: #{tpu_custom_call.1} parent=961 // loop_pre_header
            _
          $region964: #{tpu_custom_call.1} parent=961 // loop_header
            %s1675 = sphi 0, %s1679
            %p1676 = scmp.ge.s32.totalorder %s1675, 1
            %s1680 = sphi %s1669, %s1669
            %s1681 = sphi %s1671, %s1671
          $region965: #{tpu_custom_call.1} parent=961 // loop_header_branch
            %1678 = sbr.rel (%p1676) target = $region969
          $region966: #{tpu_custom_call.1} parent=961 // loop_body
            %v1682 = vld [vmem:[%s1680] sm:%s1673]
            %1683 = vst [vmem:[%s1681] sm:%s1673] %v1682
          $region967: #{tpu_custom_call.1} parent=961 // loop_footer
            %s1679 = sadd.s32 1, %s1675
          $region968: #{tpu_custom_call.1} parent=961 // loop_footer_branch
            %1674 = sbr.rel target = $region964
          $region969: #{tpu_custom_call.1} parent=961 // loop_exit
            _
        $region962: #{tpu_custom_call.1} parent=946 // pred_fallthru
          _
      $region947: #{tpu_custom_call.1} parent=492 // pred_fallthru
        _
      // Predicated region
      $region948: #{tpu_custom_call.1} parent=492 // pred_check
        %p1647 = pneg %p1643
      $region949: #{tpu_custom_call.1} parent=492 // pred_check_branch
        %1649 = sbr.rel (%p1647) target = $region951
      $region950: #{tpu_custom_call.1} parent=492 // pred_region
        %s1650 = sshll.u32 1, 1
        %s1651 = ssub.s32 %s1650, 1
        loop: start=0, step=1, limit=1
        $region952: #{tpu_custom_call.1} parent=950 // loop_pre_header
          _
        $region953: #{tpu_custom_call.1} parent=950 // loop_header
          %s1653 = sphi 0, %s1657
          %p1654 = scmp.ge.s32.totalorder %s1653, 1
          %s1658 = sphi %s1640, %s1640
          %s1659 = sphi %s1641, %s1641
        $region954: #{tpu_custom_call.1} parent=950 // loop_header_branch
          %1656 = sbr.rel (%p1654) target = $region958
        $region955: #{tpu_custom_call.1} parent=950 // loop_body
          %v1660 = vld [vmem:[%s1658] sm:%s1651]
          %1661 = vst [vmem:[%s1659] sm:%s1651] %v1660
        $region956: #{tpu_custom_call.1} parent=950 // loop_footer
          %s1657 = sadd.s32 1, %s1653
        $region957: #{tpu_custom_call.1} parent=950 // loop_footer_branch
          %1652 = sbr.rel target = $region953
        $region958: #{tpu_custom_call.1} parent=950 // loop_exit
          _
      $region951: #{tpu_custom_call.1} parent=492 // pred_fallthru
        _
      // Predicated region
      $region970: #{tpu_custom_call.1} parent=492 // pred_check
        _
      $region971: #{tpu_custom_call.1} parent=492 // pred_check_branch
        %1686 = sbr.rel (0) target = $region973
      $region972: #{tpu_custom_call.1} parent=492 // pred_region
        %1687 = vsyncadd %s876, 16
      $region973: #{tpu_custom_call.1} parent=492 // pred_fallthru
        _
    $region493: #{tpu_custom_call.1} parent=1 // pred_fallthru
      _
    %s1688 = smul.u32 0, 16
    %1690 = dma.done [#allocation3], 16
    %1692 = dma.done [#allocation3], 16
    %1694 = dma.done [#allocation3], 16
    %1696 = dma.done [#allocation3], 16
    %1698 = dma.done [#allocation3], 16
    %1700 = dma.done [#allocation3], 16
    %1702 = dma.done [#allocation3], 16
    %1704 = dma.done [#allocation3], 16
    %1706 = dma.done [#allocation3], 16
    %1708 = dma.done [#allocation3], 16
    %1710 = dma.done [#allocation3], 16
    %1712 = dma.done [#allocation3], 16
    %1714 = dma.done [#allocation3], 16
    %1716 = dma.done [#allocation3], 16
    %1718 = dma.done [#allocation3], 16
    %1720 = dma.done [#allocation3], 16
    %s1721 = scalar_lea.vmem [#allocation2], %s1688
    %v1722 = vld [vmem:[%s1721] sm:$0xff]
    %v1723 = vld [vmem:[%s1721 + $0x8] sm:$0xff]
    %v1724 = vand.u32 %v1722, 255
    %v1725 = vand.u32 %v1723, 255
    %v1726 = vshra.s32 %v1722, 8
    %v1727 = vshra.s32 %v1723, 8
    %v1728 = vand.u32 %v1726, 255
    %v1729 = vand.u32 %v1727, 255
    %v1730 = vshra.s32 %v1722, 16
    %v1731 = vshra.s32 %v1723, 16
    %v1732 = vand.u32 %v1730, 255
    %v1733 = vand.u32 %v1731, 255
    %v1734 = vshra.s32 %v1722, 24
    %v1735 = vshra.s32 %v1723, 24
    %v1736 = vand.u32 %v1734, 255
    %v1737 = vand.u32 %v1735, 255
    %1738 = vrot.lane.b32.xlu0 %v1728, 32
    %v1739 = vpop.permute.xlu0 %1738
    %1740 = vrot.lane.b32.xlu0 %v1729, 32
    %v1741 = vpop.permute.xlu0 %1740
    %1742 = vrot.lane.b32.xlu0 %v1732, 64
    %v1743 = vpop.permute.xlu0 %1742
    %1744 = vrot.lane.b32.xlu0 %v1733, 64
    %v1745 = vpop.permute.xlu0 %1744
    %1746 = vrot.lane.b32.xlu0 %v1736, 96
    %v1747 = vpop.permute.xlu0 %1746
    %1748 = vrot.lane.b32.xlu0 %v1737, 96
    %v1749 = vpop.permute.xlu0 %1748
    %vm1750 = vcmask 261120
    %v1751 = vsel %vm1750, %v1724, %v1739
    %v1752 = vsel %vm1750, %v1725, %v1741
    %vm1753 = vcmask 523264
    %v1754 = vsel %vm1753, %v1751, %v1743
    %v1755 = vsel %vm1753, %v1752, %v1745
    %vm1756 = vcmask 785408
    %v1757 = vsel %vm1756, %v1754, %v1747
    %v1758 = vsel %vm1756, %v1755, %v1749
    %v1759 = vcvt.s32.f32 %v1757
    %v1760 = vcvt.s32.f32 %v1758
    %v1761 = vld [vmem:[%s36] sm:$0xff]
    %v1762 = vld [vmem:[%s36 + $0x8] sm:$0xff]
    %1764 = vset.pattern.permute.xlu0 1
    %1765 = vperm.xlu0 %1764, %v1761
    %v1766 = vpop.permute.xlu0 %1765
    %1769 = vset.pattern.permute.xlu0 1
    %1770 = vperm.xlu0 %1769, %v1762
    %v1771 = vpop.permute.xlu0 %1770
    %v1773 = vsub.f32 %v1759, %v1766
    %v1774 = vsub.f32 %v1760, %v1771
    %1775 = vset.pattern.permute.xlu0 0
    %1776 = vperm.xlu0 %1775, %v1761
    %v1777 = vpop.permute.xlu0 %1776
    %1779 = vset.pattern.permute.xlu0 0
    %1780 = vperm.xlu0 %1779, %v1762
    %v1781 = vpop.permute.xlu0 %1780
    %v1783 = vmul.f32 %v1773, %v1777
    %v1784 = vmul.f32 %v1774, %v1781
    %1785 = vst [vmem:[#allocation6] sm:$0xff] %v1783
    %1786 = vst [vmem:[#allocation6 + $0x8] sm:$0xff] %v1784
    // Predicated region
    $region974: #{tpu_custom_call.1} parent=1 // pred_check
      _
    $region975: #{tpu_custom_call.1} parent=1 // pred_check_branch
      %1788 = sbr.rel (0) target = $region977
    $region976: #{tpu_custom_call.1} parent=1 // pred_region
      %s1789 = sadd.s32 0, 0
      %s1790 = smul.u32 2, %s1789
      %s1792 = ssub.s32 256, 256
      %1793 = vsyncadd [#allocation7], %s1792
      %s1794 = smul.addr %s1790, 128
      %s1795 = scalar_lea.hbm %s3, %s1794
      %s1796 = sshll.u32 [#allocation6], 4
      %s1797 = int_to_ptr.vmem [resolvable:$true] %s1796
      %1802 = dma.vmem_to_hbm [thread:$0]  %s1797, 256, %s1795, [#allocation7], 128, 128, 8
    $region977: #{tpu_custom_call.1} parent=1 // pred_fallthru
      _
    // Predicated region
    $region978: #{tpu_custom_call.1} parent=1 // pred_check
      _
    $region979: #{tpu_custom_call.1} parent=1 // pred_check_branch
      %1804 = sbr.rel (0) target = $region981
    $region980: #{tpu_custom_call.1} parent=1 // pred_region
      %1805 = dma.done [#allocation7], 256
    $region981: #{tpu_custom_call.1} parent=1 // pred_fallthru
      _
    %1806 = vsyncpa [#allocation7], 1
  %1807 = vsyncmov [#allocation3]
  %s1808 = vpop.sfrf %1807
  %p1809 = scmp.eq.s32.totalorder %s1808, 0
  %p1810 = pneg %p1809
  %1812 = shalt.err (%p1810)
  %s1813 = scalar_lea.sflag [#allocation3], 1
  %1814 = vsyncmov %s1813
  %s1815 = vpop.sfrf %1814
  %p1816 = scmp.eq.s32.totalorder %s1815, 0
  %p1817 = pneg %p1816
  %1819 = shalt.err (%p1817)

</llo_original>
